<compile_context>
chip_gen: v7x
topology: tpu7x:2x2x1
jax: 0.10.0
libtpu: 0.0.40
codegen_flags: <defaults>
</compile_context>

<pallas_src>
import functools

import jax
import jax.numpy as jnp
import numpy as np
from jax.experimental import pallas as pl
from jax.experimental.pallas import tpu as pltpu

_CompilerParams = getattr(pltpu, "CompilerParams", None) or getattr(
    pltpu, "TPUCompilerParams")

_NEG = -1e30  # large-but-finite "-inf" used for CRF class padding


# ---------------------------------------------------------------------------
# Shared math helpers (used inside the Pallas kernels AND in the pure-JAX
# reference so the numerics line up).
# ---------------------------------------------------------------------------
def _layer_norm(x, gamma, beta, eps=1e-12):
    mean = jnp.mean(x, axis=-1, keepdims=True)
    var = jnp.mean((x - mean) ** 2, axis=-1, keepdims=True)
    return (x - mean) * jax.lax.rsqrt(var + eps) * gamma + beta


def _gelu(x):
    # TODO(synk): HF BERT defaults to erf-GELU; tanh approximation used here.
    return 0.5 * x * (1.0 + jnp.tanh(0.7978845608028654 * (x + 0.044715 * x * x * x)))


if hasattr(pl, "reciprocal"):
    def _recip(x):
        return pl.reciprocal(x, approx=True)
else:  # very old jax fallback
    def _recip(x):
        return 1.0 / x


# ---------------------------------------------------------------------------
# Fused encoder-stack + classifier kernel (grid over layers, "arbitrary").
# ---------------------------------------------------------------------------
def _encoder_stack_kernel(x_ref, emb_g_ref, emb_b_ref,
                          wq_ref, bq_ref, wk_ref, bk_ref, wv_ref, bv_ref,
                          wo_ref, bo_ref, ln1_g_ref, ln1_b_ref,
                          w1_ref, b1_ref, w2_ref, b2_ref, ln2_g_ref, ln2_b_ref,
                          cls_w_ref, cls_b_ref,
                          emit_ref, h_scr,
                          *, batch, seq_len, num_heads, head_dim):
    layer = pl.program_id(0)
    bf16 = jnp.bfloat16

    # Embedding LayerNorm fused into the first grid step; h stays VMEM-resident
    # in the scratch buffer across layers.
    @pl.when(layer == 0)
    def _():
        h_scr[...] = _layer_norm(x_ref[...], emb_g_ref[...], emb_b_ref[...])

    h = h_scr[...]                                            # (B*L, H) f32
    hb = h.astype(bf16)

    # Batch folded into M for the projection matmuls (bf16 in, f32 accumulate).
    q = jnp.dot(hb, wq_ref[0], preferred_element_type=jnp.float32) + bq_ref[0]
    k = jnp.dot(hb, wk_ref[0], preferred_element_type=jnp.float32) + bk_ref[0]
    v = jnp.dot(hb, wv_ref[0], preferred_element_type=jnp.float32) + bv_ref[0]

    scale = 1.0 / float(head_dim) ** 0.5
    ctx_rows = []
    for b in range(batch):                                    # static unroll
        r0 = b * seq_len

        def heads(mat):
            # (nh, L, hd): heads stacked along a LEADING batch dim so the
            # score / context contractions are single batched dot_generals.
            return jnp.stack(
                [mat[r0:r0 + seq_len, hh * head_dim:(hh + 1) * head_dim]
                 for hh in range(num_heads)], axis=0).astype(bf16)

        qh, kh, vh = heads(q), heads(k), heads(v)
        s = jnp.einsum('hld,hmd->hlm', qh, kh,
                       preferred_element_type=jnp.float32) * scale  # (nh, L, L)
        s = s - jnp.max(s, axis=-1, keepdims=True)
        p = jnp.exp(s)
        p = p * _recip(jnp.sum(p, axis=-1, keepdims=True))           # EUP recip
        ctx = jnp.einsum('hlm,hmd->hld', p.astype(bf16), vh,
                         preferred_element_type=jnp.float32)         # (nh, L, hd)
        ctx_rows.append(
            jnp.concatenate([ctx[hh] for hh in range(num_heads)], axis=-1))
    ctx_all = jnp.concatenate(ctx_rows, axis=0) if batch > 1 else ctx_rows[0]

    # ONE output projection over (B*L, H) instead of per-head K=32 matmuls.
    attn = jnp.dot(ctx_all.astype(bf16), wo_ref[0],
                   preferred_element_type=jnp.float32) + bo_ref[0]
    h1 = _layer_norm(h + attn, ln1_g_ref[0], ln1_b_ref[0])
    ff = jnp.dot(h1.astype(bf16), w1_ref[0],
                 preferred_element_type=jnp.float32) + b1_ref[0]
    ff = _gelu(ff)
    ff = jnp.dot(ff.astype(bf16), w2_ref[0],
                 preferred_element_type=jnp.float32) + b2_ref[0]
    h2 = _layer_norm(h1 + ff, ln2_g_ref[0], ln2_b_ref[0])
    h_scr[...] = h2

    # Classifier fused into the last layer: lane-dense (padded-to-128) output.
    @pl.when(layer == pl.num_programs(0) - 1)
    def _():
        emit_ref[...] = (jnp.dot(h2.astype(bf16), cls_w_ref[...],
                                 preferred_element_type=jnp.float32)
                         + cls_b_ref[...])


# ---------------------------------------------------------------------------
# CRF Viterbi decode kernel (one grid program per sequence).
# ---------------------------------------------------------------------------
def _crf_viterbi_kernel(emit_ref, trans_ref, start_ref, end_ref,
                        path_ref, bp_ref, *, seq_len, padded_tags):
    L = seq_len
    CP = padded_tags

    trans = trans_ref[...]                                          # (CP, CP)
    lane_iota = jax.lax.broadcasted_iota(jnp.int32, (1, CP), 1)
    sub_iota = jax.lax.broadcasted_iota(jnp.int32, (CP, CP), 0)
    col_iota = jax.lax.broadcasted_iota(jnp.int32, (CP, 1), 0)
    eye = (sub_iota == jax.lax.broadcasted_iota(jnp.int32, (CP, CP), 1)
           ).astype(jnp.float32)

    def to_col(row):  # (1, CP) -> (CP, 1) via identity matmul (exact, MXU).
        return jax.lax.dot_general(eye, row, (((1,), (1,)), ((), ())),
                                   preferred_element_type=jnp.float32)

    score_col = to_col(start_ref[...] + emit_ref[0:1, :])           # (CP, 1)
    end_col = to_col(end_ref[...])

    # ---- forward max-plus recursion; backpointers in VMEM scratch ----------
    def fwd(t, score_col):
        cand = score_col + trans                                    # [prev, next]
        best = jnp.max(cand, axis=0, keepdims=True)                 # (1, CP)
        arg = jnp.min(jnp.where(cand == best, sub_iota, CP),
                      axis=0, keepdims=True)                        # first argmax
        bp_ref[pl.ds(t, 1), :] = arg
        return to_col(best + emit_ref[pl.ds(t, 1), :])

    score_col = jax.lax.fori_loop(1, L, fwd, score_col)

    # ---- best final tag -----------------------------------------------------
    final = score_col + end_col                                     # (CP, 1)
    fmax = jnp.max(final, axis=0, keepdims=True)
    last = jnp.min(jnp.where(final == fmax, col_iota, CP),
                   axis=0, keepdims=True)                           # (1, 1) int32
    path_ref[pl.ds(L - 1, 1), :] = last

    # ---- backtrack with dynamic first-axis loads/stores ---------------------
    def back(i, cur):
        t = L - i                                                   # L-1 .. 1
        bp_row = bp_ref[pl.ds(t, 1), :]                             # (1, CP)
        prev = jnp.sum(jnp.where(lane_iota == cur, bp_row, 0),
                       axis=1, keepdims=True)                       # (1, 1)
        path_ref[pl.ds(t - 1, 1), :] = prev
        return prev

    jax.lax.fori_loop(1, L, back, last)


# ---------------------------------------------------------------------------
# Parameters
# ---------------------------------------------------------------------------
def init_bert_crf_params(key, *, vocab_size, max_len, hidden, num_heads,
                         intermediate, num_layers, class_num):
    assert hidden % num_heads == 0
    ks = jax.random.split(key, 13)

    def norm(k, shape, scale=0.02):
        return (scale * jax.random.normal(k, shape)).astype(jnp.float32)

    H, I, NL, C = hidden, intermediate, num_layers, class_num
    bf = jnp.bfloat16
    params = {
        'word_emb': norm(ks[0], (vocab_size, H)),
        'pos_emb': norm(ks[1], (max_len, H)),
        'type_emb': norm(ks[2], (1, H)),
        'emb_ln_g': jnp.ones((1, H), jnp.float32),
        'emb_ln_b': jnp.zeros((1, H), jnp.float32),
        'cls_w': norm(ks[3], (H, C)).astype(bf),
        'cls_b': jnp.zeros((1, C), jnp.float32),
        'crf_trans': norm(ks[4], (C, C), scale=0.1),
        'crf_start': norm(ks[5], (1, C), scale=0.1),
        'crf_end': norm(ks[6], (1, C), scale=0.1),
        'stack': {
            # layer weights stacked along a leading layer axis (bf16 matmul wts)
            'wq': norm(ks[7], (NL, H, H)).astype(bf),
            'wk': norm(ks[8], (NL, H, H)).astype(bf),
            'wv': norm(ks[9], (NL, H, H)).astype(bf),
            'wo': norm(ks[10], (NL, H, H)).astype(bf),
            'bq': jnp.zeros((NL, 1, H), jnp.float32),
            'bk': jnp.zeros((NL, 1, H), jnp.float32),
            'bv': jnp.zeros((NL, 1, H), jnp.float32),
            'bo': jnp.zeros((NL, 1, H), jnp.float32),
            'ln1_g': jnp.ones((NL, 1, H), jnp.float32),
            'ln1_b': jnp.zeros((NL, 1, H), jnp.float32),
            'w1': norm(ks[11], (NL, H, I)).astype(bf),
            'b1': jnp.zeros((NL, 1, I), jnp.float32),
            'w2': norm(ks[12], (NL, I, H)).astype(bf),
            'b2': jnp.zeros((NL, 1, H), jnp.float32),
            'ln2_g': jnp.ones((NL, 1, H), jnp.float32),
            'ln2_b': jnp.zeros((NL, 1, H), jnp.float32),
        },
    }
    return params


# ---------------------------------------------------------------------------
# Full pipeline
# ---------------------------------------------------------------------------
def _bert_crf_apply(params, x, *, num_heads, head_dim):
    B, L = x.shape
    H = params['word_emb'].shape[1]
    st = params['stack']
    NL = st['wq'].shape[0]
    inter = st['w1'].shape[2]
    C = params['cls_w'].shape[1]
    CP = ((C + 127) // 128) * 128                    # lane-dense padded classes
    padc = CP - C

    # Embedding gather + sum stays in XLA (data-dependent gather).
    emb = (jnp.take(params['word_emb'], x, axis=0)
           + params['pos_emb'][:L][None, :, :]
           + params['type_emb'][None, :, :])
    x2 = emb.reshape(B * L, H)

    # Pad classifier / CRF params so padded classes can never win the decode.
    cls_w_pad = jnp.pad(params['cls_w'], ((0, 0), (0, padc)))
    cls_b_pad = jnp.pad(params['cls_b'], ((0, 0), (0, padc)), constant_values=_NEG)
    trans_pad = jnp.pad(params['crf_trans'], ((0, padc), (0, padc)))
    start_pad = jnp.pad(params['crf_start'], ((0, 0), (0, padc)), constant_values=_NEG)
    end_pad = jnp.pad(params['crf_end'], ((0, 0), (0, padc)), constant_values=_NEG)

    def c2(a, b):      # resident (constant block index across the layer grid)
        return pl.BlockSpec((a, b), lambda l: (0, 0))

    def lyr(a, b):     # per-layer block indexed by the layer coordinate
        return pl.BlockSpec((1, a, b), lambda l: (l, 0, 0))

    emit_flat = pl.pallas_call(
        functools.partial(_encoder_stack_kernel, batch=B, seq_len=L,
                          num_heads=num_heads, head_dim=head_dim),
        out_shape=jax.ShapeDtypeStruct((B * L, CP), jnp.float32),
        grid=(NL,),
        in_specs=[
            c2(B * L, H), c2(1, H), c2(1, H),                 # x, emb LN
            lyr(H, H), lyr(1, H), lyr(H, H), lyr(1, H),       # Wq/bq, Wk/bk
            lyr(H, H), lyr(1, H), lyr(H, H), lyr(1, H),       # Wv/bv, Wo/bo
            lyr(1, H), lyr(1, H),                             # LN1
            lyr(H, inter), lyr(1, inter), lyr(inter, H), lyr(1, H),  # FFN
            lyr(1, H), lyr(1, H),                             # LN2
            c2(H, CP), c2(1, CP),                             # classifier
        ],
        out_specs=c2(B * L, CP),
        scratch_shapes=[pltpu.VMEM((B * L, H), jnp.float32)],  # resident h
        compiler_params=_CompilerParams(dimension_semantics=("arbitrary",)),
    )(x2, params['emb_ln_g'], params['emb_ln_b'],
      st['wq'], st['bq'], st['wk'], st['bk'], st['wv'], st['bv'],
      st['wo'], st['bo'], st['ln1_g'], st['ln1_b'],
      st['w1'], st['b1'], st['w2'], st['b2'], st['ln2_g'], st['ln2_b'],
      cls_w_pad, cls_b_pad)

    path = pl.pallas_call(
        functools.partial(_crf_viterbi_kernel, seq_len=L, padded_tags=CP),
        out_shape=jax.ShapeDtypeStruct((B * L, 1), jnp.int32),
        grid=(B,),
        in_specs=[
            pl.BlockSpec((L, CP), lambda b: (b, 0)),
            pl.BlockSpec((CP, CP), lambda b: (0, 0)),
            pl.BlockSpec((1, CP), lambda b: (0, 0)),
            pl.BlockSpec((1, CP), lambda b: (0, 0)),
        ],
        out_specs=pl.BlockSpec((L, 1), lambda b: (b, 0)),
        scratch_shapes=[pltpu.VMEM((L, CP), jnp.int32)],       # backpointers
        compiler_params=_CompilerParams(dimension_semantics=("parallel",)),
    )(emit_flat, trans_pad, start_pad, end_pad)

    tags = path.reshape(B, L)
    emissions = emit_flat.reshape(B, L, CP)[:, :, :C]
    return tags, emissions


class BertCRFModelPallas:
    """JAX/Pallas re-implementation of BertCRFModel's inference forward pass."""

    def __init__(self, config, key):
        bc = config['bert_config']
        self.config = {
            'bert_model_path': bc['bert_model_path'],
            'class_num': config['class_num'],
            'hidden_size': bc['hidden_size'],
            'dropout': bc['dropout'],   # inference: dropout is a no-op
        }
        self.hidden = bc['hidden_size']
        self.num_heads = bc['num_heads']
        self.head_dim = self.hidden // self.num_heads
        self.class_num = config['class_num']
        self.params = init_bert_crf_params(
            key,
            vocab_size=bc['vocab_size'], max_len=bc['max_len'],
            hidden=self.hidden, num_heads=self.num_heads,
            intermediate=bc['intermediate_size'],
            num_layers=bc['num_layers'], class_num=self.class_num)
        self._apply_fn = jax.jit(functools.partial(
            _bert_crf_apply, num_heads=self.num_heads, head_dim=self.head_dim))

    def apply(self, x):
        """Returns (tags [B, L] int32, emissions [B, L, C] float32)."""
        return self._apply_fn(self.params, x)

    def forward(self, x, target=None):
        if target is not None:
            # TODO(synk): CRF negative-log-likelihood loss branch not implemented.
            raise NotImplementedError("only the inference (decode) path is implemented")
        tags, _ = self.apply(x)
        tags = jax.device_get(tags)
        return [[int(t) for t in row] for row in tags]

    __call__ = forward


# ---------------------------------------------------------------------------
# Pure-JAX / numpy references for correctness checking
# ---------------------------------------------------------------------------
def reference_emissions(params, x, *, num_heads, head_dim):
    bf = jnp.bfloat16
    st = params['stack']
    emb = (jnp.take(params['word_emb'], x, axis=0)
           + params['pos_emb'][: x.shape[1]][None, :, :]
           + params['type_emb'][None, :, :])
    h = _layer_norm(emb, params['emb_ln_g'], params['emb_ln_b'])
    B, L, H = h.shape
    scale = 1.0 / float(head_dim) ** 0.5
    for l in range(st['wq'].shape[0]):
        hb = h.astype(bf)
        q = jnp.dot(hb, st['wq'][l], preferred_element_type=jnp.float32) + st['bq'][l]
        k = jnp.dot(hb, st['wk'][l], preferred_element_type=jnp.float32) + st['bk'][l]
        v = jnp.dot(hb, st['wv'][l], preferred_element_type=jnp.float32) + st['bv'][l]
        qh = q.reshape(B, L, num_heads, head_dim)
        kh = k.reshape(B, L, num_heads, head_dim)
        vh = v.reshape(B, L, num_heads, head_dim)
        s = jnp.einsum('blhd,bmhd->bhlm', qh.astype(bf), kh.astype(bf),
                       preferred_element_type=jnp.float32) * scale
        s = s - jnp.max(s, axis=-1, keepdims=True)
        p = jnp.exp(s)
        p = p / jnp.sum(p, axis=-1, keepdims=True)
        ctx = jnp.einsum('bhlm,bmhd->blhd', p.astype(bf), vh.astype(bf),
                         preferred_element_type=jnp.float32).reshape(B, L, H)
        attn = jnp.dot(ctx.astype(bf), st['wo'][l],
                       preferred_element_type=jnp.float32) + st['bo'][l]
        h1 = _layer_norm(h + attn, st['ln1_g'][l], st['ln1_b'][l])
        ff = jnp.dot(h1.astype(bf), st['w1'][l],
                     preferred_element_type=jnp.float32) + st['b1'][l]
        ff = _gelu(ff)
        ff = jnp.dot(ff.astype(bf), st['w2'][l],
                     preferred_element_type=jnp.float32) + st['b2'][l]
        h = _layer_norm(h1 + ff, st['ln2_g'][l], st['ln2_b'][l])
    return jnp.dot(h.astype(bf), params['cls_w'],
                   preferred_element_type=jnp.float32) + params['cls_b']


def reference_viterbi(emissions, trans, start, end):
    emissions = np.asarray(emissions, dtype=np.float32)
    trans = np.asarray(trans, dtype=np.float32)
    start = np.asarray(start, dtype=np.float32)[0]
    end = np.asarray(end, dtype=np.float32)[0]
    B, L, C = emissions.shape
    all_tags = []
    for b in range(B):
        score = start + emissions[b, 0]
        bp = np.zeros((L, C), dtype=np.int64)
        for t in range(1, L):
            cand = score[:, None] + trans
            bp[t] = np.argmax(cand, axis=0)
            score = cand.max(axis=0) + emissions[b, t]
        last = int(np.argmax(score + end))
        tags = [last]
        for t in range(L - 1, 0, -1):
            last = int(bp[t, last])
            tags.append(last)
        tags.reverse()
        all_tags.append(tags)
    return np.asarray(all_tags, dtype=np.int32)


# ---------------------------------------------------------------------------
# Demo / self-check
# ---------------------------------------------------------------------------
if __name__ == "__main__":
    config = {
        'bert_config': {
            'bert_model_path': None,
            'hidden_size': 128,
            'dropout': 0.1,
            'num_layers': 2,
            'num_heads': 4,
            'intermediate_size': 512,
            'vocab_size': 64,
            'max_len': 16,
        },
        'class_num': 8,
    }

    key = jax.random.PRNGKey(0)
    pkey, xkey = jax.random.split(key)

    model = BertCRFModelPallas(config, pkey)

    B, L = 2, config['bert_config']['max_len']
    x = jax.random.randint(xkey, (B, L), 0, config['bert_config']['vocab_size'],
                           dtype=jnp.int32)

    tags, emissions = model.apply(x)
    tags = jax.block_until_ready(tags)
    emissions = jax.block_until_ready(emissions)

    # 1) emissions (BERT encoder + classifier) against a pure-JAX reference
    #    using the same bf16 weights (tolerance covers approx-reciprocal softmax).
    ref_em = reference_emissions(model.params, x,
                                 num_heads=model.num_heads, head_dim=model.head_dim)
    assert emissions.shape == (B, L, model.class_num)
    max_err = float(jnp.max(jnp.abs(emissions - ref_em)))
    assert max_err < 5e-2, f"emissions mismatch, max_err={max_err}"

    # 2) CRF Viterbi decode against a numpy reference on the SAME emissions.
    ref_tags = reference_viterbi(np.asarray(emissions), model.params['crf_trans'],
                                 model.params['crf_start'], model.params['crf_end'])
    assert np.array_equal(np.asarray(tags), ref_tags), (np.asarray(tags), ref_tags)

    # 3) forward() (the List[List[int]] decode, like crf.decode in the spec).
    decoded = model(x)
    assert decoded == [[int(t) for t in row] for row in np.asarray(tags)]
    assert len(decoded) == B and all(len(r) == L for r in decoded)

    print("KERNEL_OK")
</pallas_src>

<mosaic_0001>
module attributes {stable_mosaic.version = 11 : i64} {
  func.func @_crf_viterbi_kernel(%arg0: i32, %arg1: memref<16x128xf32, #tpu.memory_space<vmem>>, %arg2: memref<128x128xf32, #tpu.memory_space<vmem>>, %arg3: memref<1x128xf32, #tpu.memory_space<vmem>>, %arg4: memref<1x128xf32, #tpu.memory_space<vmem>>, %arg5: memref<16x1xi32, #tpu.memory_space<vmem>>, %arg6: memref<16x128xi32, #tpu.memory_space<vmem>>) attributes {dimension_semantics = [#tpu.dimension_semantics<parallel>], iteration_bounds = array<i64: 2>, scalar_prefetch = 0 : i64, scratch_operands = 1 : i64, tpu.core_type = #tpu.core_type<tc>, window_params = [{transform_indices = @transform_0, window_bounds = array<i64: 16, 128>}, {pipeline_mode = #tpu.pipeline_mode<synchronous>, transform_indices = @transform_1, window_bounds = array<i64: 128, 128>}, {pipeline_mode = #tpu.pipeline_mode<synchronous>, transform_indices = @transform_2, window_bounds = array<i64: 1, 128>}, {pipeline_mode = #tpu.pipeline_mode<synchronous>, transform_indices = @transform_3, window_bounds = array<i64: 1, 128>}, {transform_indices = @transform_4, window_bounds = array<i64: 16, 1>}]} {
    %c0 = arith.constant 0 : index
    %c0_0 = arith.constant 0 : index
    %0 = vector.load %arg2[%c0, %c0_0] : memref<128x128xf32, #tpu.memory_space<vmem>>, vector<128x128xf32>
    %1 = tpu.iota {dimensions = array<i32: 1>} : vector<1x128xi32>
    %2 = tpu.iota {dimensions = array<i32: 0>} : vector<128x128xi32>
    %3 = tpu.iota {dimensions = array<i32: 0>} : vector<128x1xi32>
    %4 = tpu.iota {dimensions = array<i32: 1>} : vector<128x128xi32>
    %5 = arith.cmpi eq, %2, %4 : vector<128x128xi32>
    %6 = arith.extui %5 : vector<128x128xi1> to vector<128x128xi32>
    %7 = arith.sitofp %6 : vector<128x128xi32> to vector<128x128xf32>
    %c0_1 = arith.constant 0 : index
    %c0_2 = arith.constant 0 : index
    %8 = vector.load %arg3[%c0_1, %c0_2] : memref<1x128xf32, #tpu.memory_space<vmem>>, vector<1x128xf32>
    %c0_3 = arith.constant 0 : index
    %c0_4 = arith.constant 0 : index
    %9 = vector.load %arg1[%c0_3, %c0_4] : memref<16x128xf32, #tpu.memory_space<vmem>>, vector<1x128xf32>
    %10 = arith.addf %8, %9 : vector<1x128xf32>
    %cst = arith.constant dense<0.000000e+00> : vector<128x1xf32>
    %11 = tpu.matmul %7, %10, %cst {dimension_numbers = #tpu.dot_dimension_numbers<[1], [1], [0], [0], [0, 0, 1, 0], [], []>} : vector<128x128xf32>, vector<1x128xf32>, vector<128x1xf32> -> vector<128x1xf32>
    %c0_5 = arith.constant 0 : index
    %c0_6 = arith.constant 0 : index
    %12 = vector.load %arg4[%c0_5, %c0_6] : memref<1x128xf32, #tpu.memory_space<vmem>>, vector<1x128xf32>
    %cst_7 = arith.constant dense<0.000000e+00> : vector<128x1xf32>
    %13 = tpu.matmul %7, %12, %cst_7 {dimension_numbers = #tpu.dot_dimension_numbers<[1], [1], [0], [0], [0, 0, 1, 0], [], []>} : vector<128x128xf32>, vector<1x128xf32>, vector<128x1xf32> -> vector<128x1xf32>
    %c1_i32 = arith.constant 1 : i32
    %c15_i32 = arith.constant 15 : i32
    %14 = arith.addi %c1_i32, %c15_i32 : i32
    %c1_i32_8 = arith.constant 1 : i32
    %15 = scf.for %arg7 = %c1_i32 to %14 step %c1_i32_8 iter_args(%arg8 = %11) -> (vector<128x1xf32>)  : i32 {
      %28 = vector.broadcast %arg8 : vector<128x1xf32> to vector<128x128xf32>
      %29 = arith.addf %28, %0 : vector<128x128xf32>
      %cst_17 = arith.constant dense<0xFF800000> : vector<128xf32>
      %30 = vector.multi_reduction <maximumf>, %29, %cst_17 [0] : vector<128x128xf32> to vector<128xf32>
      %31 = vector.shape_cast %30 : vector<128xf32> to vector<1x128xf32>
      %32 = vector.broadcast %31 : vector<1x128xf32> to vector<128x128xf32>
      %33 = arith.cmpf oeq, %29, %32 : vector<128x128xf32>
      %c128_i32_18 = arith.constant 128 : i32
      %34 = vector.broadcast %c128_i32_18 : i32 to vector<128x128xi32>
      %35 = arith.select %33, %2, %34 : vector<128x128xi1>, vector<128x128xi32>
      %cst_19 = arith.constant dense<2147483647> : vector<128xi32>
      %36 = vector.multi_reduction <minsi>, %35, %cst_19 [0] : vector<128x128xi32> to vector<128xi32>
      %37 = vector.shape_cast %36 : vector<128xi32> to vector<1x128xi32>
      %38 = arith.index_cast %arg7 : i32 to index
      %c0_20 = arith.constant 0 : index
      %39 = vector.load %arg6[%38, %c0_20] : memref<16x128xi32, #tpu.memory_space<vmem>>, vector<1x128xi32>
      tpu.vector_store %arg6[%38, %c0_20], %37 {strides = array<i32>} : memref<16x128xi32, #tpu.memory_space<vmem>>, vector<1x128xi32>,
      %40 = arith.index_cast %arg7 : i32 to index
      %c0_21 = arith.constant 0 : index
      %41 = vector.load %arg1[%40, %c0_21] : memref<16x128xf32, #tpu.memory_space<vmem>>, vector<1x128xf32>
      %42 = arith.addf %31, %41 : vector<1x128xf32>
      %cst_22 = arith.constant dense<0.000000e+00> : vector<128x1xf32>
      %43 = tpu.matmul %7, %42, %cst_22 {dimension_numbers = #tpu.dot_dimension_numbers<[1], [1], [0], [0], [0, 0, 1, 0], [], []>} : vector<128x128xf32>, vector<1x128xf32>, vector<128x1xf32> -> vector<128x1xf32>
      scf.yield %43 : vector<128x1xf32>
    }
    %c15_i32_9 = arith.constant 15 : i32
    %16 = arith.addf %15, %13 : vector<128x1xf32>
    %cst_10 = arith.constant dense<0xFF800000> : vector<1xf32>
    %17 = vector.multi_reduction <maximumf>, %16, %cst_10 [0] : vector<128x1xf32> to vector<1xf32>
    %18 = vector.shape_cast %17 : vector<1xf32> to vector<1x1xf32>
    %19 = vector.broadcast %18 : vector<1x1xf32> to vector<128x1xf32>
    %20 = arith.cmpf oeq, %16, %19 : vector<128x1xf32>
    %c128_i32 = arith.constant 128 : i32
    %21 = vector.broadcast %c128_i32 : i32 to vector<128x1xi32>
    %22 = arith.select %20, %3, %21 : vector<128x1xi1>, vector<128x1xi32>
    %cst_11 = arith.constant dense<2147483647> : vector<1xi32>
    %23 = vector.multi_reduction <minsi>, %22, %cst_11 [0] : vector<128x1xi32> to vector<1xi32>
    %24 = vector.shape_cast %23 : vector<1xi32> to vector<1x1xi32>
    %c15 = arith.constant 15 : index
    %c0_12 = arith.constant 0 : index
    %25 = vector.load %arg5[%c15, %c0_12] : memref<16x1xi32, #tpu.memory_space<vmem>>, vector<1x1xi32>
    tpu.vector_store %arg5[%c15, %c0_12], %24 {strides = array<i32>} : memref<16x1xi32, #tpu.memory_space<vmem>>, vector<1x1xi32>,
    %c1_i32_13 = arith.constant 1 : i32
    %c15_i32_14 = arith.constant 15 : i32
    %26 = arith.addi %c1_i32_13, %c15_i32_14 : i32
    %c1_i32_15 = arith.constant 1 : i32
    %27 = scf.for %arg7 = %c1_i32_13 to %26 step %c1_i32_15 iter_args(%arg8 = %24) -> (vector<1x1xi32>)  : i32 {
      %c16_i32 = arith.constant 16 : i32
      %28 = arith.subi %c16_i32, %arg7 : i32
      %29 = arith.index_cast %28 : i32 to index
      %c0_17 = arith.constant 0 : index
      %30 = vector.load %arg6[%29, %c0_17] : memref<16x128xi32, #tpu.memory_space<vmem>>, vector<1x128xi32>
      %31 = vector.broadcast %arg8 : vector<1x1xi32> to vector<1x128xi32>
      %32 = arith.cmpi eq, %1, %31 : vector<1x128xi32>
      %c0_i32 = arith.constant 0 : i32
      %33 = vector.broadcast %c0_i32 : i32 to vector<1x128xi32>
      %34 = arith.select %32, %30, %33 : vector<1x128xi1>, vector<1x128xi32>
      %cst_18 = arith.constant dense<0> : vector<1xi32>
      %35 = vector.multi_reduction <add>, %34, %cst_18 [1] : vector<1x128xi32> to vector<1xi32>
      %36 = vector.shape_cast %35 : vector<1xi32> to vector<1x1xi32>
      %c1_i32_19 = arith.constant 1 : i32
      %37 = arith.subi %28, %c1_i32_19 : i32
      %38 = arith.index_cast %37 : i32 to index
      %c0_20 = arith.constant 0 : index
      %39 = vector.load %arg5[%38, %c0_20] : memref<16x1xi32, #tpu.memory_space<vmem>>, vector<1x1xi32>
      tpu.vector_store %arg5[%38, %c0_20], %36 {strides = array<i32>} : memref<16x1xi32, #tpu.memory_space<vmem>>, vector<1x1xi32>,
      scf.yield %36 : vector<1x1xi32>
    }
    %c15_i32_16 = arith.constant 15 : i32
    return
  }
  func.func @transform_0(%arg0: i32) -> (i32, i32) {
    %c0_i32 = arith.constant 0 : i32
    %c0_i32_0 = arith.constant 0 : i32
    return %arg0, %c0_i32 : i32, i32
  }
  func.func @transform_1(%arg0: i32) -> (i32, i32) {
    %c0_i32 = arith.constant 0 : i32
    %c0_i32_0 = arith.constant 0 : i32
    %c0_i32_1 = arith.constant 0 : i32
    return %c0_i32, %c0_i32_0 : i32, i32
  }
  func.func @transform_2(%arg0: i32) -> (i32, i32) {
    %c0_i32 = arith.constant 0 : i32
    %c0_i32_0 = arith.constant 0 : i32
    %c0_i32_1 = arith.constant 0 : i32
    return %c0_i32, %c0_i32_0 : i32, i32
  }
  func.func @transform_3(%arg0: i32) -> (i32, i32) {
    %c0_i32 = arith.constant 0 : i32
    %c0_i32_0 = arith.constant 0 : i32
    %c0_i32_1 = arith.constant 0 : i32
    return %c0_i32, %c0_i32_0 : i32, i32
  }
  func.func @transform_4(%arg0: i32) -> (i32, i32) {
    %c0_i32 = arith.constant 0 : i32
    %c0_i32_0 = arith.constant 0 : i32
    return %arg0, %c0_i32 : i32, i32
  }
}

module attributes {stable_mosaic.version = 11 : i64} {
  func.func @_encoder_stack_kernel(%arg0: i32, %arg1: memref<32x128xf32, #tpu.memory_space<vmem>>, %arg2: memref<1x128xf32, #tpu.memory_space<vmem>>, %arg3: memref<1x128xf32, #tpu.memory_space<vmem>>, %arg4: memref<1x128x128xbf16, #tpu.memory_space<vmem>>, %arg5: memref<1x1x128xf32, #tpu.memory_space<vmem>>, %arg6: memref<1x128x128xbf16, #tpu.memory_space<vmem>>, %arg7: memref<1x1x128xf32, #tpu.memory_space<vmem>>, %arg8: memref<1x128x128xbf16, #tpu.memory_space<vmem>>, %arg9: memref<1x1x128xf32, #tpu.memory_space<vmem>>, %arg10: memref<1x128x128xbf16, #tpu.memory_space<vmem>>, %arg11: memref<1x1x128xf32, #tpu.memory_space<vmem>>, %arg12: memref<1x1x128xf32, #tpu.memory_space<vmem>>, %arg13: memref<1x1x128xf32, #tpu.memory_space<vmem>>, %arg14: memref<1x128x512xbf16, #tpu.memory_space<vmem>>, %arg15: memref<1x1x512xf32, #tpu.memory_space<vmem>>, %arg16: memref<1x512x128xbf16, #tpu.memory_space<vmem>>, %arg17: memref<1x1x128xf32, #tpu.memory_space<vmem>>, %arg18: memref<1x1x128xf32, #tpu.memory_space<vmem>>, %arg19: memref<1x1x128xf32, #tpu.memory_space<vmem>>, %arg20: memref<128x128xbf16, #tpu.memory_space<vmem>>, %arg21: memref<1x128xf32, #tpu.memory_space<vmem>>, %arg22: memref<32x128xf32, #tpu.memory_space<vmem>>, %arg23: memref<32x128xf32, #tpu.memory_space<vmem>>) attributes {dimension_semantics = [#tpu.dimension_semantics<arbitrary>], iteration_bounds = array<i64: 2>, scalar_prefetch = 0 : i64, scratch_operands = 1 : i64, tpu.core_type = #tpu.core_type<tc>, window_params = [{pipeline_mode = #tpu.pipeline_mode<synchronous>, transform_indices = @transform_0, window_bounds = array<i64: 32, 128>}, {pipeline_mode = #tpu.pipeline_mode<synchronous>, transform_indices = @transform_1, window_bounds = array<i64: 1, 128>}, {pipeline_mode = #tpu.pipeline_mode<synchronous>, transform_indices = @transform_2, window_bounds = array<i64: 1, 128>}, {transform_indices = @transform_3, window_bounds = array<i64: 1, 128, 128>}, {transform_indices = @transform_4, window_bounds = array<i64: 1, 1, 128>}, {transform_indices = @transform_5, window_bounds = array<i64: 1, 128, 128>}, {transform_indices = @transform_6, window_bounds = array<i64: 1, 1, 128>}, {transform_indices = @transform_7, window_bounds = array<i64: 1, 128, 128>}, {transform_indices = @transform_8, window_bounds = array<i64: 1, 1, 128>}, {transform_indices = @transform_9, window_bounds = array<i64: 1, 128, 128>}, {transform_indices = @transform_10, window_bounds = array<i64: 1, 1, 128>}, {transform_indices = @transform_11, window_bounds = array<i64: 1, 1, 128>}, {transform_indices = @transform_12, window_bounds = array<i64: 1, 1, 128>}, {transform_indices = @transform_13, window_bounds = array<i64: 1, 128, 512>}, {transform_indices = @transform_14, window_bounds = array<i64: 1, 1, 512>}, {transform_indices = @transform_15, window_bounds = array<i64: 1, 512, 128>}, {transform_indices = @transform_16, window_bounds = array<i64: 1, 1, 128>}, {transform_indices = @transform_17, window_bounds = array<i64: 1, 1, 128>}, {transform_indices = @transform_18, window_bounds = array<i64: 1, 1, 128>}, {pipeline_mode = #tpu.pipeline_mode<synchronous>, transform_indices = @transform_19, window_bounds = array<i64: 128, 128>}, {pipeline_mode = #tpu.pipeline_mode<synchronous>, transform_indices = @transform_20, window_bounds = array<i64: 1, 128>}, {pipeline_mode = #tpu.pipeline_mode<synchronous>, transform_indices = @transform_21, window_bounds = array<i64: 32, 128>}]} {
    %c0_i32 = arith.constant 0 : i32
    %0 = arith.cmpi eq, %arg0, %c0_i32 : i32
    %1 = arith.extui %0 : i1 to i32
    %c0_i32_0 = arith.constant 0 : i32
    %2 = arith.cmpi ne, %1, %c0_i32_0 : i32
    scf.if %2 {
      %c0_82 = arith.constant 0 : index
      %c0_83 = arith.constant 0 : index
      %230 = vector.load %arg1[%c0_82, %c0_83] : memref<32x128xf32, #tpu.memory_space<vmem>>, vector<32x128xf32>
      %c0_84 = arith.constant 0 : index
      %c0_85 = arith.constant 0 : index
      %231 = vector.load %arg2[%c0_84, %c0_85] : memref<1x128xf32, #tpu.memory_space<vmem>>, vector<1x128xf32>
      %c0_86 = arith.constant 0 : index
      %c0_87 = arith.constant 0 : index
      %232 = vector.load %arg3[%c0_86, %c0_87] : memref<1x128xf32, #tpu.memory_space<vmem>>, vector<1x128xf32>
      %cst_88 = arith.constant dense<0.000000e+00> : vector<32xf32>
      %233 = vector.multi_reduction <add>, %230, %cst_88 [1] : vector<32x128xf32> to vector<32xf32>
      %234 = vector.shape_cast %233 : vector<32xf32> to vector<32x1xf32>
      %cst_89 = arith.constant 1.280000e+02 : f32
      %235 = vector.broadcast %cst_89 : f32 to vector<32x1xf32>
      %236 = arith.divf %234, %235 : vector<32x1xf32>
      %237 = vector.broadcast %236 : vector<32x1xf32> to vector<32x128xf32>
      %238 = arith.subf %230, %237 : vector<32x128xf32>
      %239 = arith.mulf %238, %238 : vector<32x128xf32>
      %cst_90 = arith.constant dense<0.000000e+00> : vector<32xf32>
      %240 = vector.multi_reduction <add>, %239, %cst_90 [1] : vector<32x128xf32> to vector<32xf32>
      %241 = vector.shape_cast %240 : vector<32xf32> to vector<32x1xf32>
      %cst_91 = arith.constant 1.280000e+02 : f32
      %242 = vector.broadcast %cst_91 : f32 to vector<32x1xf32>
      %243 = arith.divf %241, %242 : vector<32x1xf32>
      %244 = vector.broadcast %236 : vector<32x1xf32> to vector<32x128xf32>
      %245 = arith.subf %230, %244 : vector<32x128xf32>
      %cst_92 = arith.constant 9.99999996E-13 : f32
      %246 = vector.broadcast %cst_92 : f32 to vector<32x1xf32>
      %247 = arith.addf %243, %246 : vector<32x1xf32>
      %248 = math.rsqrt %247 : vector<32x1xf32>
      %249 = vector.broadcast %248 : vector<32x1xf32> to vector<32x128xf32>
      %250 = arith.mulf %245, %249 : vector<32x128xf32>
      %251 = vector.broadcast %231 : vector<1x128xf32> to vector<32x128xf32>
      %252 = arith.mulf %250, %251 : vector<32x128xf32>
      %253 = vector.broadcast %232 : vector<1x128xf32> to vector<32x128xf32>
      %254 = arith.addf %252, %253 : vector<32x128xf32>
      %c0_93 = arith.constant 0 : index
      %c0_94 = arith.constant 0 : index
      %255 = vector.load %arg23[%c0_93, %c0_94] : memref<32x128xf32, #tpu.memory_space<vmem>>, vector<32x128xf32>
      tpu.vector_store %arg23[%c0_93, %c0_94], %254 {strides = array<i32>} : memref<32x128xf32, #tpu.memory_space<vmem>>, vector<32x128xf32>,
    } else {
    }
    %c0 = arith.constant 0 : index
    %c0_1 = arith.constant 0 : index
    %3 = vector.load %arg23[%c0, %c0_1] : memref<32x128xf32, #tpu.memory_space<vmem>>, vector<32x128xf32>
    %4 = arith.truncf %3 : vector<32x128xf32> to vector<32x128xbf16>
    %c0_2 = arith.constant 0 : index
    %c0_3 = arith.constant 0 : index
    %c0_4 = arith.constant 0 : index
    %5 = vector.load %arg4[%c0_2, %c0_3, %c0_4] : memref<1x128x128xbf16, #tpu.memory_space<vmem>>, vector<1x128x128xbf16>
    %6 = vector.shape_cast %5 : vector<1x128x128xbf16> to vector<128x128xbf16>
    %cst = arith.constant dense<0.000000e+00> : vector<32x128xf32>
    %7 = tpu.matmul %4, %6, %cst {dimension_numbers = #tpu.dot_dimension_numbers<[1], [0], [0], [1], [0, 0, 1, 1], [], []>} : vector<32x128xbf16>, vector<128x128xbf16>, vector<32x128xf32> -> vector<32x128xf32>
    %c0_5 = arith.constant 0 : index
    %c0_6 = arith.constant 0 : index
    %c0_7 = arith.constant 0 : index
    %8 = vector.load %arg5[%c0_5, %c0_6, %c0_7] : memref<1x1x128xf32, #tpu.memory_space<vmem>>, vector<1x1x128xf32>
    %9 = vector.shape_cast %8 : vector<1x1x128xf32> to vector<1x128xf32>
    %10 = vector.broadcast %9 : vector<1x128xf32> to vector<32x128xf32>
    %11 = arith.addf %7, %10 : vector<32x128xf32>
    %c0_8 = arith.constant 0 : index
    %c0_9 = arith.constant 0 : index
    %c0_10 = arith.constant 0 : index
    %12 = vector.load %arg6[%c0_8, %c0_9, %c0_10] : memref<1x128x128xbf16, #tpu.memory_space<vmem>>, vector<1x128x128xbf16>
    %13 = vector.shape_cast %12 : vector<1x128x128xbf16> to vector<128x128xbf16>
    %cst_11 = arith.constant dense<0.000000e+00> : vector<32x128xf32>
    %14 = tpu.matmul %4, %13, %cst_11 {dimension_numbers = #tpu.dot_dimension_numbers<[1], [0], [0], [1], [0, 0, 1, 1], [], []>} : vector<32x128xbf16>, vector<128x128xbf16>, vector<32x128xf32> -> vector<32x128xf32>
    %c0_12 = arith.constant 0 : index
    %c0_13 = arith.constant 0 : index
    %c0_14 = arith.constant 0 : index
    %15 = vector.load %arg7[%c0_12, %c0_13, %c0_14] : memref<1x1x128xf32, #tpu.memory_space<vmem>>, vector<1x1x128xf32>
    %16 = vector.shape_cast %15 : vector<1x1x128xf32> to vector<1x128xf32>
    %17 = vector.broadcast %16 : vector<1x128xf32> to vector<32x128xf32>
    %18 = arith.addf %14, %17 : vector<32x128xf32>
    %c0_15 = arith.constant 0 : index
    %c0_16 = arith.constant 0 : index
    %c0_17 = arith.constant 0 : index
    %19 = vector.load %arg8[%c0_15, %c0_16, %c0_17] : memref<1x128x128xbf16, #tpu.memory_space<vmem>>, vector<1x128x128xbf16>
    %20 = vector.shape_cast %19 : vector<1x128x128xbf16> to vector<128x128xbf16>
    %cst_18 = arith.constant dense<0.000000e+00> : vector<32x128xf32>
    %21 = tpu.matmul %4, %20, %cst_18 {dimension_numbers = #tpu.dot_dimension_numbers<[1], [0], [0], [1], [0, 0, 1, 1], [], []>} : vector<32x128xbf16>, vector<128x128xbf16>, vector<32x128xf32> -> vector<32x128xf32>
    %c0_19 = arith.constant 0 : index
    %c0_20 = arith.constant 0 : index
    %c0_21 = arith.constant 0 : index
    %22 = vector.load %arg9[%c0_19, %c0_20, %c0_21] : memref<1x1x128xf32, #tpu.memory_space<vmem>>, vector<1x1x128xf32>
    %23 = vector.shape_cast %22 : vector<1x1x128xf32> to vector<1x128xf32>
    %24 = vector.broadcast %23 : vector<1x128xf32> to vector<32x128xf32>
    %25 = arith.addf %21, %24 : vector<32x128xf32>
    %26 = vector.extract_strided_slice %11 {offsets = [0, 0], sizes = [16, 32], strides = [1, 1]} : vector<32x128xf32> to vector<16x32xf32>
    %27 = vector.extract_strided_slice %11 {offsets = [0, 32], sizes = [16, 32], strides = [1, 1]} : vector<32x128xf32> to vector<16x32xf32>
    %28 = vector.extract_strided_slice %11 {offsets = [0, 64], sizes = [16, 32], strides = [1, 1]} : vector<32x128xf32> to vector<16x32xf32>
    %29 = vector.extract_strided_slice %11 {offsets = [0, 96], sizes = [16, 32], strides = [1, 1]} : vector<32x128xf32> to vector<16x32xf32>
    %30 = vector.shape_cast %26 : vector<16x32xf32> to vector<1x16x32xf32>
    %31 = vector.shape_cast %27 : vector<16x32xf32> to vector<1x16x32xf32>
    %32 = vector.shape_cast %28 : vector<16x32xf32> to vector<1x16x32xf32>
    %33 = vector.shape_cast %29 : vector<16x32xf32> to vector<1x16x32xf32>
    %34 = tpu.concatenate %30, %31, %32, %33 in 0 : vector<1x16x32xf32>, vector<1x16x32xf32>, vector<1x16x32xf32>, vector<1x16x32xf32> -> vector<4x16x32xf32>
    %35 = arith.truncf %34 : vector<4x16x32xf32> to vector<4x16x32xbf16>
    %36 = vector.extract_strided_slice %18 {offsets = [0, 0], sizes = [16, 32], strides = [1, 1]} : vector<32x128xf32> to vector<16x32xf32>
    %37 = vector.extract_strided_slice %18 {offsets = [0, 32], sizes = [16, 32], strides = [1, 1]} : vector<32x128xf32> to vector<16x32xf32>
    %38 = vector.extract_strided_slice %18 {offsets = [0, 64], sizes = [16, 32], strides = [1, 1]} : vector<32x128xf32> to vector<16x32xf32>
    %39 = vector.extract_strided_slice %18 {offsets = [0, 96], sizes = [16, 32], strides = [1, 1]} : vector<32x128xf32> to vector<16x32xf32>
    %40 = vector.shape_cast %36 : vector<16x32xf32> to vector<1x16x32xf32>
    %41 = vector.shape_cast %37 : vector<16x32xf32> to vector<1x16x32xf32>
    %42 = vector.shape_cast %38 : vector<16x32xf32> to vector<1x16x32xf32>
    %43 = vector.shape_cast %39 : vector<16x32xf32> to vector<1x16x32xf32>
    %44 = tpu.concatenate %40, %41, %42, %43 in 0 : vector<1x16x32xf32>, vector<1x16x32xf32>, vector<1x16x32xf32>, vector<1x16x32xf32> -> vector<4x16x32xf32>
    %45 = arith.truncf %44 : vector<4x16x32xf32> to vector<4x16x32xbf16>
    %46 = vector.extract_strided_slice %25 {offsets = [0, 0], sizes = [16, 32], strides = [1, 1]} : vector<32x128xf32> to vector<16x32xf32>
    %47 = vector.extract_strided_slice %25 {offsets = [0, 32], sizes = [16, 32], strides = [1, 1]} : vector<32x128xf32> to vector<16x32xf32>
    %48 = vector.extract_strided_slice %25 {offsets = [0, 64], sizes = [16, 32], strides = [1, 1]} : vector<32x128xf32> to vector<16x32xf32>
    %49 = vector.extract_strided_slice %25 {offsets = [0, 96], sizes = [16, 32], strides = [1, 1]} : vector<32x128xf32> to vector<16x32xf32>
    %50 = vector.shape_cast %46 : vector<16x32xf32> to vector<1x16x32xf32>
    %51 = vector.shape_cast %47 : vector<16x32xf32> to vector<1x16x32xf32>
    %52 = vector.shape_cast %48 : vector<16x32xf32> to vector<1x16x32xf32>
    %53 = vector.shape_cast %49 : vector<16x32xf32> to vector<1x16x32xf32>
    %54 = tpu.concatenate %50, %51, %52, %53 in 0 : vector<1x16x32xf32>, vector<1x16x32xf32>, vector<1x16x32xf32>, vector<1x16x32xf32> -> vector<4x16x32xf32>
    %55 = arith.truncf %54 : vector<4x16x32xf32> to vector<4x16x32xbf16>
    "tpu.trace_start"() <{level = 10 : i32, message = "hld,hmd->hlm"}> : () -> ()
    %cst_22 = arith.constant dense<0.000000e+00> : vector<4x16x16xf32>
    %56 = tpu.matmul %35, %45, %cst_22 {dimension_numbers = #tpu.dot_dimension_numbers<[2], [2], [1], [1], [0, 0, 0, 1, 1, 1], [0], [0]>} : vector<4x16x32xbf16>, vector<4x16x32xbf16>, vector<4x16x16xf32> -> vector<4x16x16xf32>
    "tpu.trace_stop"() : () -> ()
    %cst_23 = arith.constant 0.176776692 : f32
    %57 = vector.broadcast %cst_23 : f32 to vector<4x16x16xf32>
    %58 = arith.mulf %56, %57 : vector<4x16x16xf32>
    %cst_24 = arith.constant dense<0xFF800000> : vector<4x16xf32>
    %59 = vector.multi_reduction <maximumf>, %58, %cst_24 [2] : vector<4x16x16xf32> to vector<4x16xf32>
    %60 = vector.shape_cast %59 : vector<4x16xf32> to vector<4x16x1xf32>
    %61 = vector.broadcast %60 : vector<4x16x1xf32> to vector<4x16x16xf32>
    %62 = arith.subf %58, %61 : vector<4x16x16xf32>
    %63 = math.exp %62 : vector<4x16x16xf32>
    %cst_25 = arith.constant dense<0.000000e+00> : vector<4x16xf32>
    %64 = vector.multi_reduction <add>, %63, %cst_25 [2] : vector<4x16x16xf32> to vector<4x16xf32>
    %65 = vector.shape_cast %64 : vector<4x16xf32> to vector<4x16x1xf32>
    %66 = tpu.reciprocal %65 {approx = true} : vector<4x16x1xf32> -> vector<4x16x1xf32>
    %67 = vector.broadcast %66 : vector<4x16x1xf32> to vector<4x16x16xf32>
    %68 = arith.mulf %63, %67 : vector<4x16x16xf32>
    %69 = arith.truncf %68 : vector<4x16x16xf32> to vector<4x16x16xbf16>
    "tpu.trace_start"() <{level = 10 : i32, message = "hlm,hmd->hld"}> : () -> ()
    %cst_26 = arith.constant dense<0.000000e+00> : vector<4x16x32xf32>
    %70 = tpu.matmul %69, %55, %cst_26 {dimension_numbers = #tpu.dot_dimension_numbers<[2], [1], [1], [2], [0, 0, 0, 1, 1, 2], [0], [0]>} : vector<4x16x16xbf16>, vector<4x16x32xbf16>, vector<4x16x32xf32> -> vector<4x16x32xf32>
    "tpu.trace_stop"() : () -> ()
    %71 = vector.extract_strided_slice %70 {offsets = [0, 0, 0], sizes = [1, 16, 32], strides = [1, 1, 1]} : vector<4x16x32xf32> to vector<1x16x32xf32>
    %72 = vector.shape_cast %71 : vector<1x16x32xf32> to vector<16x32xf32>
    %73 = vector.extract_strided_slice %70 {offsets = [1, 0, 0], sizes = [1, 16, 32], strides = [1, 1, 1]} : vector<4x16x32xf32> to vector<1x16x32xf32>
    %74 = vector.shape_cast %73 : vector<1x16x32xf32> to vector<16x32xf32>
    %75 = vector.extract_strided_slice %70 {offsets = [2, 0, 0], sizes = [1, 16, 32], strides = [1, 1, 1]} : vector<4x16x32xf32> to vector<1x16x32xf32>
    %76 = vector.shape_cast %75 : vector<1x16x32xf32> to vector<16x32xf32>
    %77 = vector.extract_strided_slice %70 {offsets = [3, 0, 0], sizes = [1, 16, 32], strides = [1, 1, 1]} : vector<4x16x32xf32> to vector<1x16x32xf32>
    %78 = vector.shape_cast %77 : vector<1x16x32xf32> to vector<16x32xf32>
    %79 = tpu.concatenate %72, %74, %76, %78 in 1 : vector<16x32xf32>, vector<16x32xf32>, vector<16x32xf32>, vector<16x32xf32> -> vector<16x128xf32>
    %80 = vector.extract_strided_slice %11 {offsets = [16, 0], sizes = [16, 32], strides = [1, 1]} : vector<32x128xf32> to vector<16x32xf32>
    %81 = vector.extract_strided_slice %11 {offsets = [16, 32], sizes = [16, 32], strides = [1, 1]} : vector<32x128xf32> to vector<16x32xf32>
    %82 = vector.extract_strided_slice %11 {offsets = [16, 64], sizes = [16, 32], strides = [1, 1]} : vector<32x128xf32> to vector<16x32xf32>
    %83 = vector.extract_strided_slice %11 {offsets = [16, 96], sizes = [16, 32], strides = [1, 1]} : vector<32x128xf32> to vector<16x32xf32>
    %84 = vector.shape_cast %80 : vector<16x32xf32> to vector<1x16x32xf32>
    %85 = vector.shape_cast %81 : vector<16x32xf32> to vector<1x16x32xf32>
    %86 = vector.shape_cast %82 : vector<16x32xf32> to vector<1x16x32xf32>
    %87 = vector.shape_cast %83 : vector<16x32xf32> to vector<1x16x32xf32>
    %88 = tpu.concatenate %84, %85, %86, %87 in 0 : vector<1x16x32xf32>, vector<1x16x32xf32>, vector<1x16x32xf32>, vector<1x16x32xf32> -> vector<4x16x32xf32>
    %89 = arith.truncf %88 : vector<4x16x32xf32> to vector<4x16x32xbf16>
    %90 = vector.extract_strided_slice %18 {offsets = [16, 0], sizes = [16, 32], strides = [1, 1]} : vector<32x128xf32> to vector<16x32xf32>
    %91 = vector.extract_strided_slice %18 {offsets = [16, 32], sizes = [16, 32], strides = [1, 1]} : vector<32x128xf32> to vector<16x32xf32>
    %92 = vector.extract_strided_slice %18 {offsets = [16, 64], sizes = [16, 32], strides = [1, 1]} : vector<32x128xf32> to vector<16x32xf32>
    %93 = vector.extract_strided_slice %18 {offsets = [16, 96], sizes = [16, 32], strides = [1, 1]} : vector<32x128xf32> to vector<16x32xf32>
    %94 = vector.shape_cast %90 : vector<16x32xf32> to vector<1x16x32xf32>
    %95 = vector.shape_cast %91 : vector<16x32xf32> to vector<1x16x32xf32>
    %96 = vector.shape_cast %92 : vector<16x32xf32> to vector<1x16x32xf32>
    %97 = vector.shape_cast %93 : vector<16x32xf32> to vector<1x16x32xf32>
    %98 = tpu.concatenate %94, %95, %96, %97 in 0 : vector<1x16x32xf32>, vector<1x16x32xf32>, vector<1x16x32xf32>, vector<1x16x32xf32> -> vector<4x16x32xf32>
    %99 = arith.truncf %98 : vector<4x16x32xf32> to vector<4x16x32xbf16>
    %100 = vector.extract_strided_slice %25 {offsets = [16, 0], sizes = [16, 32], strides = [1, 1]} : vector<32x128xf32> to vector<16x32xf32>
    %101 = vector.extract_strided_slice %25 {offsets = [16, 32], sizes = [16, 32], strides = [1, 1]} : vector<32x128xf32> to vector<16x32xf32>
    %102 = vector.extract_strided_slice %25 {offsets = [16, 64], sizes = [16, 32], strides = [1, 1]} : vector<32x128xf32> to vector<16x32xf32>
    %103 = vector.extract_strided_slice %25 {offsets = [16, 96], sizes = [16, 32], strides = [1, 1]} : vector<32x128xf32> to vector<16x32xf32>
    %104 = vector.shape_cast %100 : vector<16x32xf32> to vector<1x16x32xf32>
    %105 = vector.shape_cast %101 : vector<16x32xf32> to vector<1x16x32xf32>
    %106 = vector.shape_cast %102 : vector<16x32xf32> to vector<1x16x32xf32>
    %107 = vector.shape_cast %103 : vector<16x32xf32> to vector<1x16x32xf32>
    %108 = tpu.concatenate %104, %105, %106, %107 in 0 : vector<1x16x32xf32>, vector<1x16x32xf32>, vector<1x16x32xf32>, vector<1x16x32xf32> -> vector<4x16x32xf32>
    %109 = arith.truncf %108 : vector<4x16x32xf32> to vector<4x16x32xbf16>
    "tpu.trace_start"() <{level = 10 : i32, message = "hld,hmd->hlm"}> : () -> ()
    %cst_27 = arith.constant dense<0.000000e+00> : vector<4x16x16xf32>
    %110 = tpu.matmul %89, %99, %cst_27 {dimension_numbers = #tpu.dot_dimension_numbers<[2], [2], [1], [1], [0, 0, 0, 1, 1, 1], [0], [0]>} : vector<4x16x32xbf16>, vector<4x16x32xbf16>, vector<4x16x16xf32> -> vector<4x16x16xf32>
    "tpu.trace_stop"() : () -> ()
    %cst_28 = arith.constant 0.176776692 : f32
    %111 = vector.broadcast %cst_28 : f32 to vector<4x16x16xf32>
    %112 = arith.mulf %110, %111 : vector<4x16x16xf32>
    %cst_29 = arith.constant dense<0xFF800000> : vector<4x16xf32>
    %113 = vector.multi_reduction <maximumf>, %112, %cst_29 [2] : vector<4x16x16xf32> to vector<4x16xf32>
    %114 = vector.shape_cast %113 : vector<4x16xf32> to vector<4x16x1xf32>
    %115 = vector.broadcast %114 : vector<4x16x1xf32> to vector<4x16x16xf32>
    %116 = arith.subf %112, %115 : vector<4x16x16xf32>
    %117 = math.exp %116 : vector<4x16x16xf32>
    %cst_30 = arith.constant dense<0.000000e+00> : vector<4x16xf32>
    %118 = vector.multi_reduction <add>, %117, %cst_30 [2] : vector<4x16x16xf32> to vector<4x16xf32>
    %119 = vector.shape_cast %118 : vector<4x16xf32> to vector<4x16x1xf32>
    %120 = tpu.reciprocal %119 {approx = true} : vector<4x16x1xf32> -> vector<4x16x1xf32>
    %121 = vector.broadcast %120 : vector<4x16x1xf32> to vector<4x16x16xf32>
    %122 = arith.mulf %117, %121 : vector<4x16x16xf32>
    %123 = arith.truncf %122 : vector<4x16x16xf32> to vector<4x16x16xbf16>
    "tpu.trace_start"() <{level = 10 : i32, message = "hlm,hmd->hld"}> : () -> ()
    %cst_31 = arith.constant dense<0.000000e+00> : vector<4x16x32xf32>
    %124 = tpu.matmul %123, %109, %cst_31 {dimension_numbers = #tpu.dot_dimension_numbers<[2], [1], [1], [2], [0, 0, 0, 1, 1, 2], [0], [0]>} : vector<4x16x16xbf16>, vector<4x16x32xbf16>, vector<4x16x32xf32> -> vector<4x16x32xf32>
    "tpu.trace_stop"() : () -> ()
    %125 = vector.extract_strided_slice %124 {offsets = [0, 0, 0], sizes = [1, 16, 32], strides = [1, 1, 1]} : vector<4x16x32xf32> to vector<1x16x32xf32>
    %126 = vector.shape_cast %125 : vector<1x16x32xf32> to vector<16x32xf32>
    %127 = vector.extract_strided_slice %124 {offsets = [1, 0, 0], sizes = [1, 16, 32], strides = [1, 1, 1]} : vector<4x16x32xf32> to vector<1x16x32xf32>
    %128 = vector.shape_cast %127 : vector<1x16x32xf32> to vector<16x32xf32>
    %129 = vector.extract_strided_slice %124 {offsets = [2, 0, 0], sizes = [1, 16, 32], strides = [1, 1, 1]} : vector<4x16x32xf32> to vector<1x16x32xf32>
    %130 = vector.shape_cast %129 : vector<1x16x32xf32> to vector<16x32xf32>
    %131 = vector.extract_strided_slice %124 {offsets = [3, 0, 0], sizes = [1, 16, 32], strides = [1, 1, 1]} : vector<4x16x32xf32> to vector<1x16x32xf32>
    %132 = vector.shape_cast %131 : vector<1x16x32xf32> to vector<16x32xf32>
    %133 = tpu.concatenate %126, %128, %130, %132 in 1 : vector<16x32xf32>, vector<16x32xf32>, vector<16x32xf32>, vector<16x32xf32> -> vector<16x128xf32>
    %134 = tpu.concatenate %79, %133 in 0 : vector<16x128xf32>, vector<16x128xf32> -> vector<32x128xf32>
    %135 = arith.truncf %134 : vector<32x128xf32> to vector<32x128xbf16>
    %c0_32 = arith.constant 0 : index
    %c0_33 = arith.constant 0 : index
    %c0_34 = arith.constant 0 : index
    %136 = vector.load %arg10[%c0_32, %c0_33, %c0_34] : memref<1x128x128xbf16, #tpu.memory_space<vmem>>, vector<1x128x128xbf16>
    %137 = vector.shape_cast %136 : vector<1x128x128xbf16> to vector<128x128xbf16>
    %cst_35 = arith.constant dense<0.000000e+00> : vector<32x128xf32>
    %138 = tpu.matmul %135, %137, %cst_35 {dimension_numbers = #tpu.dot_dimension_numbers<[1], [0], [0], [1], [0, 0, 1, 1], [], []>} : vector<32x128xbf16>, vector<128x128xbf16>, vector<32x128xf32> -> vector<32x128xf32>
    %c0_36 = arith.constant 0 : index
    %c0_37 = arith.constant 0 : index
    %c0_38 = arith.constant 0 : index
    %139 = vector.load %arg11[%c0_36, %c0_37, %c0_38] : memref<1x1x128xf32, #tpu.memory_space<vmem>>, vector<1x1x128xf32>
    %140 = vector.shape_cast %139 : vector<1x1x128xf32> to vector<1x128xf32>
    %141 = vector.broadcast %140 : vector<1x128xf32> to vector<32x128xf32>
    %142 = arith.addf %138, %141 : vector<32x128xf32>
    %143 = arith.addf %3, %142 : vector<32x128xf32>
    %c0_39 = arith.constant 0 : index
    %c0_40 = arith.constant 0 : index
    %c0_41 = arith.constant 0 : index
    %144 = vector.load %arg12[%c0_39, %c0_40, %c0_41] : memref<1x1x128xf32, #tpu.memory_space<vmem>>, vector<1x1x128xf32>
    %145 = vector.shape_cast %144 : vector<1x1x128xf32> to vector<1x128xf32>
    %c0_42 = arith.constant 0 : index
    %c0_43 = arith.constant 0 : index
    %c0_44 = arith.constant 0 : index
    %146 = vector.load %arg13[%c0_42, %c0_43, %c0_44] : memref<1x1x128xf32, #tpu.memory_space<vmem>>, vector<1x1x128xf32>
    %147 = vector.shape_cast %146 : vector<1x1x128xf32> to vector<1x128xf32>
    %cst_45 = arith.constant dense<0.000000e+00> : vector<32xf32>
    %148 = vector.multi_reduction <add>, %143, %cst_45 [1] : vector<32x128xf32> to vector<32xf32>
    %149 = vector.shape_cast %148 : vector<32xf32> to vector<32x1xf32>
    %cst_46 = arith.constant 1.280000e+02 : f32
    %150 = vector.broadcast %cst_46 : f32 to vector<32x1xf32>
    %151 = arith.divf %149, %150 : vector<32x1xf32>
    %152 = vector.broadcast %151 : vector<32x1xf32> to vector<32x128xf32>
    %153 = arith.subf %143, %152 : vector<32x128xf32>
    %154 = arith.mulf %153, %153 : vector<32x128xf32>
    %cst_47 = arith.constant dense<0.000000e+00> : vector<32xf32>
    %155 = vector.multi_reduction <add>, %154, %cst_47 [1] : vector<32x128xf32> to vector<32xf32>
    %156 = vector.shape_cast %155 : vector<32xf32> to vector<32x1xf32>
    %cst_48 = arith.constant 1.280000e+02 : f32
    %157 = vector.broadcast %cst_48 : f32 to vector<32x1xf32>
    %158 = arith.divf %156, %157 : vector<32x1xf32>
    %159 = vector.broadcast %151 : vector<32x1xf32> to vector<32x128xf32>
    %160 = arith.subf %143, %159 : vector<32x128xf32>
    %cst_49 = arith.constant 9.99999996E-13 : f32
    %161 = vector.broadcast %cst_49 : f32 to vector<32x1xf32>
    %162 = arith.addf %158, %161 : vector<32x1xf32>
    %163 = math.rsqrt %162 : vector<32x1xf32>
    %164 = vector.broadcast %163 : vector<32x1xf32> to vector<32x128xf32>
    %165 = arith.mulf %160, %164 : vector<32x128xf32>
    %166 = vector.broadcast %145 : vector<1x128xf32> to vector<32x128xf32>
    %167 = arith.mulf %165, %166 : vector<32x128xf32>
    %168 = vector.broadcast %147 : vector<1x128xf32> to vector<32x128xf32>
    %169 = arith.addf %167, %168 : vector<32x128xf32>
    %170 = arith.truncf %169 : vector<32x128xf32> to vector<32x128xbf16>
    %c0_50 = arith.constant 0 : index
    %c0_51 = arith.constant 0 : index
    %c0_52 = arith.constant 0 : index
    %171 = vector.load %arg14[%c0_50, %c0_51, %c0_52] : memref<1x128x512xbf16, #tpu.memory_space<vmem>>, vector<1x128x512xbf16>
    %172 = vector.shape_cast %171 : vector<1x128x512xbf16> to vector<128x512xbf16>
    %cst_53 = arith.constant dense<0.000000e+00> : vector<32x512xf32>
    %173 = tpu.matmul %170, %172, %cst_53 {dimension_numbers = #tpu.dot_dimension_numbers<[1], [0], [0], [1], [0, 0, 1, 1], [], []>} : vector<32x128xbf16>, vector<128x512xbf16>, vector<32x512xf32> -> vector<32x512xf32>
    %c0_54 = arith.constant 0 : index
    %c0_55 = arith.constant 0 : index
    %c0_56 = arith.constant 0 : index
    %174 = vector.load %arg15[%c0_54, %c0_55, %c0_56] : memref<1x1x512xf32, #tpu.memory_space<vmem>>, vector<1x1x512xf32>
    %175 = vector.shape_cast %174 : vector<1x1x512xf32> to vector<1x512xf32>
    %176 = vector.broadcast %175 : vector<1x512xf32> to vector<32x512xf32>
    %177 = arith.addf %173, %176 : vector<32x512xf32>
    %cst_57 = arith.constant 5.000000e-01 : f32
    %178 = vector.broadcast %cst_57 : f32 to vector<32x512xf32>
    %179 = arith.mulf %178, %177 : vector<32x512xf32>
    %cst_58 = arith.constant 4.471500e-02 : f32
    %180 = vector.broadcast %cst_58 : f32 to vector<32x512xf32>
    %181 = arith.mulf %180, %177 : vector<32x512xf32>
    %182 = arith.mulf %181, %177 : vector<32x512xf32>
    %183 = arith.mulf %182, %177 : vector<32x512xf32>
    %184 = arith.addf %177, %183 : vector<32x512xf32>
    %cst_59 = arith.constant 0.797884583 : f32
    %185 = vector.broadcast %cst_59 : f32 to vector<32x512xf32>
    %186 = arith.mulf %185, %184 : vector<32x512xf32>
    %187 = math.tanh %186 : vector<32x512xf32>
    %cst_60 = arith.constant 1.000000e+00 : f32
    %188 = vector.broadcast %cst_60 : f32 to vector<32x512xf32>
    %189 = arith.addf %188, %187 : vector<32x512xf32>
    %190 = arith.mulf %179, %189 : vector<32x512xf32>
    %191 = arith.truncf %190 : vector<32x512xf32> to vector<32x512xbf16>
    %c0_61 = arith.constant 0 : index
    %c0_62 = arith.constant 0 : index
    %c0_63 = arith.constant 0 : index
    %192 = vector.load %arg16[%c0_61, %c0_62, %c0_63] : memref<1x512x128xbf16, #tpu.memory_space<vmem>>, vector<1x512x128xbf16>
    %193 = vector.shape_cast %192 : vector<1x512x128xbf16> to vector<512x128xbf16>
    %cst_64 = arith.constant dense<0.000000e+00> : vector<32x128xf32>
    %194 = tpu.matmul %191, %193, %cst_64 {dimension_numbers = #tpu.dot_dimension_numbers<[1], [0], [0], [1], [0, 0, 1, 1], [], []>} : vector<32x512xbf16>, vector<512x128xbf16>, vector<32x128xf32> -> vector<32x128xf32>
    %c0_65 = arith.constant 0 : index
    %c0_66 = arith.constant 0 : index
    %c0_67 = arith.constant 0 : index
    %195 = vector.load %arg17[%c0_65, %c0_66, %c0_67] : memref<1x1x128xf32, #tpu.memory_space<vmem>>, vector<1x1x128xf32>
    %196 = vector.shape_cast %195 : vector<1x1x128xf32> to vector<1x128xf32>
    %197 = vector.broadcast %196 : vector<1x128xf32> to vector<32x128xf32>
    %198 = arith.addf %194, %197 : vector<32x128xf32>
    %199 = arith.addf %169, %198 : vector<32x128xf32>
    %c0_68 = arith.constant 0 : index
    %c0_69 = arith.constant 0 : index
    %c0_70 = arith.constant 0 : index
    %200 = vector.load %arg18[%c0_68, %c0_69, %c0_70] : memref<1x1x128xf32, #tpu.memory_space<vmem>>, vector<1x1x128xf32>
    %201 = vector.shape_cast %200 : vector<1x1x128xf32> to vector<1x128xf32>
    %c0_71 = arith.constant 0 : index
    %c0_72 = arith.constant 0 : index
    %c0_73 = arith.constant 0 : index
    %202 = vector.load %arg19[%c0_71, %c0_72, %c0_73] : memref<1x1x128xf32, #tpu.memory_space<vmem>>, vector<1x1x128xf32>
    %203 = vector.shape_cast %202 : vector<1x1x128xf32> to vector<1x128xf32>
    %cst_74 = arith.constant dense<0.000000e+00> : vector<32xf32>
    %204 = vector.multi_reduction <add>, %199, %cst_74 [1] : vector<32x128xf32> to vector<32xf32>
    %205 = vector.shape_cast %204 : vector<32xf32> to vector<32x1xf32>
    %cst_75 = arith.constant 1.280000e+02 : f32
    %206 = vector.broadcast %cst_75 : f32 to vector<32x1xf32>
    %207 = arith.divf %205, %206 : vector<32x1xf32>
    %208 = vector.broadcast %207 : vector<32x1xf32> to vector<32x128xf32>
    %209 = arith.subf %199, %208 : vector<32x128xf32>
    %210 = arith.mulf %209, %209 : vector<32x128xf32>
    %cst_76 = arith.constant dense<0.000000e+00> : vector<32xf32>
    %211 = vector.multi_reduction <add>, %210, %cst_76 [1] : vector<32x128xf32> to vector<32xf32>
    %212 = vector.shape_cast %211 : vector<32xf32> to vector<32x1xf32>
    %cst_77 = arith.constant 1.280000e+02 : f32
    %213 = vector.broadcast %cst_77 : f32 to vector<32x1xf32>
    %214 = arith.divf %212, %213 : vector<32x1xf32>
    %215 = vector.broadcast %207 : vector<32x1xf32> to vector<32x128xf32>
    %216 = arith.subf %199, %215 : vector<32x128xf32>
    %cst_78 = arith.constant 9.99999996E-13 : f32
    %217 = vector.broadcast %cst_78 : f32 to vector<32x1xf32>
    %218 = arith.addf %214, %217 : vector<32x1xf32>
    %219 = math.rsqrt %218 : vector<32x1xf32>
    %220 = vector.broadcast %219 : vector<32x1xf32> to vector<32x128xf32>
    %221 = arith.mulf %216, %220 : vector<32x128xf32>
    %222 = vector.broadcast %201 : vector<1x128xf32> to vector<32x128xf32>
    %223 = arith.mulf %221, %222 : vector<32x128xf32>
    %224 = vector.broadcast %203 : vector<1x128xf32> to vector<32x128xf32>
    %225 = arith.addf %223, %224 : vector<32x128xf32>
    %c0_79 = arith.constant 0 : index
    %c0_80 = arith.constant 0 : index
    %226 = vector.load %arg23[%c0_79, %c0_80] : memref<32x128xf32, #tpu.memory_space<vmem>>, vector<32x128xf32>
    tpu.vector_store %arg23[%c0_79, %c0_80], %225 {strides = array<i32>} : memref<32x128xf32, #tpu.memory_space<vmem>>, vector<32x128xf32>,
    %c1_i32 = arith.constant 1 : i32
    %227 = arith.cmpi eq, %arg0, %c1_i32 : i32
    %228 = arith.extui %227 : i1 to i32
    %c0_i32_81 = arith.constant 0 : i32
    %229 = arith.cmpi ne, %228, %c0_i32_81 : i32
    scf.if %229 {
      %230 = arith.truncf %225 : vector<32x128xf32> to vector<32x128xbf16>
      %c0_82 = arith.constant 0 : index
      %c0_83 = arith.constant 0 : index
      %231 = vector.load %arg20[%c0_82, %c0_83] : memref<128x128xbf16, #tpu.memory_space<vmem>>, vector<128x128xbf16>
      %cst_84 = arith.constant dense<0.000000e+00> : vector<32x128xf32>
      %232 = tpu.matmul %230, %231, %cst_84 {dimension_numbers = #tpu.dot_dimension_numbers<[1], [0], [0], [1], [0, 0, 1, 1], [], []>} : vector<32x128xbf16>, vector<128x128xbf16>, vector<32x128xf32> -> vector<32x128xf32>
      %c0_85 = arith.constant 0 : index
      %c0_86 = arith.constant 0 : index
      %233 = vector.load %arg21[%c0_85, %c0_86] : memref<1x128xf32, #tpu.memory_space<vmem>>, vector<1x128xf32>
      %234 = vector.broadcast %233 : vector<1x128xf32> to vector<32x128xf32>
      %235 = arith.addf %232, %234 : vector<32x128xf32>
      %c0_87 = arith.constant 0 : index
      %c0_88 = arith.constant 0 : index
      %236 = vector.load %arg22[%c0_87, %c0_88] : memref<32x128xf32, #tpu.memory_space<vmem>>, vector<32x128xf32>
      tpu.vector_store %arg22[%c0_87, %c0_88], %235 {strides = array<i32>} : memref<32x128xf32, #tpu.memory_space<vmem>>, vector<32x128xf32>,
    } else {
    }
    return
  }
  func.func @transform_0(%arg0: i32) -> (i32, i32) {
    %c0_i32 = arith.constant 0 : i32
    %c0_i32_0 = arith.constant 0 : i32
    %c0_i32_1 = arith.constant 0 : i32
    return %c0_i32, %c0_i32_0 : i32, i32
  }
  func.func @transform_1(%arg0: i32) -> (i32, i32) {
    %c0_i32 = arith.constant 0 : i32
    %c0_i32_0 = arith.constant 0 : i32
    %c0_i32_1 = arith.constant 0 : i32
    return %c0_i32, %c0_i32_0 : i32, i32
  }
  func.func @transform_2(%arg0: i32) -> (i32, i32) {
    %c0_i32 = arith.constant 0 : i32
    %c0_i32_0 = arith.constant 0 : i32
    %c0_i32_1 = arith.constant 0 : i32
    return %c0_i32, %c0_i32_0 : i32, i32
  }
  func.func @transform_3(%arg0: i32) -> (i32, i32, i32) {
    %c0_i32 = arith.constant 0 : i32
    %c0_i32_0 = arith.constant 0 : i32
    %c0_i32_1 = arith.constant 0 : i32
    return %arg0, %c0_i32, %c0_i32_0 : i32, i32, i32
  }
  func.func @transform_4(%arg0: i32) -> (i32, i32, i32) {
    %c0_i32 = arith.constant 0 : i32
    %c0_i32_0 = arith.constant 0 : i32
    %c0_i32_1 = arith.constant 0 : i32
    return %arg0, %c0_i32, %c0_i32_0 : i32, i32, i32
  }
  func.func @transform_5(%arg0: i32) -> (i32, i32, i32) {
    %c0_i32 = arith.constant 0 : i32
    %c0_i32_0 = arith.constant 0 : i32
    %c0_i32_1 = arith.constant 0 : i32
    return %arg0, %c0_i32, %c0_i32_0 : i32, i32, i32
  }
  func.func @transform_6(%arg0: i32) -> (i32, i32, i32) {
    %c0_i32 = arith.constant 0 : i32
    %c0_i32_0 = arith.constant 0 : i32
    %c0_i32_1 = arith.constant 0 : i32
    return %arg0, %c0_i32, %c0_i32_0 : i32, i32, i32
  }
  func.func @transform_7(%arg0: i32) -> (i32, i32, i32) {
    %c0_i32 = arith.constant 0 : i32
    %c0_i32_0 = arith.constant 0 : i32
    %c0_i32_1 = arith.constant 0 : i32
    return %arg0, %c0_i32, %c0_i32_0 : i32, i32, i32
  }
  func.func @transform_8(%arg0: i32) -> (i32, i32, i32) {
    %c0_i32 = arith.constant 0 : i32
    %c0_i32_0 = arith.constant 0 : i32
    %c0_i32_1 = arith.constant 0 : i32
    return %arg0, %c0_i32, %c0_i32_0 : i32, i32, i32
  }
  func.func @transform_9(%arg0: i32) -> (i32, i32, i32) {
    %c0_i32 = arith.constant 0 : i32
    %c0_i32_0 = arith.constant 0 : i32
    %c0_i32_1 = arith.constant 0 : i32
    return %arg0, %c0_i32, %c0_i32_0 : i32, i32, i32
  }
  func.func @transform_10(%arg0: i32) -> (i32, i32, i32) {
    %c0_i32 = arith.constant 0 : i32
    %c0_i32_0 = arith.constant 0 : i32
    %c0_i32_1 = arith.constant 0 : i32
    return %arg0, %c0_i32, %c0_i32_0 : i32, i32, i32
  }
  func.func @transform_11(%arg0: i32) -> (i32, i32, i32) {
    %c0_i32 = arith.constant 0 : i32
    %c0_i32_0 = arith.constant 0 : i32
    %c0_i32_1 = arith.constant 0 : i32
    return %arg0, %c0_i32, %c0_i32_0 : i32, i32, i32
  }
  func.func @transform_12(%arg0: i32) -> (i32, i32, i32) {
    %c0_i32 = arith.constant 0 : i32
    %c0_i32_0 = arith.constant 0 : i32
    %c0_i32_1 = arith.constant 0 : i32
    return %arg0, %c0_i32, %c0_i32_0 : i32, i32, i32
  }
  func.func @transform_13(%arg0: i32) -> (i32, i32, i32) {
    %c0_i32 = arith.constant 0 : i32
    %c0_i32_0 = arith.constant 0 : i32
    %c0_i32_1 = arith.constant 0 : i32
    return %arg0, %c0_i32, %c0_i32_0 : i32, i32, i32
  }
  func.func @transform_14(%arg0: i32) -> (i32, i32, i32) {
    %c0_i32 = arith.constant 0 : i32
    %c0_i32_0 = arith.constant 0 : i32
    %c0_i32_1 = arith.constant 0 : i32
    return %arg0, %c0_i32, %c0_i32_0 : i32, i32, i32
  }
  func.func @transform_15(%arg0: i32) -> (i32, i32, i32) {
    %c0_i32 = arith.constant 0 : i32
    %c0_i32_0 = arith.constant 0 : i32
    %c0_i32_1 = arith.constant 0 : i32
    return %arg0, %c0_i32, %c0_i32_0 : i32, i32, i32
  }
  func.func @transform_16(%arg0: i32) -> (i32, i32, i32) {
    %c0_i32 = arith.constant 0 : i32
    %c0_i32_0 = arith.constant 0 : i32
    %c0_i32_1 = arith.constant 0 : i32
    return %arg0, %c0_i32, %c0_i32_0 : i32, i32, i32
  }
  func.func @transform_17(%arg0: i32) -> (i32, i32, i32) {
    %c0_i32 = arith.constant 0 : i32
    %c0_i32_0 = arith.constant 0 : i32
    %c0_i32_1 = arith.constant 0 : i32
    return %arg0, %c0_i32, %c0_i32_0 : i32, i32, i32
  }
  func.func @transform_18(%arg0: i32) -> (i32, i32, i32) {
    %c0_i32 = arith.constant 0 : i32
    %c0_i32_0 = arith.constant 0 : i32
    %c0_i32_1 = arith.constant 0 : i32
    return %arg0, %c0_i32, %c0_i32_0 : i32, i32, i32
  }
  func.func @transform_19(%arg0: i32) -> (i32, i32) {
    %c0_i32 = arith.constant 0 : i32
    %c0_i32_0 = arith.constant 0 : i32
    %c0_i32_1 = arith.constant 0 : i32
    return %c0_i32, %c0_i32_0 : i32, i32
  }
  func.func @transform_20(%arg0: i32) -> (i32, i32) {
    %c0_i32 = arith.constant 0 : i32
    %c0_i32_0 = arith.constant 0 : i32
    %c0_i32_1 = arith.constant 0 : i32
    return %c0_i32, %c0_i32_0 : i32, i32
  }
  func.func @transform_21(%arg0: i32) -> (i32, i32) {
    %c0_i32 = arith.constant 0 : i32
    %c0_i32_0 = arith.constant 0 : i32
    %c0_i32_1 = arith.constant 0 : i32
    return %c0_i32, %c0_i32_0 : i32, i32
  }
}

</mosaic_0001>

<llo_original>
// kernel: _bert_crf_apply.3
$region0: #{_bert_crf_apply.3}
  #allocation0 [shape = 'u32[]', space=smem, size = 0x4, offset = 0x4, fixed_abs, tag = 'smem constant byte address 0x4 - core index']
  #allocation1 [shape = 'u32[144,128]{1,0:T(1,128)}', space=vmem, size = 0x12000, scoped, tag = 'internal scratch']
  #allocation2 [shape = 's32[16,128]{1,0:T(8,128)}', space=vmem, size = 0x2000, scoped, tag = 'scratch operand']
  %s0 = inlined_call_operand.vmem [shape: f32[32,128], index: 0, kind: input, shape index: {}]
  %s1 = inlined_call_operand.vmem [shape: f32[128,128], index: 1, kind: input, shape index: {}]
  %s2 = inlined_call_operand.vmem [shape: f32[1,128], index: 2, kind: input, shape index: {}]
  %s3 = inlined_call_operand.vmem [shape: f32[1,128], index: 3, kind: input, shape index: {}]
  %s4 = inlined_call_operand.vmem [shape: s32[32,1], index: 4, kind: output, shape index: {}]
  %s5 = sld [smem:[#allocation0]]
  $region63: #{_bert_crf_apply.3} parent=0
    _
  %s7 = ssub.s32 1, %s5
  %s8 = scalar_select 0, %s7, %s5
  loop: start=0, step=1, limit=4
  $region2: #{_bert_crf_apply.3} parent=0 // loop_pre_header
    _
  $region3: #{_bert_crf_apply.3} parent=0 // loop_header
    %s10 = sphi 0, %s14
    %p11 = scmp.ge.s32.totalorder %s10, 4
    %s20 = sphi 0, %s22
    %s23 = sphi 0, %s20
    %s24 = sphi 0, %s23
    %s40 = sphi 0, %s24
    %s44 = sphi 0, %s44
    %s46 = sphi 0, %s44
    %s47 = sphi 0, %s46
    %s61 = sphi 0, %s47
    %s65 = sphi 0, %s65
    %s67 = sphi 0, %s65
    %s68 = sphi 0, %s67
    %s82 = sphi 0, %s68
    %s86 = sphi 0, %s86
    %s88 = sphi 0, %s86
    %s89 = sphi 0, %s88
    %s103 = sphi 0, %s89
    %s109 = sphi 0, %s111
    %s112 = sphi 0, %s109
    %s113 = sphi 0, %s112
    %s129 = sphi 0, %s113
  $region4: #{_bert_crf_apply.3} parent=0 // loop_header_branch
    %13 = sbr.rel (%p11) target = $region8
  $region5: #{_bert_crf_apply.3} parent=0 // loop_body
    %s15 = ssub.s32 %s10, 1
    %s16 = ssub.s32 %s10, 2
    %s17 = sadd.s32 %s10, 1
    %s18 = ssub.s32 %s10, %s17
    %p19 = scmp.eq.s32.totalorder %s18, 0
    %s21 = sadd.s32 %s20, 1
    %s22 = scalar_select %p19, %s20, %s21
    %p25 = pneg %p19
    %p26 = scmp.eq.s32.totalorder %s10, 1
    %p27 = por %p25, %p26
    %p28 = scmp.ne.s32.totalorder %s20, %s23
    %p29 = scmp.eq.s32.totalorder %s10, 0
    %p30 = por %p28, %p29
    %p31 = scmp.ne.s32.totalorder %s20, %s23
    %p32 = scmp.eq.s32.totalorder %s15, 1
    %p33 = por %p31, %p32
    %p34 = scmp.ne.s32.totalorder %s23, %s24
    %p35 = scmp.eq.s32.totalorder %s15, 0
    %p36 = por %p34, %p35
    %p37 = scmp.ne.s32.totalorder %s23, %s24
    %p38 = scmp.eq.s32.totalorder %s16, 1
    %p39 = por %p37, %p38
    %p41 = scmp.ne.s32.totalorder %s24, %s40
    %p42 = scmp.eq.s32.totalorder %s16, 0
    %p43 = por %p41, %p42
    %s45 = sadd.s32 %s44, 1
    %p48 = scmp.eq.s32.totalorder %s10, 1
    %p49 = scmp.ne.s32.totalorder %s44, %s46
    %p50 = scmp.eq.s32.totalorder %s10, 0
    %p51 = por %p49, %p50
    %p52 = scmp.ne.s32.totalorder %s44, %s46
    %p53 = scmp.eq.s32.totalorder %s15, 1
    %p54 = por %p52, %p53
    %p55 = scmp.ne.s32.totalorder %s46, %s47
    %p56 = scmp.eq.s32.totalorder %s15, 0
    %p57 = por %p55, %p56
    %p58 = scmp.ne.s32.totalorder %s46, %s47
    %p59 = scmp.eq.s32.totalorder %s16, 1
    %p60 = por %p58, %p59
    %p62 = scmp.ne.s32.totalorder %s47, %s61
    %p63 = scmp.eq.s32.totalorder %s16, 0
    %p64 = por %p62, %p63
    %s66 = sadd.s32 %s65, 1
    %p69 = scmp.eq.s32.totalorder %s10, 1
    %p70 = scmp.ne.s32.totalorder %s65, %s67
    %p71 = scmp.eq.s32.totalorder %s10, 0
    %p72 = por %p70, %p71
    %p73 = scmp.ne.s32.totalorder %s65, %s67
    %p74 = scmp.eq.s32.totalorder %s15, 1
    %p75 = por %p73, %p74
    %p76 = scmp.ne.s32.totalorder %s67, %s68
    %p77 = scmp.eq.s32.totalorder %s15, 0
    %p78 = por %p76, %p77
    %p79 = scmp.ne.s32.totalorder %s67, %s68
    %p80 = scmp.eq.s32.totalorder %s16, 1
    %p81 = por %p79, %p80
    %p83 = scmp.ne.s32.totalorder %s68, %s82
    %p84 = scmp.eq.s32.totalorder %s16, 0
    %p85 = por %p83, %p84
    %s87 = sadd.s32 %s86, 1
    %p90 = scmp.eq.s32.totalorder %s10, 1
    %p91 = scmp.ne.s32.totalorder %s86, %s88
    %p92 = scmp.eq.s32.totalorder %s10, 0
    %p93 = por %p91, %p92
    %p94 = scmp.ne.s32.totalorder %s86, %s88
    %p95 = scmp.eq.s32.totalorder %s15, 1
    %p96 = por %p94, %p95
    %p97 = scmp.ne.s32.totalorder %s88, %s89
    %p98 = scmp.eq.s32.totalorder %s15, 0
    %p99 = por %p97, %p98
    %p100 = scmp.ne.s32.totalorder %s88, %s89
    %p101 = scmp.eq.s32.totalorder %s16, 1
    %p102 = por %p100, %p101
    %p104 = scmp.ne.s32.totalorder %s89, %s103
    %p105 = scmp.eq.s32.totalorder %s16, 0
    %p106 = por %p104, %p105
    %s107 = ssub.s32 %s10, %s17
    %p108 = scmp.eq.s32.totalorder %s107, 0
    %s110 = sadd.s32 %s109, 1
    %s111 = scalar_select %p108, %s109, %s110
    %p114 = pneg %p108
    %p115 = scmp.eq.s32.totalorder %s10, 1
    %p116 = por %p114, %p115
    %p117 = scmp.ne.s32.totalorder %s109, %s112
    %p118 = scmp.eq.s32.totalorder %s10, 0
    %p119 = por %p117, %p118
    %p120 = scmp.ne.s32.totalorder %s109, %s112
    %p121 = scmp.eq.s32.totalorder %s15, 1
    %p122 = por %p120, %p121
    %p123 = scmp.ne.s32.totalorder %s112, %s113
    %p124 = scmp.eq.s32.totalorder %s15, 0
    %p125 = por %p123, %p124
    %p126 = scmp.ne.s32.totalorder %s112, %s113
    %p127 = scmp.eq.s32.totalorder %s16, 1
    %p128 = por %p126, %p127
    %p130 = scmp.ne.s32.totalorder %s113, %s129
    %p131 = scmp.eq.s32.totalorder %s16, 0
    %p132 = por %p130, %p131
    %p133 = scmp.le.s32.totalorder 1, %s10
    %p134 = scmp.lt.s32.totalorder %s10, 3
    %p135 = pnand %p133, %p134
    %p136 = pneg %p135
    // Predicated region
    $region9: #{_bert_crf_apply.3} parent=5 // pred_check
      _
    $region10: #{_bert_crf_apply.3} parent=5 // pred_check_branch
      %138 = sbr.rel (%p135) target = $region12
    $region11: #{_bert_crf_apply.3} parent=5 // pred_region
      %s139 = ssub.s32 %s10, 1
      // Predicated region
      $region13: #{_bert_crf_apply.3} parent=11 // pred_check
        %p140 = pneg %p57
      $region14: #{_bert_crf_apply.3} parent=11 // pred_check_branch
        %142 = sbr.rel (%p140) target = $region16
      $region15: #{_bert_crf_apply.3} parent=11 // pred_region
        _
      $region16: #{_bert_crf_apply.3} parent=11 // pred_fallthru
        _
      // Predicated region
      $region17: #{_bert_crf_apply.3} parent=11 // pred_check
        %p143 = pneg %p78
      $region18: #{_bert_crf_apply.3} parent=11 // pred_check_branch
        %145 = sbr.rel (%p143) target = $region20
      $region19: #{_bert_crf_apply.3} parent=11 // pred_region
        _
      $region20: #{_bert_crf_apply.3} parent=11 // pred_fallthru
        _
      // Predicated region
      $region21: #{_bert_crf_apply.3} parent=11 // pred_check
        %p146 = pneg %p99
      $region22: #{_bert_crf_apply.3} parent=11 // pred_check_branch
        %148 = sbr.rel (%p146) target = $region24
      $region23: #{_bert_crf_apply.3} parent=11 // pred_region
        _
      $region24: #{_bert_crf_apply.3} parent=11 // pred_fallthru
        _
    $region12: #{_bert_crf_apply.3} parent=5 // pred_fallthru
      _
    %p149 = scmp.lt.s32.totalorder %s10, 2
    // Predicated region
    $region25: #{_bert_crf_apply.3} parent=5 // pred_check
      %p150 = pneg %p149
    $region26: #{_bert_crf_apply.3} parent=5 // pred_check_branch
      %152 = sbr.rel (%p150) target = $region28
    $region27: #{_bert_crf_apply.3} parent=5 // pred_region
      // Predicated region
      $region29: #{_bert_crf_apply.3} parent=27 // pred_check
        %p153 = pneg %p30
      $region30: #{_bert_crf_apply.3} parent=27 // pred_check_branch
        %155 = sbr.rel (%p153) target = $region32
      $region31: #{_bert_crf_apply.3} parent=27 // pred_region
        %s156 = smul.u32 2, %s10
        %p157 = scmp.lt.s32.totalorder %s156, 3
        %s158 = scalar_select %p157, %s156, 3
        %s159 = smul.addr %s158, 8
        %s160 = scalar_lea.vmem %s0, %s159
        %s161 = smul.u32 2, %s10
      $region32: #{_bert_crf_apply.3} parent=27 // pred_fallthru
        _
    $region28: #{_bert_crf_apply.3} parent=5 // pred_fallthru
      _
    %p162 = scmp.le.s32.totalorder 1, %s10
    %p163 = scmp.lt.s32.totalorder %s10, 3
    %p164 = pnand %p162, %p163
    %p165 = pneg %p164
    // Predicated region
    $region33: #{_bert_crf_apply.3} parent=5 // pred_check
      _
    $region34: #{_bert_crf_apply.3} parent=5 // pred_check_branch
      %167 = sbr.rel (%p164) target = $region36
    $region35: #{_bert_crf_apply.3} parent=5 // pred_region
      %s168 = ssub.s32 %s10, 1
      %s169 = smul.u32 2, %s15
      %p170 = scmp.lt.s32.totalorder %s169, 3
      %s171 = scalar_select %p170, %s169, 3
      %s172 = smul.addr %s171, 8
      %s173 = scalar_lea.vmem %s0, %s172
      %p174 = pneg %p36
      %p175 = pneg %p33
      %p176 = pneg %p57
      %p177 = pneg %p54
      %p178 = pneg %p78
      %p179 = pneg %p75
      %p180 = pneg %p99
      %p181 = pneg %p96
      %p182 = pneg %p125
      %p183 = pneg %p122
      %s184 = smul.u32 2, %s15
      %p185 = scmp.lt.s32.totalorder %s184, 3
      %s186 = scalar_select %p185, %s184, 3
      %s187 = smul.addr %s186, 8
      %s188 = scalar_lea.vmem %s4, %s187
      %s189 = smul.u32 2, %s15
      %p190 = scmp.lt.s32.totalorder %s189, 3
      %s191 = scalar_select %p190, %s189, 3
      %s192 = smul.addr %s191, 8
      %s193 = scalar_lea.vmem %s0, %s192
      %s194 = smul.u32 2, %s15
      %s195 = smul.u32 2, %s15
      %p196 = scmp.lt.s32.totalorder %s195, 3
      %s197 = scalar_select %p196, %s195, 3
      %s198 = smul.addr %s197, 8
      %s199 = scalar_lea.vmem %s4, %s198
      %s200 = smul.u32 2, %s15
      %v201 = vld [vmem:[%s1] sm:$0xff]
      %v202 = vld [vmem:[%s1 + $0x8] sm:$0xff]
      %v203 = vld [vmem:[%s1 + $0x10] sm:$0xff]
      %v204 = vld [vmem:[%s1 + $0x18] sm:$0xff]
      %v205 = vld [vmem:[%s1 + $0x20] sm:$0xff]
      %v206 = vld [vmem:[%s1 + $0x28] sm:$0xff]
      %v207 = vld [vmem:[%s1 + $0x30] sm:$0xff]
      %v208 = vld [vmem:[%s1 + $0x38] sm:$0xff]
      %v209 = vld [vmem:[%s1 + $0x40] sm:$0xff]
      %v210 = vld [vmem:[%s1 + $0x48] sm:$0xff]
      %v211 = vld [vmem:[%s1 + $0x50] sm:$0xff]
      %v212 = vld [vmem:[%s1 + $0x58] sm:$0xff]
      %v213 = vld [vmem:[%s1 + $0x60] sm:$0xff]
      %v214 = vld [vmem:[%s1 + $0x68] sm:$0xff]
      %v215 = vld [vmem:[%s1 + $0x70] sm:$0xff]
      %v216 = vld [vmem:[%s1 + $0x78] sm:$0xff]
      %v217 = vlaneseq
      %v218 = vand.u32 %v217, 127
      %v219 = vlaneseq
      %v220 = vshrl.u32 %v219, 7
      %v221 = vadd.s32 %v220, 8
      %v222 = vadd.s32 %v220, 16
      %v223 = vadd.s32 %v220, 24
      %v224 = vadd.s32 %v220, 32
      %v225 = vadd.s32 %v220, 40
      %v226 = vadd.s32 %v220, 48
      %v227 = vadd.s32 %v220, 56
      %v228 = vadd.s32 %v220, 64
      %v229 = vadd.s32 %v220, 72
      %v230 = vadd.s32 %v220, 80
      %v231 = vadd.s32 %v220, 88
      %v232 = vadd.s32 %v220, 96
      %v233 = vadd.s32 %v220, 104
      %v234 = vadd.s32 %v220, 112
      %v235 = vadd.s32 %v220, 120
      %vm236 = vcmp.eq.s32.totalorder %v220, %v218
      %vm237 = vcmp.eq.s32.totalorder %v221, %v218
      %vm238 = vcmp.eq.s32.totalorder %v222, %v218
      %vm239 = vcmp.eq.s32.totalorder %v223, %v218
      %vm240 = vcmp.eq.s32.totalorder %v224, %v218
      %vm241 = vcmp.eq.s32.totalorder %v225, %v218
      %vm242 = vcmp.eq.s32.totalorder %v226, %v218
      %vm243 = vcmp.eq.s32.totalorder %v227, %v218
      %vm244 = vcmp.eq.s32.totalorder %v228, %v218
      %vm245 = vcmp.eq.s32.totalorder %v229, %v218
      %vm246 = vcmp.eq.s32.totalorder %v230, %v218
      %vm247 = vcmp.eq.s32.totalorder %v231, %v218
      %vm248 = vcmp.eq.s32.totalorder %v232, %v218
      %vm249 = vcmp.eq.s32.totalorder %v233, %v218
      %vm250 = vcmp.eq.s32.totalorder %v234, %v218
      %vm251 = vcmp.eq.s32.totalorder %v235, %v218
      %v252 = vsel %vm236, 1, 0
      %v253 = vsel %vm237, 1, 0
      %v254 = vsel %vm238, 1, 0
      %v255 = vsel %vm239, 1, 0
      %v256 = vsel %vm240, 1, 0
      %v257 = vsel %vm241, 1, 0
      %v258 = vsel %vm242, 1, 0
      %v259 = vsel %vm243, 1, 0
      %v260 = vsel %vm244, 1, 0
      %v261 = vsel %vm245, 1, 0
      %v262 = vsel %vm246, 1, 0
      %v263 = vsel %vm247, 1, 0
      %v264 = vsel %vm248, 1, 0
      %v265 = vsel %vm249, 1, 0
      %v266 = vsel %vm250, 1, 0
      %v267 = vsel %vm251, 1, 0
      %v268 = vcvt.s32.f32 %v252
      %v269 = vcvt.s32.f32 %v253
      %v270 = vcvt.s32.f32 %v254
      %v271 = vcvt.s32.f32 %v255
      %v272 = vcvt.s32.f32 %v256
      %v273 = vcvt.s32.f32 %v257
      %v274 = vcvt.s32.f32 %v258
      %v275 = vcvt.s32.f32 %v259
      %v276 = vcvt.s32.f32 %v260
      %v277 = vcvt.s32.f32 %v261
      %v278 = vcvt.s32.f32 %v262
      %v279 = vcvt.s32.f32 %v263
      %v280 = vcvt.s32.f32 %v264
      %v281 = vcvt.s32.f32 %v265
      %v282 = vcvt.s32.f32 %v266
      %v283 = vcvt.s32.f32 %v267
      %v284 = vld [vmem:[%s2] sm:$0x1]
      %v285 = vld [vmem:[%s193] sm:$0x1]
      %v286 = vadd.f32 %v284, %v285
      %v288 = vlaneseq
      %v289 = vshrl.u32 %v288, 7
      %v290 = vsub.s32 0, %v289
      %v291 = vrot.slane %v286, %v290
      %v293 = vmul.f32 %v268, %v291
      %v294 = vmul.f32 %v269, %v291
      %v295 = vmul.f32 %v270, %v291
      %v296 = vmul.f32 %v271, %v291
      %v297 = vmul.f32 %v272, %v291
      %v298 = vmul.f32 %v273, %v291
      %v299 = vmul.f32 %v274, %v291
      %v300 = vmul.f32 %v275, %v291
      %v301 = vmul.f32 %v276, %v291
      %v302 = vmul.f32 %v277, %v291
      %v303 = vmul.f32 %v278, %v291
      %v304 = vmul.f32 %v279, %v291
      %v305 = vmul.f32 %v280, %v291
      %v306 = vmul.f32 %v281, %v291
      %v307 = vmul.f32 %v282, %v291
      %v308 = vmul.f32 %v283, %v291
      %309 = vadd.xlane.f32.xlu0 %v293
      %v310 = vpop.xlane.xlu0 %309
      %311 = vadd.xlane.f32.xlu0 %v294
      %v312 = vpop.xlane.xlu0 %311
      %313 = vadd.xlane.f32.xlu0 %v295
      %v314 = vpop.xlane.xlu0 %313
      %315 = vadd.xlane.f32.xlu0 %v296
      %v316 = vpop.xlane.xlu0 %315
      %317 = vadd.xlane.f32.xlu0 %v297
      %v318 = vpop.xlane.xlu0 %317
      %319 = vadd.xlane.f32.xlu0 %v298
      %v320 = vpop.xlane.xlu0 %319
      %321 = vadd.xlane.f32.xlu0 %v299
      %v322 = vpop.xlane.xlu0 %321
      %323 = vadd.xlane.f32.xlu0 %v300
      %v324 = vpop.xlane.xlu0 %323
      %325 = vadd.xlane.f32.xlu0 %v301
      %v326 = vpop.xlane.xlu0 %325
      %327 = vadd.xlane.f32.xlu0 %v302
      %v328 = vpop.xlane.xlu0 %327
      %329 = vadd.xlane.f32.xlu0 %v303
      %v330 = vpop.xlane.xlu0 %329
      %331 = vadd.xlane.f32.xlu0 %v304
      %v332 = vpop.xlane.xlu0 %331
      %333 = vadd.xlane.f32.xlu0 %v305
      %v334 = vpop.xlane.xlu0 %333
      %335 = vadd.xlane.f32.xlu0 %v306
      %v336 = vpop.xlane.xlu0 %335
      %337 = vadd.xlane.f32.xlu0 %v307
      %v338 = vpop.xlane.xlu0 %337
      %339 = vadd.xlane.f32.xlu0 %v308
      %v340 = vpop.xlane.xlu0 %339
      %v341 = vld [vmem:[%s3] sm:$0x1]
      %v343 = vlaneseq
      %v344 = vshrl.u32 %v343, 7
      %v345 = vsub.s32 0, %v344
      %v346 = vrot.slane %v341, %v345
      %v348 = vmul.f32 %v268, %v346
      %v349 = vmul.f32 %v269, %v346
      %v350 = vmul.f32 %v270, %v346
      %v351 = vmul.f32 %v271, %v346
      %v352 = vmul.f32 %v272, %v346
      %v353 = vmul.f32 %v273, %v346
      %v354 = vmul.f32 %v274, %v346
      %v355 = vmul.f32 %v275, %v346
      %v356 = vmul.f32 %v276, %v346
      %v357 = vmul.f32 %v277, %v346
      %v358 = vmul.f32 %v278, %v346
      %v359 = vmul.f32 %v279, %v346
      %v360 = vmul.f32 %v280, %v346
      %v361 = vmul.f32 %v281, %v346
      %v362 = vmul.f32 %v282, %v346
      %v363 = vmul.f32 %v283, %v346
      %364 = vadd.xlane.f32.xlu0 %v348
      %v365 = vpop.xlane.xlu0 %364
      %366 = vadd.xlane.f32.xlu0 %v349
      %v367 = vpop.xlane.xlu0 %366
      %368 = vadd.xlane.f32.xlu0 %v350
      %v369 = vpop.xlane.xlu0 %368
      %370 = vadd.xlane.f32.xlu0 %v351
      %v371 = vpop.xlane.xlu0 %370
      %372 = vadd.xlane.f32.xlu0 %v352
      %v373 = vpop.xlane.xlu0 %372
      %374 = vadd.xlane.f32.xlu0 %v353
      %v375 = vpop.xlane.xlu0 %374
      %376 = vadd.xlane.f32.xlu0 %v354
      %v377 = vpop.xlane.xlu0 %376
      %378 = vadd.xlane.f32.xlu0 %v355
      %v379 = vpop.xlane.xlu0 %378
      %380 = vadd.xlane.f32.xlu0 %v356
      %v381 = vpop.xlane.xlu0 %380
      %382 = vadd.xlane.f32.xlu0 %v357
      %v383 = vpop.xlane.xlu0 %382
      %384 = vadd.xlane.f32.xlu0 %v358
      %v385 = vpop.xlane.xlu0 %384
      %386 = vadd.xlane.f32.xlu0 %v359
      %v387 = vpop.xlane.xlu0 %386
      %388 = vadd.xlane.f32.xlu0 %v360
      %v389 = vpop.xlane.xlu0 %388
      %390 = vadd.xlane.f32.xlu0 %v361
      %v391 = vpop.xlane.xlu0 %390
      %392 = vadd.xlane.f32.xlu0 %v362
      %v393 = vpop.xlane.xlu0 %392
      %394 = vadd.xlane.f32.xlu0 %v363
      %v395 = vpop.xlane.xlu0 %394
      loop: start=1, step=1, limit=16
      $region37: #{_bert_crf_apply.3} parent=35 // loop_pre_header
        _
      $region38: #{_bert_crf_apply.3} parent=35 // loop_header
        %s397 = sphi 1, %s401
        %p398 = scmp.ge.s32.totalorder %s397, 16
        %v402 = vphi %v310, %v552
        %v403 = vphi %v312, %v554
        %v404 = vphi %v314, %v556
        %v405 = vphi %v316, %v558
        %v406 = vphi %v318, %v560
        %v407 = vphi %v320, %v562
        %v408 = vphi %v322, %v564
        %v409 = vphi %v324, %v566
        %v410 = vphi %v326, %v568
        %v411 = vphi %v328, %v570
        %v412 = vphi %v330, %v572
        %v413 = vphi %v332, %v574
        %v414 = vphi %v334, %v576
        %v415 = vphi %v336, %v578
        %v416 = vphi %v338, %v580
        %v417 = vphi %v340, %v582
      $region39: #{_bert_crf_apply.3} parent=35 // loop_header_branch
        %400 = sbr.rel (%p398) target = $region43
      $region40: #{_bert_crf_apply.3} parent=35 // loop_body
        %v418 = vadd.f32 %v402, %v201
        %v419 = vadd.f32 %v403, %v202
        %v420 = vadd.f32 %v404, %v203
        %v421 = vadd.f32 %v405, %v204
        %v422 = vadd.f32 %v406, %v205
        %v423 = vadd.f32 %v407, %v206
        %v424 = vadd.f32 %v408, %v207
        %v425 = vadd.f32 %v409, %v208
        %v426 = vadd.f32 %v410, %v209
        %v427 = vadd.f32 %v411, %v210
        %v428 = vadd.f32 %v412, %v211
        %v429 = vadd.f32 %v413, %v212
        %v430 = vadd.f32 %v414, %v213
        %v431 = vadd.f32 %v415, %v214
        %v432 = vadd.f32 %v416, %v215
        %v433 = vadd.f32 %v417, %v216
        %v434 = vmax.f32 %v418, %v422
        %v435 = vmax.f32 %v419, %v423
        %v436 = vmax.f32 %v420, %v424
        %v437 = vmax.f32 %v421, %v425
        %v438 = vmax.f32 %v434, %v426
        %v439 = vmax.f32 %v435, %v427
        %v440 = vmax.f32 %v436, %v428
        %v441 = vmax.f32 %v437, %v429
        %v442 = vmax.f32 %v438, %v430
        %v443 = vmax.f32 %v439, %v431
        %v444 = vmax.f32 %v440, %v432
        %v445 = vmax.f32 %v441, %v433
        %v446 = vmax.f32 %v442, %v443
        %v447 = vmax.f32 %v444, %v445
        %v448 = vmax.f32 %v446, %v447
        %v449 = vrot.slane %v448, 4
        %v450 = vmax.f32 %v448, %v449
        %v451 = vrot.slane %v450, 2
        %v452 = vmax.f32 %v450, %v451
        %v453 = vrot.slane %v452, 1
        %v454 = vmax.f32 %v452, %v453
        %vm455 = vcmp.eq.f32.partialorder %v418, %v454
        %vm456 = vcmp.eq.f32.partialorder %v419, %v454
        %vm457 = vcmp.eq.f32.partialorder %v420, %v454
        %vm458 = vcmp.eq.f32.partialorder %v421, %v454
        %vm459 = vcmp.eq.f32.partialorder %v422, %v454
        %vm460 = vcmp.eq.f32.partialorder %v423, %v454
        %vm461 = vcmp.eq.f32.partialorder %v424, %v454
        %vm462 = vcmp.eq.f32.partialorder %v425, %v454
        %vm463 = vcmp.eq.f32.partialorder %v426, %v454
        %vm464 = vcmp.eq.f32.partialorder %v427, %v454
        %vm465 = vcmp.eq.f32.partialorder %v428, %v454
        %vm466 = vcmp.eq.f32.partialorder %v429, %v454
        %vm467 = vcmp.eq.f32.partialorder %v430, %v454
        %vm468 = vcmp.eq.f32.partialorder %v431, %v454
        %vm469 = vcmp.eq.f32.partialorder %v432, %v454
        %vm470 = vcmp.eq.f32.partialorder %v433, %v454
        %v471 = vsel %vm455, %v220, 128
        %v472 = vsel %vm456, %v221, 128
        %v473 = vsel %vm457, %v222, 128
        %v474 = vsel %vm458, %v223, 128
        %v475 = vsel %vm459, %v224, 128
        %v476 = vsel %vm460, %v225, 128
        %v477 = vsel %vm461, %v226, 128
        %v478 = vsel %vm462, %v227, 128
        %v479 = vsel %vm463, %v228, 128
        %v480 = vsel %vm464, %v229, 128
        %v481 = vsel %vm465, %v230, 128
        %v482 = vsel %vm466, %v231, 128
        %v483 = vsel %vm467, %v232, 128
        %v484 = vsel %vm468, %v233, 128
        %v485 = vsel %vm469, %v234, 128
        %v486 = vsel %vm470, %v235, 128
        %vm487 = vcmp.lt.s32.totalorder %v471, %v475
        %v488 = vsel %vm487, %v471, %v475
        %vm489 = vcmp.lt.s32.totalorder %v472, %v476
        %v490 = vsel %vm489, %v472, %v476
        %vm491 = vcmp.lt.s32.totalorder %v473, %v477
        %v492 = vsel %vm491, %v473, %v477
        %vm493 = vcmp.lt.s32.totalorder %v474, %v478
        %v494 = vsel %vm493, %v474, %v478
        %vm495 = vcmp.lt.s32.totalorder %v488, %v479
        %v496 = vsel %vm495, %v488, %v479
        %vm497 = vcmp.lt.s32.totalorder %v490, %v480
        %v498 = vsel %vm497, %v490, %v480
        %vm499 = vcmp.lt.s32.totalorder %v492, %v481
        %v500 = vsel %vm499, %v492, %v481
        %vm501 = vcmp.lt.s32.totalorder %v494, %v482
        %v502 = vsel %vm501, %v494, %v482
        %vm503 = vcmp.lt.s32.totalorder %v496, %v483
        %v504 = vsel %vm503, %v496, %v483
        %vm505 = vcmp.lt.s32.totalorder %v498, %v484
        %v506 = vsel %vm505, %v498, %v484
        %vm507 = vcmp.lt.s32.totalorder %v500, %v485
        %v508 = vsel %vm507, %v500, %v485
        %vm509 = vcmp.lt.s32.totalorder %v502, %v486
        %v510 = vsel %vm509, %v502, %v486
        %vm511 = vcmp.lt.s32.totalorder %v504, %v506
        %v512 = vsel %vm511, %v504, %v506
        %vm513 = vcmp.lt.s32.totalorder %v508, %v510
        %v514 = vsel %vm513, %v508, %v510
        %vm515 = vcmp.lt.s32.totalorder %v512, %v514
        %v516 = vsel %vm515, %v512, %v514
        %v517 = vrot.slane %v516, 4
        %vm518 = vcmp.lt.s32.totalorder %v516, %v517
        %v519 = vsel %vm518, %v516, %v517
        %v520 = vrot.slane %v519, 2
        %vm521 = vcmp.lt.s32.totalorder %v519, %v520
        %v522 = vsel %vm521, %v519, %v520
        %v523 = vrot.slane %v522, 1
        %vm524 = vcmp.lt.s32.totalorder %v522, %v523
        %v525 = vsel %vm524, %v522, %v523
        %s526 = scalar_lea.vmem [#allocation2], %s397
        %527 = vst [vmem:[%s526] sm:$0x1] %v525
        %s528 = scalar_lea.vmem %s193, %s397
        %v529 = vld [vmem:[%s528] sm:$0x1]
        %v530 = vadd.f32 %v454, %v529
        %v531 = vlaneseq
        %v532 = vshrl.u32 %v531, 7
        %v533 = vsub.s32 0, %v532
        %v534 = vrot.slane %v530, %v533
        %v535 = vmul.f32 %v268, %v534
        %v536 = vmul.f32 %v269, %v534
        %v537 = vmul.f32 %v270, %v534
        %v538 = vmul.f32 %v271, %v534
        %v539 = vmul.f32 %v272, %v534
        %v540 = vmul.f32 %v273, %v534
        %v541 = vmul.f32 %v274, %v534
        %v542 = vmul.f32 %v275, %v534
        %v543 = vmul.f32 %v276, %v534
        %v544 = vmul.f32 %v277, %v534
        %v545 = vmul.f32 %v278, %v534
        %v546 = vmul.f32 %v279, %v534
        %v547 = vmul.f32 %v280, %v534
        %v548 = vmul.f32 %v281, %v534
        %v549 = vmul.f32 %v282, %v534
        %v550 = vmul.f32 %v283, %v534
        %551 = vadd.xlane.f32.xlu0 %v535
        %v552 = vpop.xlane.xlu0 %551
        %553 = vadd.xlane.f32.xlu0 %v536
        %v554 = vpop.xlane.xlu0 %553
        %555 = vadd.xlane.f32.xlu0 %v537
        %v556 = vpop.xlane.xlu0 %555
        %557 = vadd.xlane.f32.xlu0 %v538
        %v558 = vpop.xlane.xlu0 %557
        %559 = vadd.xlane.f32.xlu0 %v539
        %v560 = vpop.xlane.xlu0 %559
        %561 = vadd.xlane.f32.xlu0 %v540
        %v562 = vpop.xlane.xlu0 %561
        %563 = vadd.xlane.f32.xlu0 %v541
        %v564 = vpop.xlane.xlu0 %563
        %565 = vadd.xlane.f32.xlu0 %v542
        %v566 = vpop.xlane.xlu0 %565
        %567 = vadd.xlane.f32.xlu0 %v543
        %v568 = vpop.xlane.xlu0 %567
        %569 = vadd.xlane.f32.xlu0 %v544
        %v570 = vpop.xlane.xlu0 %569
        %571 = vadd.xlane.f32.xlu0 %v545
        %v572 = vpop.xlane.xlu0 %571
        %573 = vadd.xlane.f32.xlu0 %v546
        %v574 = vpop.xlane.xlu0 %573
        %575 = vadd.xlane.f32.xlu0 %v547
        %v576 = vpop.xlane.xlu0 %575
        %577 = vadd.xlane.f32.xlu0 %v548
        %v578 = vpop.xlane.xlu0 %577
        %579 = vadd.xlane.f32.xlu0 %v549
        %v580 = vpop.xlane.xlu0 %579
        %581 = vadd.xlane.f32.xlu0 %v550
        %v582 = vpop.xlane.xlu0 %581
      $region41: #{_bert_crf_apply.3} parent=35 // loop_footer
        %s401 = sadd.s32 1, %s397
      $region42: #{_bert_crf_apply.3} parent=35 // loop_footer_branch
        %396 = sbr.rel target = $region38
      $region43: #{_bert_crf_apply.3} parent=35 // loop_exit
        _
      %v583 = vadd.f32 %v402, %v365
      %v584 = vadd.f32 %v403, %v367
      %v585 = vadd.f32 %v404, %v369
      %v586 = vadd.f32 %v405, %v371
      %v587 = vadd.f32 %v406, %v373
      %v588 = vadd.f32 %v407, %v375
      %v589 = vadd.f32 %v408, %v377
      %v590 = vadd.f32 %v409, %v379
      %v591 = vadd.f32 %v410, %v381
      %v592 = vadd.f32 %v411, %v383
      %v593 = vadd.f32 %v412, %v385
      %v594 = vadd.f32 %v413, %v387
      %v595 = vadd.f32 %v414, %v389
      %v596 = vadd.f32 %v415, %v391
      %v597 = vadd.f32 %v416, %v393
      %v598 = vadd.f32 %v417, %v395
      %v599 = vmax.f32 %v583, %v587
      %v600 = vmax.f32 %v584, %v588
      %v601 = vmax.f32 %v585, %v589
      %v602 = vmax.f32 %v586, %v590
      %v603 = vmax.f32 %v599, %v591
      %v604 = vmax.f32 %v600, %v592
      %v605 = vmax.f32 %v601, %v593
      %v606 = vmax.f32 %v602, %v594
      %v607 = vmax.f32 %v603, %v595
      %v608 = vmax.f32 %v604, %v596
      %v609 = vmax.f32 %v605, %v597
      %v610 = vmax.f32 %v606, %v598
      %v611 = vmax.f32 %v607, %v608
      %v612 = vmax.f32 %v609, %v610
      %v613 = vmax.f32 %v611, %v612
      %v614 = vrot.slane %v613, 4
      %v615 = vmax.f32 %v613, %v614
      %v616 = vrot.slane %v615, 2
      %v617 = vmax.f32 %v615, %v616
      %v618 = vrot.slane %v617, 1
      %v619 = vmax.f32 %v617, %v618
      %vm620 = vcmp.eq.f32.partialorder %v583, %v619
      %vm621 = vcmp.eq.f32.partialorder %v584, %v619
      %vm622 = vcmp.eq.f32.partialorder %v585, %v619
      %vm623 = vcmp.eq.f32.partialorder %v586, %v619
      %vm624 = vcmp.eq.f32.partialorder %v587, %v619
      %vm625 = vcmp.eq.f32.partialorder %v588, %v619
      %vm626 = vcmp.eq.f32.partialorder %v589, %v619
      %vm627 = vcmp.eq.f32.partialorder %v590, %v619
      %vm628 = vcmp.eq.f32.partialorder %v591, %v619
      %vm629 = vcmp.eq.f32.partialorder %v592, %v619
      %vm630 = vcmp.eq.f32.partialorder %v593, %v619
      %vm631 = vcmp.eq.f32.partialorder %v594, %v619
      %vm632 = vcmp.eq.f32.partialorder %v595, %v619
      %vm633 = vcmp.eq.f32.partialorder %v596, %v619
      %vm634 = vcmp.eq.f32.partialorder %v597, %v619
      %vm635 = vcmp.eq.f32.partialorder %v598, %v619
      %v636 = vsel %vm620, %v220, 128
      %v637 = vsel %vm621, %v221, 128
      %v638 = vsel %vm622, %v222, 128
      %v639 = vsel %vm623, %v223, 128
      %v640 = vsel %vm624, %v224, 128
      %v641 = vsel %vm625, %v225, 128
      %v642 = vsel %vm626, %v226, 128
      %v643 = vsel %vm627, %v227, 128
      %v644 = vsel %vm628, %v228, 128
      %v645 = vsel %vm629, %v229, 128
      %v646 = vsel %vm630, %v230, 128
      %v647 = vsel %vm631, %v231, 128
      %v648 = vsel %vm632, %v232, 128
      %v649 = vsel %vm633, %v233, 128
      %v650 = vsel %vm634, %v234, 128
      %v651 = vsel %vm635, %v235, 128
      %vm652 = vcmp.lt.s32.totalorder %v636, %v640
      %v653 = vsel %vm652, %v636, %v640
      %vm654 = vcmp.lt.s32.totalorder %v637, %v641
      %v655 = vsel %vm654, %v637, %v641
      %vm656 = vcmp.lt.s32.totalorder %v638, %v642
      %v657 = vsel %vm656, %v638, %v642
      %vm658 = vcmp.lt.s32.totalorder %v639, %v643
      %v659 = vsel %vm658, %v639, %v643
      %vm660 = vcmp.lt.s32.totalorder %v653, %v644
      %v661 = vsel %vm660, %v653, %v644
      %vm662 = vcmp.lt.s32.totalorder %v655, %v645
      %v663 = vsel %vm662, %v655, %v645
      %vm664 = vcmp.lt.s32.totalorder %v657, %v646
      %v665 = vsel %vm664, %v657, %v646
      %vm666 = vcmp.lt.s32.totalorder %v659, %v647
      %v667 = vsel %vm666, %v659, %v647
      %vm668 = vcmp.lt.s32.totalorder %v661, %v648
      %v669 = vsel %vm668, %v661, %v648
      %vm670 = vcmp.lt.s32.totalorder %v663, %v649
      %v671 = vsel %vm670, %v663, %v649
      %vm672 = vcmp.lt.s32.totalorder %v665, %v650
      %v673 = vsel %vm672, %v665, %v650
      %vm674 = vcmp.lt.s32.totalorder %v667, %v651
      %v675 = vsel %vm674, %v667, %v651
      %vm676 = vcmp.lt.s32.totalorder %v669, %v671
      %v677 = vsel %vm676, %v669, %v671
      %vm678 = vcmp.lt.s32.totalorder %v673, %v675
      %v679 = vsel %vm678, %v673, %v675
      %vm680 = vcmp.lt.s32.totalorder %v677, %v679
      %v681 = vsel %vm680, %v677, %v679
      %v682 = vrot.slane %v681, 4
      %vm683 = vcmp.lt.s32.totalorder %v681, %v682
      %v684 = vsel %vm683, %v681, %v682
      %v685 = vrot.slane %v684, 2
      %vm686 = vcmp.lt.s32.totalorder %v684, %v685
      %v687 = vsel %vm686, %v684, %v685
      %v688 = vrot.slane %v687, 1
      %vm689 = vcmp.lt.s32.totalorder %v687, %v688
      %v690 = vsel %vm689, %v687, %v688
      %vm691 = vcmask 0
      %692 = vst.msk [vmem:[%s199 + $0xf] sm:$0x1] %vm691, %v690
      loop: start=1, step=1, limit=16
      $region44: #{_bert_crf_apply.3} parent=35 // loop_pre_header
        _
      $region45: #{_bert_crf_apply.3} parent=35 // loop_header
        %s694 = sphi 1, %s698
        %p695 = scmp.ge.s32.totalorder %s694, 16
        %v699 = vphi %v690, %v718
      $region46: #{_bert_crf_apply.3} parent=35 // loop_header_branch
        %697 = sbr.rel (%p695) target = $region50
      $region47: #{_bert_crf_apply.3} parent=35 // loop_body
        %s700 = ssub.s32 16, %s694
        %s701 = scalar_lea.vmem [#allocation2], %s700
        %v702 = vld [vmem:[%s701] sm:$0x1]
        %vm703 = vcmp.eq.s32.totalorder %v218, %v699
        %v704 = vsel %vm703, %v702, 0
        %vm705 = vcmask 1040384
        %v706 = vsel %vm705, %v704, 0
        %v707 = vand.u32 %v706, 65535
        %v708 = vshrl.u32 %v706, 16
        %v709 = vcvt.s32.f32 %v707
        %v710 = vcvt.s32.f32 %v708
        %711 = vadd.xlane.f32.xlu0 %v709
        %v712 = vpop.xlane.xlu0 %711
        %713 = vadd.xlane.f32.xlu0 %v710
        %v714 = vpop.xlane.xlu0 %713
        %v715 = vcvt.f32.s32 %v712
        %v716 = vcvt.f32.s32 %v714
        %v717 = vshll.u32 %v716, 16
        %v718 = vadd.s32 %v717, %v715
        %s719 = ssub.s32 15, %s694
        %s720 = scalar_lea.vmem %s199, %s719
        %721 = vst.msk [vmem:[%s720] sm:$0x1] %vm691, %v718
      $region48: #{_bert_crf_apply.3} parent=35 // loop_footer
        %s698 = sadd.s32 1, %s694
      $region49: #{_bert_crf_apply.3} parent=35 // loop_footer_branch
        %693 = sbr.rel target = $region45
      $region50: #{_bert_crf_apply.3} parent=35 // loop_exit
        _
      %s722 = smul.u32 2, %s15
      %p723 = scmp.lt.s32.totalorder %s722, 3
      %s724 = scalar_select %p723, %s722, 3
      %s725 = smul.addr %s724, 8
      %s726 = scalar_lea.vmem %s4, %s725
      // Predicated region
      $region51: #{_bert_crf_apply.3} parent=35 // pred_check
        %p727 = pneg %p122
      $region52: #{_bert_crf_apply.3} parent=35 // pred_check_branch
        %729 = sbr.rel (%p727) target = $region54
      $region53: #{_bert_crf_apply.3} parent=35 // pred_region
        %s730 = smul.u32 2, %s15
      $region54: #{_bert_crf_apply.3} parent=35 // pred_fallthru
        _
    $region36: #{_bert_crf_apply.3} parent=5 // pred_fallthru
      _
    %p731 = scmp.le.s32.totalorder 2, %s10
    // Predicated region
    $region55: #{_bert_crf_apply.3} parent=5 // pred_check
      %p732 = pneg %p731
    $region56: #{_bert_crf_apply.3} parent=5 // pred_check_branch
      %734 = sbr.rel (%p732) target = $region58
    $region57: #{_bert_crf_apply.3} parent=5 // pred_region
      %s735 = ssub.s32 %s10, 2
      // Predicated region
      $region59: #{_bert_crf_apply.3} parent=57 // pred_check
        %p736 = pneg %p128
      $region60: #{_bert_crf_apply.3} parent=57 // pred_check_branch
        %738 = sbr.rel (%p736) target = $region62
      $region61: #{_bert_crf_apply.3} parent=57 // pred_region
        %s739 = smul.u32 2, %s16
        %p740 = scmp.lt.s32.totalorder %s739, 3
        %s741 = scalar_select %p740, %s739, 3
        %s742 = smul.addr %s741, 8
        %s743 = scalar_lea.vmem %s4, %s742
      $region62: #{_bert_crf_apply.3} parent=57 // pred_fallthru
        _
    $region58: #{_bert_crf_apply.3} parent=5 // pred_fallthru
      _
  $region6: #{_bert_crf_apply.3} parent=0 // loop_footer
    %s14 = sadd.s32 1, %s10
  $region7: #{_bert_crf_apply.3} parent=0 // loop_footer_branch
    %9 = sbr.rel target = $region3
  $region8: #{_bert_crf_apply.3} parent=0 // loop_exit
    _

// kernel: _bert_crf_apply.2
$region0: #{_bert_crf_apply.2}
  #allocation0 [shape = 'u32[]', space=smem, size = 0x4, offset = 0x4, fixed_abs, tag = 'smem constant byte address 0x4 - core index']
  #allocation1 [shape = 'u32[144,128]{1,0:T(1,128)}', space=vmem, size = 0x12000, scoped, tag = 'internal scratch']
  #allocation2 [shape = 'f32[32,128]{1,0:T(8,128)}', space=vmem, size = 0x4000, scoped, tag = 'scratch operand']
  %s0 = inlined_call_operand.vmem [shape: f32[32,128], index: 0, kind: input, shape index: {}]
  %s1 = inlined_call_operand.vmem [shape: f32[1,128], index: 1, kind: input, shape index: {}]
  %s2 = inlined_call_operand.vmem [shape: f32[1,128], index: 2, kind: input, shape index: {}]
  %s3 = inlined_call_operand.vmem [shape: bf16[2,128,128], index: 3, kind: input, shape index: {}]
  %s4 = inlined_call_operand.vmem [shape: f32[2,1,128], index: 4, kind: input, shape index: {}]
  %s5 = inlined_call_operand.hbm [shape: bf16[2,128,128], index: 5, kind: input, shape index: {}]
  %s6 = inlined_call_operand.vmem [shape: f32[2,1,128], index: 6, kind: input, shape index: {}]
  %s7 = inlined_call_operand.hbm [shape: bf16[2,128,128], index: 7, kind: input, shape index: {}]
  %s8 = inlined_call_operand.vmem [shape: f32[2,1,128], index: 8, kind: input, shape index: {}]
  %s9 = inlined_call_operand.hbm [shape: bf16[2,128,128], index: 9, kind: input, shape index: {}]
  %s10 = inlined_call_operand.vmem [shape: f32[2,1,128], index: 10, kind: input, shape index: {}]
  %s11 = inlined_call_operand.vmem [shape: f32[2,1,128], index: 11, kind: input, shape index: {}]
  %s12 = inlined_call_operand.vmem [shape: f32[2,1,128], index: 12, kind: input, shape index: {}]
  %s13 = inlined_call_operand.vmem [shape: bf16[2,128,512], index: 13, kind: input, shape index: {}]
  %s14 = inlined_call_operand.vmem [shape: f32[2,1,512], index: 14, kind: input, shape index: {}]
  %s15 = inlined_call_operand.hbm [shape: bf16[2,512,128], index: 15, kind: input, shape index: {}]
  %s16 = inlined_call_operand.vmem [shape: f32[2,1,128], index: 16, kind: input, shape index: {}]
  %s17 = inlined_call_operand.vmem [shape: f32[2,1,128], index: 17, kind: input, shape index: {}]
  %s18 = inlined_call_operand.vmem [shape: f32[2,1,128], index: 18, kind: input, shape index: {}]
  %s19 = inlined_call_operand.vmem [shape: bf16[128,128], index: 19, kind: input, shape index: {}]
  %s20 = inlined_call_operand.vmem [shape: f32[1,128], index: 20, kind: input, shape index: {}]
  %s21 = inlined_call_operand.vmem [shape: f32[32,128], index: 21, kind: output, shape index: {}]
  %s22 = sld [smem:[#allocation0]]
  $region141: #{_bert_crf_apply.2} parent=0
    _
  %s24 = ssub.s32 1, %s22
  %s25 = scalar_select 0, %s24, %s22
  $region1: #{_bert_crf_apply.2} parent=0
    #allocation3 [shape = 'u8[65536]{0}', space=vmem, size = 0x10000, scoped, tag = 'input window, operand 5']
    #allocation4 [shape = 's32[2]{0}', space=sflag, size = 0x8, scoped, tag = 'scoped memory for _bert_crf_apply.2']
    #allocation5 [shape = 'u8[65536]{0}', space=vmem, size = 0x10000, scoped, tag = 'input window, operand 7']
    #allocation6 [shape = 's32[2]{0}', space=sflag, size = 0x8, scoped, tag = 'scoped memory for _bert_crf_apply.2']
    #allocation7 [shape = 'u8[65536]{0}', space=vmem, size = 0x10000, scoped, tag = 'input window, operand 9']
    #allocation8 [shape = 'u8[262144]{0}', space=vmem, size = 0x40000, scoped, tag = 'input window, operand 15']
    #allocation9 [shape = 's32[2]{0}', space=sflag, size = 0x8, scoped, tag = 'scoped memory for _bert_crf_apply.2']
    %26 = vsyncpa [#allocation4], 0
    %s27 = scalar_lea.sflag [#allocation4], 1
    %28 = vsyncpa %s27, 0
    %29 = vsyncpa [#allocation6], 0
    %s30 = scalar_lea.sflag [#allocation6], 1
    %31 = vsyncpa %s30, 0
    %32 = vsyncpa [#allocation9], 0
    %s33 = scalar_lea.sflag [#allocation9], 1
    %34 = vsyncpa %s33, 0
    loop: start=0, step=1, limit=4
    $region2: #{_bert_crf_apply.2} parent=1 // loop_pre_header
      _
    $region3: #{_bert_crf_apply.2} parent=1 // loop_header
      %s36 = sphi 0, %s40
      %p37 = scmp.ge.s32.totalorder %s36, 4
      %s44 = sphi 0, %s44
      %s46 = sphi 0, %s44
      %s47 = sphi 0, %s46
      %s61 = sphi 0, %s47
      %s65 = sphi 0, %s65
      %s67 = sphi 0, %s65
      %s68 = sphi 0, %s67
      %s82 = sphi 0, %s68
      %s86 = sphi 0, %s86
      %s88 = sphi 0, %s86
      %s89 = sphi 0, %s88
      %s103 = sphi 0, %s89
      %s109 = sphi 0, %s111
      %s112 = sphi 0, %s109
      %s113 = sphi 0, %s112
      %s129 = sphi 0, %s113
      %s135 = sphi 0, %s137
      %s138 = sphi 0, %s135
      %s139 = sphi 0, %s138
      %s155 = sphi 0, %s139
      %s161 = sphi 0, %s163
      %s164 = sphi 0, %s161
      %s165 = sphi 0, %s164
      %s181 = sphi 0, %s165
      %s187 = sphi 0, %s189
      %s190 = sphi 0, %s187
      %s191 = sphi 0, %s190
      %s207 = sphi 0, %s191
      %s213 = sphi 0, %s215
      %s216 = sphi 0, %s213
      %s217 = sphi 0, %s216
      %s233 = sphi 0, %s217
      %s239 = sphi 0, %s241
      %s242 = sphi 0, %s239
      %s243 = sphi 0, %s242
      %s259 = sphi 0, %s243
      %s265 = sphi 0, %s267
      %s268 = sphi 0, %s265
      %s269 = sphi 0, %s268
      %s285 = sphi 0, %s269
      %s291 = sphi 0, %s293
      %s294 = sphi 0, %s291
      %s295 = sphi 0, %s294
      %s311 = sphi 0, %s295
      %s317 = sphi 0, %s319
      %s320 = sphi 0, %s317
      %s321 = sphi 0, %s320
      %s337 = sphi 0, %s321
      %s343 = sphi 0, %s345
      %s346 = sphi 0, %s343
      %s347 = sphi 0, %s346
      %s363 = sphi 0, %s347
      %s369 = sphi 0, %s371
      %s372 = sphi 0, %s369
      %s373 = sphi 0, %s372
      %s389 = sphi 0, %s373
      %s395 = sphi 0, %s397
      %s398 = sphi 0, %s395
      %s399 = sphi 0, %s398
      %s415 = sphi 0, %s399
      %s421 = sphi 0, %s423
      %s424 = sphi 0, %s421
      %s425 = sphi 0, %s424
      %s441 = sphi 0, %s425
      %s447 = sphi 0, %s449
      %s450 = sphi 0, %s447
      %s451 = sphi 0, %s450
      %s467 = sphi 0, %s451
      %s473 = sphi 0, %s475
      %s476 = sphi 0, %s473
      %s477 = sphi 0, %s476
      %s493 = sphi 0, %s477
      %s499 = sphi 0, %s501
      %s502 = sphi 0, %s499
      %s503 = sphi 0, %s502
      %s519 = sphi 0, %s503
      %s523 = sphi 0, %s523
      %s525 = sphi 0, %s523
      %s526 = sphi 0, %s525
      %s540 = sphi 0, %s526
      %s544 = sphi 0, %s544
      %s546 = sphi 0, %s544
      %s547 = sphi 0, %s546
      %s561 = sphi 0, %s547
      %s565 = sphi 0, %s565
      %s567 = sphi 0, %s565
      %s568 = sphi 0, %s567
      %s582 = sphi 0, %s568
    $region4: #{_bert_crf_apply.2} parent=1 // loop_header_branch
      %39 = sbr.rel (%p37) target = $region8
    $region5: #{_bert_crf_apply.2} parent=1 // loop_body
      %s41 = ssub.s32 %s36, 1
      %s42 = ssub.s32 %s36, 2
      %s43 = sadd.s32 %s36, 1
      %s45 = sadd.s32 %s44, 1
      %p48 = scmp.eq.s32.totalorder %s36, 1
      %p49 = scmp.ne.s32.totalorder %s44, %s46
      %p50 = scmp.eq.s32.totalorder %s36, 0
      %p51 = por %p49, %p50
      %p52 = scmp.ne.s32.totalorder %s44, %s46
      %p53 = scmp.eq.s32.totalorder %s41, 1
      %p54 = por %p52, %p53
      %p55 = scmp.ne.s32.totalorder %s46, %s47
      %p56 = scmp.eq.s32.totalorder %s41, 0
      %p57 = por %p55, %p56
      %p58 = scmp.ne.s32.totalorder %s46, %s47
      %p59 = scmp.eq.s32.totalorder %s42, 1
      %p60 = por %p58, %p59
      %p62 = scmp.ne.s32.totalorder %s47, %s61
      %p63 = scmp.eq.s32.totalorder %s42, 0
      %p64 = por %p62, %p63
      %s66 = sadd.s32 %s65, 1
      %p69 = scmp.eq.s32.totalorder %s36, 1
      %p70 = scmp.ne.s32.totalorder %s65, %s67
      %p71 = scmp.eq.s32.totalorder %s36, 0
      %p72 = por %p70, %p71
      %p73 = scmp.ne.s32.totalorder %s65, %s67
      %p74 = scmp.eq.s32.totalorder %s41, 1
      %p75 = por %p73, %p74
      %p76 = scmp.ne.s32.totalorder %s67, %s68
      %p77 = scmp.eq.s32.totalorder %s41, 0
      %p78 = por %p76, %p77
      %p79 = scmp.ne.s32.totalorder %s67, %s68
      %p80 = scmp.eq.s32.totalorder %s42, 1
      %p81 = por %p79, %p80
      %p83 = scmp.ne.s32.totalorder %s68, %s82
      %p84 = scmp.eq.s32.totalorder %s42, 0
      %p85 = por %p83, %p84
      %s87 = sadd.s32 %s86, 1
      %p90 = scmp.eq.s32.totalorder %s36, 1
      %p91 = scmp.ne.s32.totalorder %s86, %s88
      %p92 = scmp.eq.s32.totalorder %s36, 0
      %p93 = por %p91, %p92
      %p94 = scmp.ne.s32.totalorder %s86, %s88
      %p95 = scmp.eq.s32.totalorder %s41, 1
      %p96 = por %p94, %p95
      %p97 = scmp.ne.s32.totalorder %s88, %s89
      %p98 = scmp.eq.s32.totalorder %s41, 0
      %p99 = por %p97, %p98
      %p100 = scmp.ne.s32.totalorder %s88, %s89
      %p101 = scmp.eq.s32.totalorder %s42, 1
      %p102 = por %p100, %p101
      %p104 = scmp.ne.s32.totalorder %s89, %s103
      %p105 = scmp.eq.s32.totalorder %s42, 0
      %p106 = por %p104, %p105
      %s107 = ssub.s32 %s36, %s43
      %p108 = scmp.eq.s32.totalorder %s107, 0
      %s110 = sadd.s32 %s109, 1
      %s111 = scalar_select %p108, %s109, %s110
      %p114 = pneg %p108
      %p115 = scmp.eq.s32.totalorder %s36, 1
      %p116 = por %p114, %p115
      %p117 = scmp.ne.s32.totalorder %s109, %s112
      %p118 = scmp.eq.s32.totalorder %s36, 0
      %p119 = por %p117, %p118
      %p120 = scmp.ne.s32.totalorder %s109, %s112
      %p121 = scmp.eq.s32.totalorder %s41, 1
      %p122 = por %p120, %p121
      %p123 = scmp.ne.s32.totalorder %s112, %s113
      %p124 = scmp.eq.s32.totalorder %s41, 0
      %p125 = por %p123, %p124
      %p126 = scmp.ne.s32.totalorder %s112, %s113
      %p127 = scmp.eq.s32.totalorder %s42, 1
      %p128 = por %p126, %p127
      %p130 = scmp.ne.s32.totalorder %s113, %s129
      %p131 = scmp.eq.s32.totalorder %s42, 0
      %p132 = por %p130, %p131
      %s133 = ssub.s32 %s36, %s43
      %p134 = scmp.eq.s32.totalorder %s133, 0
      %s136 = sadd.s32 %s135, 1
      %s137 = scalar_select %p134, %s135, %s136
      %p140 = pneg %p134
      %p141 = scmp.eq.s32.totalorder %s36, 1
      %p142 = por %p140, %p141
      %p143 = scmp.ne.s32.totalorder %s135, %s138
      %p144 = scmp.eq.s32.totalorder %s36, 0
      %p145 = por %p143, %p144
      %p146 = scmp.ne.s32.totalorder %s135, %s138
      %p147 = scmp.eq.s32.totalorder %s41, 1
      %p148 = por %p146, %p147
      %p149 = scmp.ne.s32.totalorder %s138, %s139
      %p150 = scmp.eq.s32.totalorder %s41, 0
      %p151 = por %p149, %p150
      %p152 = scmp.ne.s32.totalorder %s138, %s139
      %p153 = scmp.eq.s32.totalorder %s42, 1
      %p154 = por %p152, %p153
      %p156 = scmp.ne.s32.totalorder %s139, %s155
      %p157 = scmp.eq.s32.totalorder %s42, 0
      %p158 = por %p156, %p157
      %s159 = ssub.s32 %s36, %s43
      %p160 = scmp.eq.s32.totalorder %s159, 0
      %s162 = sadd.s32 %s161, 1
      %s163 = scalar_select %p160, %s161, %s162
      %p166 = pneg %p160
      %p167 = scmp.eq.s32.totalorder %s36, 1
      %p168 = por %p166, %p167
      %p169 = scmp.ne.s32.totalorder %s161, %s164
      %p170 = scmp.eq.s32.totalorder %s36, 0
      %p171 = por %p169, %p170
      %p172 = scmp.ne.s32.totalorder %s161, %s164
      %p173 = scmp.eq.s32.totalorder %s41, 1
      %p174 = por %p172, %p173
      %p175 = scmp.ne.s32.totalorder %s164, %s165
      %p176 = scmp.eq.s32.totalorder %s41, 0
      %p177 = por %p175, %p176
      %p178 = scmp.ne.s32.totalorder %s164, %s165
      %p179 = scmp.eq.s32.totalorder %s42, 1
      %p180 = por %p178, %p179
      %p182 = scmp.ne.s32.totalorder %s165, %s181
      %p183 = scmp.eq.s32.totalorder %s42, 0
      %p184 = por %p182, %p183
      %s185 = ssub.s32 %s36, %s43
      %p186 = scmp.eq.s32.totalorder %s185, 0
      %s188 = sadd.s32 %s187, 1
      %s189 = scalar_select %p186, %s187, %s188
      %p192 = pneg %p186
      %p193 = scmp.eq.s32.totalorder %s36, 1
      %p194 = por %p192, %p193
      %p195 = scmp.ne.s32.totalorder %s187, %s190
      %p196 = scmp.eq.s32.totalorder %s36, 0
      %p197 = por %p195, %p196
      %p198 = scmp.ne.s32.totalorder %s187, %s190
      %p199 = scmp.eq.s32.totalorder %s41, 1
      %p200 = por %p198, %p199
      %p201 = scmp.ne.s32.totalorder %s190, %s191
      %p202 = scmp.eq.s32.totalorder %s41, 0
      %p203 = por %p201, %p202
      %p204 = scmp.ne.s32.totalorder %s190, %s191
      %p205 = scmp.eq.s32.totalorder %s42, 1
      %p206 = por %p204, %p205
      %p208 = scmp.ne.s32.totalorder %s191, %s207
      %p209 = scmp.eq.s32.totalorder %s42, 0
      %p210 = por %p208, %p209
      %s211 = ssub.s32 %s36, %s43
      %p212 = scmp.eq.s32.totalorder %s211, 0
      %s214 = sadd.s32 %s213, 1
      %s215 = scalar_select %p212, %s213, %s214
      %p218 = pneg %p212
      %p219 = scmp.eq.s32.totalorder %s36, 1
      %p220 = por %p218, %p219
      %p221 = scmp.ne.s32.totalorder %s213, %s216
      %p222 = scmp.eq.s32.totalorder %s36, 0
      %p223 = por %p221, %p222
      %p224 = scmp.ne.s32.totalorder %s213, %s216
      %p225 = scmp.eq.s32.totalorder %s41, 1
      %p226 = por %p224, %p225
      %p227 = scmp.ne.s32.totalorder %s216, %s217
      %p228 = scmp.eq.s32.totalorder %s41, 0
      %p229 = por %p227, %p228
      %p230 = scmp.ne.s32.totalorder %s216, %s217
      %p231 = scmp.eq.s32.totalorder %s42, 1
      %p232 = por %p230, %p231
      %p234 = scmp.ne.s32.totalorder %s217, %s233
      %p235 = scmp.eq.s32.totalorder %s42, 0
      %p236 = por %p234, %p235
      %s237 = ssub.s32 %s36, %s43
      %p238 = scmp.eq.s32.totalorder %s237, 0
      %s240 = sadd.s32 %s239, 1
      %s241 = scalar_select %p238, %s239, %s240
      %p244 = pneg %p238
      %p245 = scmp.eq.s32.totalorder %s36, 1
      %p246 = por %p244, %p245
      %p247 = scmp.ne.s32.totalorder %s239, %s242
      %p248 = scmp.eq.s32.totalorder %s36, 0
      %p249 = por %p247, %p248
      %p250 = scmp.ne.s32.totalorder %s239, %s242
      %p251 = scmp.eq.s32.totalorder %s41, 1
      %p252 = por %p250, %p251
      %p253 = scmp.ne.s32.totalorder %s242, %s243
      %p254 = scmp.eq.s32.totalorder %s41, 0
      %p255 = por %p253, %p254
      %p256 = scmp.ne.s32.totalorder %s242, %s243
      %p257 = scmp.eq.s32.totalorder %s42, 1
      %p258 = por %p256, %p257
      %p260 = scmp.ne.s32.totalorder %s243, %s259
      %p261 = scmp.eq.s32.totalorder %s42, 0
      %p262 = por %p260, %p261
      %s263 = ssub.s32 %s36, %s43
      %p264 = scmp.eq.s32.totalorder %s263, 0
      %s266 = sadd.s32 %s265, 1
      %s267 = scalar_select %p264, %s265, %s266
      %p270 = pneg %p264
      %p271 = scmp.eq.s32.totalorder %s36, 1
      %p272 = por %p270, %p271
      %p273 = scmp.ne.s32.totalorder %s265, %s268
      %p274 = scmp.eq.s32.totalorder %s36, 0
      %p275 = por %p273, %p274
      %p276 = scmp.ne.s32.totalorder %s265, %s268
      %p277 = scmp.eq.s32.totalorder %s41, 1
      %p278 = por %p276, %p277
      %p279 = scmp.ne.s32.totalorder %s268, %s269
      %p280 = scmp.eq.s32.totalorder %s41, 0
      %p281 = por %p279, %p280
      %p282 = scmp.ne.s32.totalorder %s268, %s269
      %p283 = scmp.eq.s32.totalorder %s42, 1
      %p284 = por %p282, %p283
      %p286 = scmp.ne.s32.totalorder %s269, %s285
      %p287 = scmp.eq.s32.totalorder %s42, 0
      %p288 = por %p286, %p287
      %s289 = ssub.s32 %s36, %s43
      %p290 = scmp.eq.s32.totalorder %s289, 0
      %s292 = sadd.s32 %s291, 1
      %s293 = scalar_select %p290, %s291, %s292
      %p296 = pneg %p290
      %p297 = scmp.eq.s32.totalorder %s36, 1
      %p298 = por %p296, %p297
      %p299 = scmp.ne.s32.totalorder %s291, %s294
      %p300 = scmp.eq.s32.totalorder %s36, 0
      %p301 = por %p299, %p300
      %p302 = scmp.ne.s32.totalorder %s291, %s294
      %p303 = scmp.eq.s32.totalorder %s41, 1
      %p304 = por %p302, %p303
      %p305 = scmp.ne.s32.totalorder %s294, %s295
      %p306 = scmp.eq.s32.totalorder %s41, 0
      %p307 = por %p305, %p306
      %p308 = scmp.ne.s32.totalorder %s294, %s295
      %p309 = scmp.eq.s32.totalorder %s42, 1
      %p310 = por %p308, %p309
      %p312 = scmp.ne.s32.totalorder %s295, %s311
      %p313 = scmp.eq.s32.totalorder %s42, 0
      %p314 = por %p312, %p313
      %s315 = ssub.s32 %s36, %s43
      %p316 = scmp.eq.s32.totalorder %s315, 0
      %s318 = sadd.s32 %s317, 1
      %s319 = scalar_select %p316, %s317, %s318
      %p322 = pneg %p316
      %p323 = scmp.eq.s32.totalorder %s36, 1
      %p324 = por %p322, %p323
      %p325 = scmp.ne.s32.totalorder %s317, %s320
      %p326 = scmp.eq.s32.totalorder %s36, 0
      %p327 = por %p325, %p326
      %p328 = scmp.ne.s32.totalorder %s317, %s320
      %p329 = scmp.eq.s32.totalorder %s41, 1
      %p330 = por %p328, %p329
      %p331 = scmp.ne.s32.totalorder %s320, %s321
      %p332 = scmp.eq.s32.totalorder %s41, 0
      %p333 = por %p331, %p332
      %p334 = scmp.ne.s32.totalorder %s320, %s321
      %p335 = scmp.eq.s32.totalorder %s42, 1
      %p336 = por %p334, %p335
      %p338 = scmp.ne.s32.totalorder %s321, %s337
      %p339 = scmp.eq.s32.totalorder %s42, 0
      %p340 = por %p338, %p339
      %s341 = ssub.s32 %s36, %s43
      %p342 = scmp.eq.s32.totalorder %s341, 0
      %s344 = sadd.s32 %s343, 1
      %s345 = scalar_select %p342, %s343, %s344
      %p348 = pneg %p342
      %p349 = scmp.eq.s32.totalorder %s36, 1
      %p350 = por %p348, %p349
      %p351 = scmp.ne.s32.totalorder %s343, %s346
      %p352 = scmp.eq.s32.totalorder %s36, 0
      %p353 = por %p351, %p352
      %p354 = scmp.ne.s32.totalorder %s343, %s346
      %p355 = scmp.eq.s32.totalorder %s41, 1
      %p356 = por %p354, %p355
      %p357 = scmp.ne.s32.totalorder %s346, %s347
      %p358 = scmp.eq.s32.totalorder %s41, 0
      %p359 = por %p357, %p358
      %p360 = scmp.ne.s32.totalorder %s346, %s347
      %p361 = scmp.eq.s32.totalorder %s42, 1
      %p362 = por %p360, %p361
      %p364 = scmp.ne.s32.totalorder %s347, %s363
      %p365 = scmp.eq.s32.totalorder %s42, 0
      %p366 = por %p364, %p365
      %s367 = ssub.s32 %s36, %s43
      %p368 = scmp.eq.s32.totalorder %s367, 0
      %s370 = sadd.s32 %s369, 1
      %s371 = scalar_select %p368, %s369, %s370
      %p374 = pneg %p368
      %p375 = scmp.eq.s32.totalorder %s36, 1
      %p376 = por %p374, %p375
      %p377 = scmp.ne.s32.totalorder %s369, %s372
      %p378 = scmp.eq.s32.totalorder %s36, 0
      %p379 = por %p377, %p378
      %p380 = scmp.ne.s32.totalorder %s369, %s372
      %p381 = scmp.eq.s32.totalorder %s41, 1
      %p382 = por %p380, %p381
      %p383 = scmp.ne.s32.totalorder %s372, %s373
      %p384 = scmp.eq.s32.totalorder %s41, 0
      %p385 = por %p383, %p384
      %p386 = scmp.ne.s32.totalorder %s372, %s373
      %p387 = scmp.eq.s32.totalorder %s42, 1
      %p388 = por %p386, %p387
      %p390 = scmp.ne.s32.totalorder %s373, %s389
      %p391 = scmp.eq.s32.totalorder %s42, 0
      %p392 = por %p390, %p391
      %s393 = ssub.s32 %s36, %s43
      %p394 = scmp.eq.s32.totalorder %s393, 0
      %s396 = sadd.s32 %s395, 1
      %s397 = scalar_select %p394, %s395, %s396
      %p400 = pneg %p394
      %p401 = scmp.eq.s32.totalorder %s36, 1
      %p402 = por %p400, %p401
      %p403 = scmp.ne.s32.totalorder %s395, %s398
      %p404 = scmp.eq.s32.totalorder %s36, 0
      %p405 = por %p403, %p404
      %p406 = scmp.ne.s32.totalorder %s395, %s398
      %p407 = scmp.eq.s32.totalorder %s41, 1
      %p408 = por %p406, %p407
      %p409 = scmp.ne.s32.totalorder %s398, %s399
      %p410 = scmp.eq.s32.totalorder %s41, 0
      %p411 = por %p409, %p410
      %p412 = scmp.ne.s32.totalorder %s398, %s399
      %p413 = scmp.eq.s32.totalorder %s42, 1
      %p414 = por %p412, %p413
      %p416 = scmp.ne.s32.totalorder %s399, %s415
      %p417 = scmp.eq.s32.totalorder %s42, 0
      %p418 = por %p416, %p417
      %s419 = ssub.s32 %s36, %s43
      %p420 = scmp.eq.s32.totalorder %s419, 0
      %s422 = sadd.s32 %s421, 1
      %s423 = scalar_select %p420, %s421, %s422
      %p426 = pneg %p420
      %p427 = scmp.eq.s32.totalorder %s36, 1
      %p428 = por %p426, %p427
      %p429 = scmp.ne.s32.totalorder %s421, %s424
      %p430 = scmp.eq.s32.totalorder %s36, 0
      %p431 = por %p429, %p430
      %p432 = scmp.ne.s32.totalorder %s421, %s424
      %p433 = scmp.eq.s32.totalorder %s41, 1
      %p434 = por %p432, %p433
      %p435 = scmp.ne.s32.totalorder %s424, %s425
      %p436 = scmp.eq.s32.totalorder %s41, 0
      %p437 = por %p435, %p436
      %p438 = scmp.ne.s32.totalorder %s424, %s425
      %p439 = scmp.eq.s32.totalorder %s42, 1
      %p440 = por %p438, %p439
      %p442 = scmp.ne.s32.totalorder %s425, %s441
      %p443 = scmp.eq.s32.totalorder %s42, 0
      %p444 = por %p442, %p443
      %s445 = ssub.s32 %s36, %s43
      %p446 = scmp.eq.s32.totalorder %s445, 0
      %s448 = sadd.s32 %s447, 1
      %s449 = scalar_select %p446, %s447, %s448
      %p452 = pneg %p446
      %p453 = scmp.eq.s32.totalorder %s36, 1
      %p454 = por %p452, %p453
      %p455 = scmp.ne.s32.totalorder %s447, %s450
      %p456 = scmp.eq.s32.totalorder %s36, 0
      %p457 = por %p455, %p456
      %p458 = scmp.ne.s32.totalorder %s447, %s450
      %p459 = scmp.eq.s32.totalorder %s41, 1
      %p460 = por %p458, %p459
      %p461 = scmp.ne.s32.totalorder %s450, %s451
      %p462 = scmp.eq.s32.totalorder %s41, 0
      %p463 = por %p461, %p462
      %p464 = scmp.ne.s32.totalorder %s450, %s451
      %p465 = scmp.eq.s32.totalorder %s42, 1
      %p466 = por %p464, %p465
      %p468 = scmp.ne.s32.totalorder %s451, %s467
      %p469 = scmp.eq.s32.totalorder %s42, 0
      %p470 = por %p468, %p469
      %s471 = ssub.s32 %s36, %s43
      %p472 = scmp.eq.s32.totalorder %s471, 0
      %s474 = sadd.s32 %s473, 1
      %s475 = scalar_select %p472, %s473, %s474
      %p478 = pneg %p472
      %p479 = scmp.eq.s32.totalorder %s36, 1
      %p480 = por %p478, %p479
      %p481 = scmp.ne.s32.totalorder %s473, %s476
      %p482 = scmp.eq.s32.totalorder %s36, 0
      %p483 = por %p481, %p482
      %p484 = scmp.ne.s32.totalorder %s473, %s476
      %p485 = scmp.eq.s32.totalorder %s41, 1
      %p486 = por %p484, %p485
      %p487 = scmp.ne.s32.totalorder %s476, %s477
      %p488 = scmp.eq.s32.totalorder %s41, 0
      %p489 = por %p487, %p488
      %p490 = scmp.ne.s32.totalorder %s476, %s477
      %p491 = scmp.eq.s32.totalorder %s42, 1
      %p492 = por %p490, %p491
      %p494 = scmp.ne.s32.totalorder %s477, %s493
      %p495 = scmp.eq.s32.totalorder %s42, 0
      %p496 = por %p494, %p495
      %s497 = ssub.s32 %s36, %s43
      %p498 = scmp.eq.s32.totalorder %s497, 0
      %s500 = sadd.s32 %s499, 1
      %s501 = scalar_select %p498, %s499, %s500
      %p504 = pneg %p498
      %p505 = scmp.eq.s32.totalorder %s36, 1
      %p506 = por %p504, %p505
      %p507 = scmp.ne.s32.totalorder %s499, %s502
      %p508 = scmp.eq.s32.totalorder %s36, 0
      %p509 = por %p507, %p508
      %p510 = scmp.ne.s32.totalorder %s499, %s502
      %p511 = scmp.eq.s32.totalorder %s41, 1
      %p512 = por %p510, %p511
      %p513 = scmp.ne.s32.totalorder %s502, %s503
      %p514 = scmp.eq.s32.totalorder %s41, 0
      %p515 = por %p513, %p514
      %p516 = scmp.ne.s32.totalorder %s502, %s503
      %p517 = scmp.eq.s32.totalorder %s42, 1
      %p518 = por %p516, %p517
      %p520 = scmp.ne.s32.totalorder %s503, %s519
      %p521 = scmp.eq.s32.totalorder %s42, 0
      %p522 = por %p520, %p521
      %s524 = sadd.s32 %s523, 1
      %p527 = scmp.eq.s32.totalorder %s36, 1
      %p528 = scmp.ne.s32.totalorder %s523, %s525
      %p529 = scmp.eq.s32.totalorder %s36, 0
      %p530 = por %p528, %p529
      %p531 = scmp.ne.s32.totalorder %s523, %s525
      %p532 = scmp.eq.s32.totalorder %s41, 1
      %p533 = por %p531, %p532
      %p534 = scmp.ne.s32.totalorder %s525, %s526
      %p535 = scmp.eq.s32.totalorder %s41, 0
      %p536 = por %p534, %p535
      %p537 = scmp.ne.s32.totalorder %s525, %s526
      %p538 = scmp.eq.s32.totalorder %s42, 1
      %p539 = por %p537, %p538
      %p541 = scmp.ne.s32.totalorder %s526, %s540
      %p542 = scmp.eq.s32.totalorder %s42, 0
      %p543 = por %p541, %p542
      %s545 = sadd.s32 %s544, 1
      %p548 = scmp.eq.s32.totalorder %s36, 1
      %p549 = scmp.ne.s32.totalorder %s544, %s546
      %p550 = scmp.eq.s32.totalorder %s36, 0
      %p551 = por %p549, %p550
      %p552 = scmp.ne.s32.totalorder %s544, %s546
      %p553 = scmp.eq.s32.totalorder %s41, 1
      %p554 = por %p552, %p553
      %p555 = scmp.ne.s32.totalorder %s546, %s547
      %p556 = scmp.eq.s32.totalorder %s41, 0
      %p557 = por %p555, %p556
      %p558 = scmp.ne.s32.totalorder %s546, %s547
      %p559 = scmp.eq.s32.totalorder %s42, 1
      %p560 = por %p558, %p559
      %p562 = scmp.ne.s32.totalorder %s547, %s561
      %p563 = scmp.eq.s32.totalorder %s42, 0
      %p564 = por %p562, %p563
      %s566 = sadd.s32 %s565, 1
      %p569 = scmp.eq.s32.totalorder %s36, 1
      %p570 = scmp.ne.s32.totalorder %s565, %s567
      %p571 = scmp.eq.s32.totalorder %s36, 0
      %p572 = por %p570, %p571
      %p573 = scmp.ne.s32.totalorder %s565, %s567
      %p574 = scmp.eq.s32.totalorder %s41, 1
      %p575 = por %p573, %p574
      %p576 = scmp.ne.s32.totalorder %s567, %s568
      %p577 = scmp.eq.s32.totalorder %s41, 0
      %p578 = por %p576, %p577
      %p579 = scmp.ne.s32.totalorder %s567, %s568
      %p580 = scmp.eq.s32.totalorder %s42, 1
      %p581 = por %p579, %p580
      %p583 = scmp.ne.s32.totalorder %s568, %s582
      %p584 = scmp.eq.s32.totalorder %s42, 0
      %p585 = por %p583, %p584
      %p586 = scmp.le.s32.totalorder 1, %s36
      %p587 = scmp.lt.s32.totalorder %s36, 3
      %p588 = pnand %p586, %p587
      %p589 = pneg %p588
      // Predicated region
      $region9: #{_bert_crf_apply.2} parent=5 // pred_check
        _
      $region10: #{_bert_crf_apply.2} parent=5 // pred_check_branch
        %591 = sbr.rel (%p588) target = $region12
      $region11: #{_bert_crf_apply.2} parent=5 // pred_region
        %s592 = ssub.s32 %s36, 1
        // Predicated region
        $region13: #{_bert_crf_apply.2} parent=11 // pred_check
          %p593 = pneg %p57
        $region14: #{_bert_crf_apply.2} parent=11 // pred_check_branch
          %595 = sbr.rel (%p593) target = $region16
        $region15: #{_bert_crf_apply.2} parent=11 // pred_region
          _
        $region16: #{_bert_crf_apply.2} parent=11 // pred_fallthru
          _
        // Predicated region
        $region17: #{_bert_crf_apply.2} parent=11 // pred_check
          %p596 = pneg %p78
        $region18: #{_bert_crf_apply.2} parent=11 // pred_check_branch
          %598 = sbr.rel (%p596) target = $region20
        $region19: #{_bert_crf_apply.2} parent=11 // pred_region
          _
        $region20: #{_bert_crf_apply.2} parent=11 // pred_fallthru
          _
        // Predicated region
        $region21: #{_bert_crf_apply.2} parent=11 // pred_check
          %p599 = pneg %p99
        $region22: #{_bert_crf_apply.2} parent=11 // pred_check_branch
          %601 = sbr.rel (%p599) target = $region24
        $region23: #{_bert_crf_apply.2} parent=11 // pred_region
          _
        $region24: #{_bert_crf_apply.2} parent=11 // pred_fallthru
          _
        // Predicated region
        $region25: #{_bert_crf_apply.2} parent=11 // pred_check
          %p602 = pneg %p536
        $region26: #{_bert_crf_apply.2} parent=11 // pred_check_branch
          %604 = sbr.rel (%p602) target = $region28
        $region27: #{_bert_crf_apply.2} parent=11 // pred_region
          _
        $region28: #{_bert_crf_apply.2} parent=11 // pred_fallthru
          _
        // Predicated region
        $region29: #{_bert_crf_apply.2} parent=11 // pred_check
          %p605 = pneg %p557
        $region30: #{_bert_crf_apply.2} parent=11 // pred_check_branch
          %607 = sbr.rel (%p605) target = $region32
        $region31: #{_bert_crf_apply.2} parent=11 // pred_region
          _
        $region32: #{_bert_crf_apply.2} parent=11 // pred_fallthru
          _
      $region12: #{_bert_crf_apply.2} parent=5 // pred_fallthru
        _
      %p608 = scmp.lt.s32.totalorder %s36, 2
      // Predicated region
      $region33: #{_bert_crf_apply.2} parent=5 // pred_check
        %p609 = pneg %p608
      $region34: #{_bert_crf_apply.2} parent=5 // pred_check_branch
        %611 = sbr.rel (%p609) target = $region36
      $region35: #{_bert_crf_apply.2} parent=5 // pred_region
        // Predicated region
        $region37: #{_bert_crf_apply.2} parent=35 // pred_check
          %p612 = pneg %p119
        $region38: #{_bert_crf_apply.2} parent=35 // pred_check_branch
          %614 = sbr.rel (%p612) target = $region40
        $region39: #{_bert_crf_apply.2} parent=35 // pred_region
          %p615 = scmp.lt.s32.totalorder %s36, 1
          %s616 = scalar_select %p615, %s36, 1
          %s617 = smul.addr %s616, 16
          %s618 = smul.addr %s617, 4
          %s619 = scalar_lea.vmem %s3, %s618
        $region40: #{_bert_crf_apply.2} parent=35 // pred_fallthru
          _
        // Predicated region
        $region41: #{_bert_crf_apply.2} parent=35 // pred_check
          %p620 = pneg %p145
        $region42: #{_bert_crf_apply.2} parent=35 // pred_check_branch
          %622 = sbr.rel (%p620) target = $region44
        $region43: #{_bert_crf_apply.2} parent=35 // pred_region
          %p623 = scmp.lt.s32.totalorder %s36, 1
          %s624 = scalar_select %p623, %s36, 1
          %s625 = scalar_lea.vmem %s4, %s624
        $region44: #{_bert_crf_apply.2} parent=35 // pred_fallthru
          _
        // Predicated region
        $region45: #{_bert_crf_apply.2} parent=35 // pred_check
          %p626 = pneg %p171
        $region46: #{_bert_crf_apply.2} parent=35 // pred_check_branch
          %628 = sbr.rel (%p626) target = $region48
        $region47: #{_bert_crf_apply.2} parent=35 // pred_region
          %s629 = sand.u32 %s161, 1
          %s630 = scalar_lea.sflag [#allocation4], %s629
          %s631 = sand.u32 %s161, 1
          %s632 = smul.addr %s631, 64
          %s633 = scalar_lea.vmem [#allocation3], %s632
          %s635 = ssub.s32 1024, 1024
          %636 = vsyncadd %s630, %s635
          %s637 = smul.addr %s36, 16
          %s638 = smul.addr %s637, 64
          %s639 = scalar_lea.hbm %s5, %s638
          %s640 = sshll.u32 %s633, 4
          %s641 = int_to_ptr.vmem [resolvable:$true] %s640
          %646 = dma.hbm_to_vmem [thread:$0]  %s639, 1024, %s641, %s630, 64, 64, 4
        $region48: #{_bert_crf_apply.2} parent=35 // pred_fallthru
          _
        // Predicated region
        $region49: #{_bert_crf_apply.2} parent=35 // pred_check
          %p647 = pneg %p197
        $region50: #{_bert_crf_apply.2} parent=35 // pred_check_branch
          %649 = sbr.rel (%p647) target = $region52
        $region51: #{_bert_crf_apply.2} parent=35 // pred_region
          %p650 = scmp.lt.s32.totalorder %s36, 1
          %s651 = scalar_select %p650, %s36, 1
          %s652 = scalar_lea.vmem %s6, %s651
        $region52: #{_bert_crf_apply.2} parent=35 // pred_fallthru
          _
        // Predicated region
        $region53: #{_bert_crf_apply.2} parent=35 // pred_check
          %p653 = pneg %p223
        $region54: #{_bert_crf_apply.2} parent=35 // pred_check_branch
          %655 = sbr.rel (%p653) target = $region56
        $region55: #{_bert_crf_apply.2} parent=35 // pred_region
          %s656 = sand.u32 %s36, 1
          %s657 = scalar_lea.sflag [#allocation6], %s656
          %s658 = sand.u32 %s213, 1
          %s659 = smul.addr %s658, 64
          %s660 = scalar_lea.vmem [#allocation5], %s659
          %s662 = ssub.s32 1024, 1024
          %663 = vsyncadd %s657, %s662
          %s664 = smul.addr %s36, 16
          %s665 = smul.addr %s664, 64
          %s666 = scalar_lea.hbm %s7, %s665
          %s667 = sshll.u32 %s660, 4
          %s668 = int_to_ptr.vmem [resolvable:$true] %s667
          %673 = dma.hbm_to_vmem [thread:$0]  %s666, 1024, %s668, %s657, 64, 64, 4
        $region56: #{_bert_crf_apply.2} parent=35 // pred_fallthru
          _
        // Predicated region
        $region57: #{_bert_crf_apply.2} parent=35 // pred_check
          %p674 = pneg %p249
        $region58: #{_bert_crf_apply.2} parent=35 // pred_check_branch
          %676 = sbr.rel (%p674) target = $region60
        $region59: #{_bert_crf_apply.2} parent=35 // pred_region
          %p677 = scmp.lt.s32.totalorder %s36, 1
          %s678 = scalar_select %p677, %s36, 1
          %s679 = scalar_lea.vmem %s8, %s678
        $region60: #{_bert_crf_apply.2} parent=35 // pred_fallthru
          _
        // Predicated region
        $region61: #{_bert_crf_apply.2} parent=35 // pred_check
          %p680 = pneg %p275
        $region62: #{_bert_crf_apply.2} parent=35 // pred_check_branch
          %682 = sbr.rel (%p680) target = $region64
        $region63: #{_bert_crf_apply.2} parent=35 // pred_region
          %s683 = sand.u32 %s36, 1
          %s684 = scalar_lea.sflag [#allocation6], %s683
          %s685 = sand.u32 %s265, 1
          %s686 = smul.addr %s685, 64
          %s687 = scalar_lea.vmem [#allocation7], %s686
          %s689 = ssub.s32 1024, 1024
          %690 = vsyncadd %s684, %s689
          %s691 = smul.addr %s36, 16
          %s692 = smul.addr %s691, 64
          %s693 = scalar_lea.hbm %s9, %s692
          %s694 = sshll.u32 %s687, 4
          %s695 = int_to_ptr.vmem [resolvable:$true] %s694
          %700 = dma.hbm_to_vmem [thread:$0]  %s693, 1024, %s695, %s684, 64, 64, 4
        $region64: #{_bert_crf_apply.2} parent=35 // pred_fallthru
          _
        // Predicated region
        $region65: #{_bert_crf_apply.2} parent=35 // pred_check
          %p701 = pneg %p301
        $region66: #{_bert_crf_apply.2} parent=35 // pred_check_branch
          %703 = sbr.rel (%p701) target = $region68
        $region67: #{_bert_crf_apply.2} parent=35 // pred_region
          %p704 = scmp.lt.s32.totalorder %s36, 1
          %s705 = scalar_select %p704, %s36, 1
          %s706 = scalar_lea.vmem %s10, %s705
        $region68: #{_bert_crf_apply.2} parent=35 // pred_fallthru
          _
        // Predicated region
        $region69: #{_bert_crf_apply.2} parent=35 // pred_check
          %p707 = pneg %p327
        $region70: #{_bert_crf_apply.2} parent=35 // pred_check_branch
          %709 = sbr.rel (%p707) target = $region72
        $region71: #{_bert_crf_apply.2} parent=35 // pred_region
          %p710 = scmp.lt.s32.totalorder %s36, 1
          %s711 = scalar_select %p710, %s36, 1
          %s712 = scalar_lea.vmem %s11, %s711
        $region72: #{_bert_crf_apply.2} parent=35 // pred_fallthru
          _
        // Predicated region
        $region73: #{_bert_crf_apply.2} parent=35 // pred_check
          %p713 = pneg %p353
        $region74: #{_bert_crf_apply.2} parent=35 // pred_check_branch
          %715 = sbr.rel (%p713) target = $region76
        $region75: #{_bert_crf_apply.2} parent=35 // pred_region
          %p716 = scmp.lt.s32.totalorder %s36, 1
          %s717 = scalar_select %p716, %s36, 1
          %s718 = scalar_lea.vmem %s12, %s717
        $region76: #{_bert_crf_apply.2} parent=35 // pred_fallthru
          _
        // Predicated region
        $region77: #{_bert_crf_apply.2} parent=35 // pred_check
          %p719 = pneg %p379
        $region78: #{_bert_crf_apply.2} parent=35 // pred_check_branch
          %721 = sbr.rel (%p719) target = $region80
        $region79: #{_bert_crf_apply.2} parent=35 // pred_region
          %p722 = scmp.lt.s32.totalorder %s36, 1
          %s723 = scalar_select %p722, %s36, 1
          %s724 = smul.addr %s723, 64
          %s725 = smul.addr %s724, 4
          %s726 = scalar_lea.vmem %s13, %s725
        $region80: #{_bert_crf_apply.2} parent=35 // pred_fallthru
          _
        // Predicated region
        $region81: #{_bert_crf_apply.2} parent=35 // pred_check
          %p727 = pneg %p405
        $region82: #{_bert_crf_apply.2} parent=35 // pred_check_branch
          %729 = sbr.rel (%p727) target = $region84
        $region83: #{_bert_crf_apply.2} parent=35 // pred_region
          %p730 = scmp.lt.s32.totalorder %s36, 1
          %s731 = scalar_select %p730, %s36, 1
          %s732 = smul.addr %s731, 4
          %s733 = scalar_lea.vmem %s14, %s732
        $region84: #{_bert_crf_apply.2} parent=35 // pred_fallthru
          _
        // Predicated region
        $region85: #{_bert_crf_apply.2} parent=35 // pred_check
          %p734 = pneg %p431
        $region86: #{_bert_crf_apply.2} parent=35 // pred_check_branch
          %736 = sbr.rel (%p734) target = $region88
        $region87: #{_bert_crf_apply.2} parent=35 // pred_region
          %s737 = sand.u32 %s421, 1
          %s738 = scalar_lea.sflag [#allocation9], %s737
          %s739 = sand.u32 %s421, 1
          %s740 = smul.addr %s739, 256
          %s741 = scalar_lea.vmem [#allocation8], %s740
          %s743 = ssub.s32 4096, 4096
          %744 = vsyncadd %s738, %s743
          %s745 = smul.addr %s36, 64
          %s746 = smul.addr %s745, 64
          %s747 = scalar_lea.hbm %s15, %s746
          %s748 = sshll.u32 %s741, 4
          %s749 = int_to_ptr.vmem [resolvable:$true] %s748
          %754 = dma.hbm_to_vmem [thread:$0]  %s747, 4096, %s749, %s738, 64, 64, 4
        $region88: #{_bert_crf_apply.2} parent=35 // pred_fallthru
          _
        // Predicated region
        $region89: #{_bert_crf_apply.2} parent=35 // pred_check
          %p755 = pneg %p457
        $region90: #{_bert_crf_apply.2} parent=35 // pred_check_branch
          %757 = sbr.rel (%p755) target = $region92
        $region91: #{_bert_crf_apply.2} parent=35 // pred_region
          %p758 = scmp.lt.s32.totalorder %s36, 1
          %s759 = scalar_select %p758, %s36, 1
          %s760 = scalar_lea.vmem %s16, %s759
        $region92: #{_bert_crf_apply.2} parent=35 // pred_fallthru
          _
        // Predicated region
        $region93: #{_bert_crf_apply.2} parent=35 // pred_check
          %p761 = pneg %p483
        $region94: #{_bert_crf_apply.2} parent=35 // pred_check_branch
          %763 = sbr.rel (%p761) target = $region96
        $region95: #{_bert_crf_apply.2} parent=35 // pred_region
          %p764 = scmp.lt.s32.totalorder %s36, 1
          %s765 = scalar_select %p764, %s36, 1
          %s766 = scalar_lea.vmem %s17, %s765
        $region96: #{_bert_crf_apply.2} parent=35 // pred_fallthru
          _
        // Predicated region
        $region97: #{_bert_crf_apply.2} parent=35 // pred_check
          %p767 = pneg %p509
        $region98: #{_bert_crf_apply.2} parent=35 // pred_check_branch
          %769 = sbr.rel (%p767) target = $region100
        $region99: #{_bert_crf_apply.2} parent=35 // pred_region
          %p770 = scmp.lt.s32.totalorder %s36, 1
          %s771 = scalar_select %p770, %s36, 1
          %s772 = scalar_lea.vmem %s18, %s771
        $region100: #{_bert_crf_apply.2} parent=35 // pred_fallthru
          _
      $region36: #{_bert_crf_apply.2} parent=5 // pred_fallthru
        _
      %p773 = scmp.le.s32.totalorder 1, %s36
      %p774 = scmp.lt.s32.totalorder %s36, 3
      %p775 = pnand %p773, %p774
      %p776 = pneg %p775
      // Predicated region
      $region101: #{_bert_crf_apply.2} parent=5 // pred_check
        _
      $region102: #{_bert_crf_apply.2} parent=5 // pred_check_branch
        %778 = sbr.rel (%p775) target = $region104
      $region103: #{_bert_crf_apply.2} parent=5 // pred_region
        %s779 = ssub.s32 %s36, 1
        %s780 = sand.u32 %s164, 1
        %s781 = scalar_lea.sflag [#allocation4], %s780
        %s782 = sand.u32 %s164, 1
        %s783 = smul.addr %s782, 64
        %s784 = scalar_lea.vmem [#allocation3], %s783
        // Predicated region
        $region105: #{_bert_crf_apply.2} parent=103 // pred_check
          %p785 = pneg %p177
        $region106: #{_bert_crf_apply.2} parent=103 // pred_check_branch
          %787 = sbr.rel (%p785) target = $region108
        $region107: #{_bert_crf_apply.2} parent=103 // pred_region
          %788 = dma.done %s781, 1024
        $region108: #{_bert_crf_apply.2} parent=103 // pred_fallthru
          _
        %s789 = sand.u32 %s41, 1
        %s790 = scalar_lea.sflag [#allocation6], %s789
        %s791 = sand.u32 %s216, 1
        %s792 = smul.addr %s791, 64
        %s793 = scalar_lea.vmem [#allocation5], %s792
        // Predicated region
        $region109: #{_bert_crf_apply.2} parent=103 // pred_check
          %p794 = pneg %p229
        $region110: #{_bert_crf_apply.2} parent=103 // pred_check_branch
          %796 = sbr.rel (%p794) target = $region112
        $region111: #{_bert_crf_apply.2} parent=103 // pred_region
          %797 = dma.done %s790, 1024
        $region112: #{_bert_crf_apply.2} parent=103 // pred_fallthru
          _
        %s798 = sand.u32 %s41, 1
        %s799 = scalar_lea.sflag [#allocation6], %s798
        %s800 = sand.u32 %s268, 1
        %s801 = smul.addr %s800, 64
        %s802 = scalar_lea.vmem [#allocation7], %s801
        // Predicated region
        $region113: #{_bert_crf_apply.2} parent=103 // pred_check
          %p803 = pneg %p281
        $region114: #{_bert_crf_apply.2} parent=103 // pred_check_branch
          %805 = sbr.rel (%p803) target = $region116
        $region115: #{_bert_crf_apply.2} parent=103 // pred_region
          %806 = dma.done %s799, 1024
        $region116: #{_bert_crf_apply.2} parent=103 // pred_fallthru
          _
        %s807 = sand.u32 %s424, 1
        %s808 = scalar_lea.sflag [#allocation9], %s807
        %s809 = sand.u32 %s424, 1
        %s810 = smul.addr %s809, 256
        %s811 = scalar_lea.vmem [#allocation8], %s810
        // Predicated region
        $region117: #{_bert_crf_apply.2} parent=103 // pred_check
          %p812 = pneg %p437
        $region118: #{_bert_crf_apply.2} parent=103 // pred_check_branch
          %814 = sbr.rel (%p812) target = $region120
        $region119: #{_bert_crf_apply.2} parent=103 // pred_region
          %815 = dma.done %s808, 4096
        $region120: #{_bert_crf_apply.2} parent=103 // pred_fallthru
          _
        %p816 = pneg %p57
        %p817 = pneg %p54
        %p818 = pneg %p78
        %p819 = pneg %p75
        %p820 = pneg %p99
        %p821 = pneg %p96
        %p822 = scmp.lt.s32.totalorder %s41, 1
        %s823 = scalar_select %p822, %s41, 1
        %s824 = smul.addr %s823, 16
        %s825 = smul.addr %s824, 4
        %s826 = scalar_lea.vmem %s3, %s825
        %p827 = pneg %p125
        %p828 = pneg %p122
        %p829 = scmp.lt.s32.totalorder %s41, 1
        %s830 = scalar_select %p829, %s41, 1
        %s831 = scalar_lea.vmem %s4, %s830
        %p832 = pneg %p151
        %p833 = pneg %p148
        %s834 = sand.u32 %s164, 1
        %s835 = scalar_lea.sflag [#allocation4], %s834
        %s836 = sand.u32 %s164, 1
        %s837 = smul.addr %s836, 64
        %s838 = scalar_lea.vmem [#allocation3], %s837
        %p839 = pneg %p177
        %p840 = pneg %p174
        %p841 = scmp.lt.s32.totalorder %s41, 1
        %s842 = scalar_select %p841, %s41, 1
        %s843 = scalar_lea.vmem %s6, %s842
        %p844 = pneg %p203
        %p845 = pneg %p200
        %s846 = sand.u32 %s41, 1
        %s847 = scalar_lea.sflag [#allocation6], %s846
        %s848 = sand.u32 %s216, 1
        %s849 = smul.addr %s848, 64
        %s850 = scalar_lea.vmem [#allocation5], %s849
        %p851 = pneg %p229
        %p852 = pneg %p226
        %p853 = scmp.lt.s32.totalorder %s41, 1
        %s854 = scalar_select %p853, %s41, 1
        %s855 = scalar_lea.vmem %s8, %s854
        %p856 = pneg %p255
        %p857 = pneg %p252
        %s858 = sand.u32 %s41, 1
        %s859 = scalar_lea.sflag [#allocation6], %s858
        %s860 = sand.u32 %s268, 1
        %s861 = smul.addr %s860, 64
        %s862 = scalar_lea.vmem [#allocation7], %s861
        %p863 = pneg %p281
        %p864 = pneg %p278
        %p865 = scmp.lt.s32.totalorder %s41, 1
        %s866 = scalar_select %p865, %s41, 1
        %s867 = scalar_lea.vmem %s10, %s866
        %p868 = pneg %p307
        %p869 = pneg %p304
        %p870 = scmp.lt.s32.totalorder %s41, 1
        %s871 = scalar_select %p870, %s41, 1
        %s872 = scalar_lea.vmem %s11, %s871
        %p873 = pneg %p333
        %p874 = pneg %p330
        %p875 = scmp.lt.s32.totalorder %s41, 1
        %s876 = scalar_select %p875, %s41, 1
        %s877 = scalar_lea.vmem %s12, %s876
        %p878 = pneg %p359
        %p879 = pneg %p356
        %p880 = scmp.lt.s32.totalorder %s41, 1
        %s881 = scalar_select %p880, %s41, 1
        %s882 = smul.addr %s881, 64
        %s883 = smul.addr %s882, 4
        %s884 = scalar_lea.vmem %s13, %s883
        %p885 = pneg %p385
        %p886 = pneg %p382
        %p887 = scmp.lt.s32.totalorder %s41, 1
        %s888 = scalar_select %p887, %s41, 1
        %s889 = smul.addr %s888, 4
        %s890 = scalar_lea.vmem %s14, %s889
        %p891 = pneg %p411
        %p892 = pneg %p408
        %s893 = sand.u32 %s424, 1
        %s894 = scalar_lea.sflag [#allocation9], %s893
        %s895 = sand.u32 %s424, 1
        %s896 = smul.addr %s895, 256
        %s897 = scalar_lea.vmem [#allocation8], %s896
        %p898 = pneg %p437
        %p899 = pneg %p434
        %p900 = scmp.lt.s32.totalorder %s41, 1
        %s901 = scalar_select %p900, %s41, 1
        %s902 = scalar_lea.vmem %s16, %s901
        %p903 = pneg %p463
        %p904 = pneg %p460
        %p905 = scmp.lt.s32.totalorder %s41, 1
        %s906 = scalar_select %p905, %s41, 1
        %s907 = scalar_lea.vmem %s17, %s906
        %p908 = pneg %p489
        %p909 = pneg %p486
        %p910 = scmp.lt.s32.totalorder %s41, 1
        %s911 = scalar_select %p910, %s41, 1
        %s912 = scalar_lea.vmem %s18, %s911
        %p913 = pneg %p515
        %p914 = pneg %p512
        %p915 = pneg %p536
        %p916 = pneg %p533
        %p917 = pneg %p557
        %p918 = pneg %p554
        %p919 = pneg %p578
        %p920 = pneg %p575
        %p921 = scmp.lt.s32.totalorder %s41, 1
        %s922 = scalar_select %p921, %s41, 1
        %s923 = smul.addr %s922, 16
        %s924 = smul.addr %s923, 4
        %s925 = scalar_lea.vmem %s3, %s924
        %p926 = scmp.lt.s32.totalorder %s41, 1
        %s927 = scalar_select %p926, %s41, 1
        %s928 = scalar_lea.vmem %s4, %s927
        %p929 = scmp.lt.s32.totalorder %s41, 1
        %s930 = scalar_select %p929, %s41, 1
        %s931 = scalar_lea.vmem %s6, %s930
        %p932 = scmp.lt.s32.totalorder %s41, 1
        %s933 = scalar_select %p932, %s41, 1
        %s934 = scalar_lea.vmem %s8, %s933
        %p935 = scmp.lt.s32.totalorder %s41, 1
        %s936 = scalar_select %p935, %s41, 1
        %s937 = scalar_lea.vmem %s10, %s936
        %p938 = scmp.lt.s32.totalorder %s41, 1
        %s939 = scalar_select %p938, %s41, 1
        %s940 = scalar_lea.vmem %s11, %s939
        %p941 = scmp.lt.s32.totalorder %s41, 1
        %s942 = scalar_select %p941, %s41, 1
        %s943 = scalar_lea.vmem %s12, %s942
        %p944 = scmp.lt.s32.totalorder %s41, 1
        %s945 = scalar_select %p944, %s41, 1
        %s946 = smul.addr %s945, 64
        %s947 = smul.addr %s946, 4
        %s948 = scalar_lea.vmem %s13, %s947
        %p949 = scmp.lt.s32.totalorder %s41, 1
        %s950 = scalar_select %p949, %s41, 1
        %s951 = smul.addr %s950, 4
        %s952 = scalar_lea.vmem %s14, %s951
        %p953 = scmp.lt.s32.totalorder %s41, 1
        %s954 = scalar_select %p953, %s41, 1
        %s955 = scalar_lea.vmem %s16, %s954
        %p956 = scmp.lt.s32.totalorder %s41, 1
        %s957 = scalar_select %p956, %s41, 1
        %s958 = scalar_lea.vmem %s17, %s957
        %p959 = scmp.lt.s32.totalorder %s41, 1
        %s960 = scalar_select %p959, %s41, 1
        %s961 = scalar_lea.vmem %s18, %s960
        %p963 = scmp.eq.s32.totalorder %s41, 0
        // Predicated region
        $region121: #{_bert_crf_apply.2} parent=103 // pred_check
          %p964 = pneg %p963
        $region122: #{_bert_crf_apply.2} parent=103 // pred_check_branch
          %966 = sbr.rel (%p964) target = $region124
        $region123: #{_bert_crf_apply.2} parent=103 // pred_region
          %v967 = vld [vmem:[%s0] sm:$0xff]
          %v968 = vld [vmem:[%s0 + $0x8] sm:$0xff]
          %v969 = vld [vmem:[%s0 + $0x10] sm:$0xff]
          %v970 = vld [vmem:[%s0 + $0x18] sm:$0xff]
          %v971 = vld [vmem:[%s1] sm:$0x1]
          %v972 = vld [vmem:[%s2] sm:$0x1]
          %973 = vadd.xlane.f32.xlu0 %v967
          %v974 = vpop.xlane.xlu0 %973
          %975 = vadd.xlane.f32.xlu0 %v968
          %v976 = vpop.xlane.xlu0 %975
          %977 = vadd.xlane.f32.xlu0 %v969
          %v978 = vpop.xlane.xlu0 %977
          %979 = vadd.xlane.f32.xlu0 %v970
          %v980 = vpop.xlane.xlu0 %979
          %v981 = vrcp.pop 128.0
          %v982 = vmul.f32 %v974, %v981
          %v983 = vmul.f32 %v976, %v981
          %v984 = vmul.f32 %v978, %v981
          %v985 = vmul.f32 %v980, %v981
          %v986 = vsub.f32 %v967, %v982
          %v987 = vsub.f32 %v968, %v983
          %v988 = vsub.f32 %v969, %v984
          %v989 = vsub.f32 %v970, %v985
          %v990 = vmul.f32 %v986, %v986
          %v991 = vmul.f32 %v987, %v987
          %v992 = vmul.f32 %v988, %v988
          %v993 = vmul.f32 %v989, %v989
          %994 = vadd.xlane.f32.xlu0 %v990
          %v995 = vpop.xlane.xlu0 %994
          %996 = vadd.xlane.f32.xlu0 %v991
          %v997 = vpop.xlane.xlu0 %996
          %998 = vadd.xlane.f32.xlu0 %v992
          %v999 = vpop.xlane.xlu0 %998
          %1000 = vadd.xlane.f32.xlu0 %v993
          %v1001 = vpop.xlane.xlu0 %1000
          %v1002 = vmul.f32 %v995, %v981
          %v1003 = vmul.f32 %v997, %v981
          %v1004 = vmul.f32 %v999, %v981
          %v1005 = vmul.f32 %v1001, %v981
          %v1006 = vadd.f32 %v1002, 1e-12
          %v1007 = vadd.f32 %v1003, 1e-12
          %v1008 = vadd.f32 %v1004, 1e-12
          %v1009 = vadd.f32 %v1005, 1e-12
          %v1010 = vrsqrt.pop %v1006
          %v1011 = vrsqrt.pop %v1007
          %v1012 = vrsqrt.pop %v1008
          %v1013 = vrsqrt.pop %v1009
          %v1014 = vmul.f32 %v986, %v1010
          %v1015 = vmul.f32 %v987, %v1011
          %v1016 = vmul.f32 %v988, %v1012
          %v1017 = vmul.f32 %v989, %v1013
          %v1019 = vlaneseq
          %v1020 = vshrl.u32 %v1019, 7
          %v1021 = vsub.s32 0, %v1020
          %v1022 = vrot.slane %v971, %v1021
          %v1024 = vmul.f32 %v1014, %v1022
          %v1025 = vmul.f32 %v1015, %v1022
          %v1026 = vmul.f32 %v1016, %v1022
          %v1027 = vmul.f32 %v1017, %v1022
          %v1029 = vlaneseq
          %v1030 = vshrl.u32 %v1029, 7
          %v1031 = vsub.s32 0, %v1030
          %v1032 = vrot.slane %v972, %v1031
          %v1034 = vadd.f32 %v1024, %v1032
          %v1035 = vadd.f32 %v1025, %v1032
          %v1036 = vadd.f32 %v1026, %v1032
          %v1037 = vadd.f32 %v1027, %v1032
          %1038 = vst [vmem:[#allocation2] sm:$0xff] %v1034
          %1039 = vst [vmem:[#allocation2 + $0x8] sm:$0xff] %v1035
          %1040 = vst [vmem:[#allocation2 + $0x10] sm:$0xff] %v1036
          %1041 = vst [vmem:[#allocation2 + $0x18] sm:$0xff] %v1037
        $region124: #{_bert_crf_apply.2} parent=103 // pred_fallthru
          _
        %v1042 = vld [vmem:[#allocation2] sm:$0xff]
        %v1043 = vld [vmem:[#allocation2 + $0x8] sm:$0xff]
        %v1044 = vld [vmem:[#allocation2 + $0x10] sm:$0xff]
        %v1045 = vld [vmem:[#allocation2 + $0x18] sm:$0xff]
        %v1046 = vpack.c.bf16 %v1043, %v1042
        %v1047 = vpack.c.bf16 %v1045, %v1044
        %v1048 = vld [vmem:[%s925] sm:$0xf]
        %v1049 = vld [vmem:[%s925 + $0x4] sm:$0xf]
        %v1050 = vld [vmem:[%s925 + $0x8] sm:$0xf]
        %v1051 = vld [vmem:[%s925 + $0xc] sm:$0xf]
        %v1052 = vld [vmem:[%s925 + $0x10] sm:$0xf]
        %v1053 = vld [vmem:[%s925 + $0x14] sm:$0xf]
        %v1054 = vld [vmem:[%s925 + $0x18] sm:$0xf]
        %v1055 = vld [vmem:[%s925 + $0x1c] sm:$0xf]
        %v1056 = vld [vmem:[%s925 + $0x20] sm:$0xf]
        %v1057 = vld [vmem:[%s925 + $0x24] sm:$0xf]
        %v1058 = vld [vmem:[%s925 + $0x28] sm:$0xf]
        %v1059 = vld [vmem:[%s925 + $0x2c] sm:$0xf]
        %v1060 = vld [vmem:[%s925 + $0x30] sm:$0xf]
        %v1061 = vld [vmem:[%s925 + $0x34] sm:$0xf]
        %v1062 = vld [vmem:[%s925 + $0x38] sm:$0xf]
        %v1063 = vld [vmem:[%s925 + $0x3c] sm:$0xf]
        %v1064 = vld [vmem:[%s928] sm:$0x1]
        %v1066 = vlaneseq
        %v1067 = vshrl.u32 %v1066, 7
        %v1068 = vsub.s32 0, %v1067
        %v1069 = vrot.slane %v1064, %v1068
        %v1087 = vunpack.c.l.b16 %v1048
        %v1088 = vunpack.c.l.b16 %v1049
        %v1089 = vunpack.c.l.b16 %v1050
        %v1090 = vunpack.c.l.b16 %v1051
        %v1091 = vunpack.c.l.b16 %v1052
        %v1092 = vunpack.c.l.b16 %v1053
        %v1093 = vunpack.c.l.b16 %v1054
        %v1094 = vunpack.c.l.b16 %v1055
        %v1095 = vunpack.c.l.b16 %v1056
        %v1096 = vunpack.c.l.b16 %v1057
        %v1097 = vunpack.c.l.b16 %v1058
        %v1098 = vunpack.c.l.b16 %v1059
        %v1099 = vunpack.c.l.b16 %v1060
        %v1100 = vunpack.c.l.b16 %v1061
        %v1101 = vunpack.c.l.b16 %v1062
        %v1102 = vunpack.c.l.b16 %v1063
        %v1103 = vpack.c.b16 %v1088, %v1087
        %v1104 = vpack.c.b16 %v1090, %v1089
        %v1105 = vpack.c.b16 %v1092, %v1091
        %v1106 = vpack.c.b16 %v1094, %v1093
        %v1107 = vpack.c.b16 %v1096, %v1095
        %v1108 = vpack.c.b16 %v1098, %v1097
        %v1109 = vpack.c.b16 %v1100, %v1099
        %v1110 = vpack.c.b16 %v1102, %v1101
        %1119 = vmatprep.subr.bf16.mxu0 0
        %1120 = vmatpush1.bf16.msra.mxu0 %v1103
        %1121 = vmatprep.subr.bf16.mxu0 0
        %1122 = vmatpush1.bf16.msra.mxu0 %v1104
        %1123 = vmatprep.subr.bf16.mxu0 0
        %1124 = vmatpush1.bf16.msra.mxu0 %v1105
        %1125 = vmatprep.subr.bf16.mxu0 0
        %1126 = vmatpush1.bf16.msra.mxu0 %v1106
        %1127 = vmatprep.subr.bf16.mxu0 0
        %1128 = vmatpush1.bf16.msra.mxu0 %v1107
        %1129 = vmatprep.subr.bf16.mxu0 0
        %1130 = vmatpush1.bf16.msra.mxu0 %v1108
        %1131 = vmatprep.subr.bf16.mxu0 0
        %1132 = vmatpush1.bf16.msra.mxu0 %v1109
        %1133 = vmatprep.subr.bf16.mxu0 0
        %1134 = vmatpush1.bf16.msra.mxu0 %v1110
        %1135 = vmatprep.subr.bf16.mxu0 0
        %1136 = vmatpush1.bf16.msra.mxu0 0
        %1137 = vmatprep.subr.bf16.mxu0 0
        %1138 = vmatpush1.bf16.msra.mxu0 0
        %1139 = vmatprep.subr.bf16.mxu0 0
        %1140 = vmatpush1.bf16.msra.mxu0 0
        %1141 = vmatprep.subr.bf16.mxu0 0
        %1142 = vmatpush1.bf16.msra.mxu0 0
        %1143 = vmatprep.subr.bf16.mxu0 0
        %1144 = vmatpush1.bf16.msra.mxu0 0
        %1145 = vmatprep.subr.bf16.mxu0 0
        %1146 = vmatpush1.bf16.msra.mxu0 0
        %1147 = vmatprep.subr.bf16.mxu0 0
        %1148 = vmatpush1.bf16.msra.mxu0 0
        %1149 = vmatprep.subr.bf16.mxu0 0
        %1150 = vmatpush1.bf16.msra.mxu0 0
        %1151 = vmatprep.mubr.bf16.mxu0 0
        %1152 = vmatmul.mubr.bf16.gmra.mrb[0].mxu0 %v1046
        %v1153 = vpop.f32.mrb[0].mxu0
        %v1154 = vadd.f32 %v1069, %v1153
        %v1155 = vpop.f32.mrb[0].mxu0
        %v1156 = vpop.f32.mrb[0].mxu0
        %v1157 = vadd.f32 %v1069, %v1156
        %v1158 = vpop.f32.mrb[0].mxu0
        %1159 = vmatprep.mubr.bf16.mxu0 0
        %1160 = vmatmul.mubr.bf16.gmra.mrb[0].mxu0 %v1047
        %v1161 = vpop.f32.mrb[0].mxu0
        %v1162 = vadd.f32 %v1069, %v1161
        %v1163 = vpop.f32.mrb[0].mxu0
        %v1164 = vpop.f32.mrb[0].mxu0
        %v1165 = vadd.f32 %v1069, %v1164
        %v1166 = vpop.f32.mrb[0].mxu0
        %1167 = vdwg.mxu0
        %v1168 = vld [vmem:[%s784] sm:$0xf]
        %v1169 = vld [vmem:[%s784 + $0x4] sm:$0xf]
        %v1170 = vld [vmem:[%s784 + $0x8] sm:$0xf]
        %v1171 = vld [vmem:[%s784 + $0xc] sm:$0xf]
        %v1172 = vld [vmem:[%s784 + $0x10] sm:$0xf]
        %v1173 = vld [vmem:[%s784 + $0x14] sm:$0xf]
        %v1174 = vld [vmem:[%s784 + $0x18] sm:$0xf]
        %v1175 = vld [vmem:[%s784 + $0x1c] sm:$0xf]
        %v1176 = vld [vmem:[%s784 + $0x20] sm:$0xf]
        %v1177 = vld [vmem:[%s784 + $0x24] sm:$0xf]
        %v1178 = vld [vmem:[%s784 + $0x28] sm:$0xf]
        %v1179 = vld [vmem:[%s784 + $0x2c] sm:$0xf]
        %v1180 = vld [vmem:[%s784 + $0x30] sm:$0xf]
        %v1181 = vld [vmem:[%s784 + $0x34] sm:$0xf]
        %v1182 = vld [vmem:[%s784 + $0x38] sm:$0xf]
        %v1183 = vld [vmem:[%s784 + $0x3c] sm:$0xf]
        %v1184 = vld [vmem:[%s931] sm:$0x1]
        %v1186 = vlaneseq
        %v1187 = vshrl.u32 %v1186, 7
        %v1188 = vsub.s32 0, %v1187
        %v1189 = vrot.slane %v1184, %v1188
        %v1207 = vunpack.c.l.b16 %v1168
        %v1208 = vunpack.c.l.b16 %v1169
        %v1209 = vunpack.c.l.b16 %v1170
        %v1210 = vunpack.c.l.b16 %v1171
        %v1211 = vunpack.c.l.b16 %v1172
        %v1212 = vunpack.c.l.b16 %v1173
        %v1213 = vunpack.c.l.b16 %v1174
        %v1214 = vunpack.c.l.b16 %v1175
        %v1215 = vunpack.c.l.b16 %v1176
        %v1216 = vunpack.c.l.b16 %v1177
        %v1217 = vunpack.c.l.b16 %v1178
        %v1218 = vunpack.c.l.b16 %v1179
        %v1219 = vunpack.c.l.b16 %v1180
        %v1220 = vunpack.c.l.b16 %v1181
        %v1221 = vunpack.c.l.b16 %v1182
        %v1222 = vunpack.c.l.b16 %v1183
        %v1223 = vpack.c.b16 %v1208, %v1207
        %v1224 = vpack.c.b16 %v1210, %v1209
        %v1225 = vpack.c.b16 %v1212, %v1211
        %v1226 = vpack.c.b16 %v1214, %v1213
        %v1227 = vpack.c.b16 %v1216, %v1215
        %v1228 = vpack.c.b16 %v1218, %v1217
        %v1229 = vpack.c.b16 %v1220, %v1219
        %v1230 = vpack.c.b16 %v1222, %v1221
        %1239 = vmatprep.subr.bf16.mxu0 0
        %1240 = vmatpush1.bf16.msra.mxu0 %v1223
        %1241 = vmatprep.subr.bf16.mxu0 0
        %1242 = vmatpush1.bf16.msra.mxu0 %v1224
        %1243 = vmatprep.subr.bf16.mxu0 0
        %1244 = vmatpush1.bf16.msra.mxu0 %v1225
        %1245 = vmatprep.subr.bf16.mxu0 0
        %1246 = vmatpush1.bf16.msra.mxu0 %v1226
        %1247 = vmatprep.subr.bf16.mxu0 0
        %1248 = vmatpush1.bf16.msra.mxu0 %v1227
        %1249 = vmatprep.subr.bf16.mxu0 0
        %1250 = vmatpush1.bf16.msra.mxu0 %v1228
        %1251 = vmatprep.subr.bf16.mxu0 0
        %1252 = vmatpush1.bf16.msra.mxu0 %v1229
        %1253 = vmatprep.subr.bf16.mxu0 0
        %1254 = vmatpush1.bf16.msra.mxu0 %v1230
        %1255 = vmatprep.subr.bf16.mxu0 0
        %1256 = vmatpush1.bf16.msra.mxu0 0
        %1257 = vmatprep.subr.bf16.mxu0 0
        %1258 = vmatpush1.bf16.msra.mxu0 0
        %1259 = vmatprep.subr.bf16.mxu0 0
        %1260 = vmatpush1.bf16.msra.mxu0 0
        %1261 = vmatprep.subr.bf16.mxu0 0
        %1262 = vmatpush1.bf16.msra.mxu0 0
        %1263 = vmatprep.subr.bf16.mxu0 0
        %1264 = vmatpush1.bf16.msra.mxu0 0
        %1265 = vmatprep.subr.bf16.mxu0 0
        %1266 = vmatpush1.bf16.msra.mxu0 0
        %1267 = vmatprep.subr.bf16.mxu0 0
        %1268 = vmatpush1.bf16.msra.mxu0 0
        %1269 = vmatprep.subr.bf16.mxu0 0
        %1270 = vmatpush1.bf16.msra.mxu0 0
        %1271 = vmatprep.mubr.bf16.mxu0 0
        %1272 = vmatmul.mubr.bf16.gmra.mrb[0].mxu0 %v1046
        %v1273 = vpop.f32.mrb[0].mxu0
        %v1274 = vadd.f32 %v1189, %v1273
        %v1275 = vpop.f32.mrb[0].mxu0
        %v1276 = vpop.f32.mrb[0].mxu0
        %v1277 = vadd.f32 %v1189, %v1276
        %v1278 = vpop.f32.mrb[0].mxu0
        %1279 = vmatprep.mubr.bf16.mxu0 0
        %1280 = vmatmul.mubr.bf16.gmra.mrb[0].mxu0 %v1047
        %v1281 = vpop.f32.mrb[0].mxu0
        %v1282 = vadd.f32 %v1189, %v1281
        %v1283 = vpop.f32.mrb[0].mxu0
        %v1284 = vpop.f32.mrb[0].mxu0
        %v1285 = vadd.f32 %v1189, %v1284
        %v1286 = vpop.f32.mrb[0].mxu0
        %1287 = vdwg.mxu0
        %v1288 = vld [vmem:[%s793] sm:$0xf]
        %v1289 = vld [vmem:[%s793 + $0x4] sm:$0xf]
        %v1290 = vld [vmem:[%s793 + $0x8] sm:$0xf]
        %v1291 = vld [vmem:[%s793 + $0xc] sm:$0xf]
        %v1292 = vld [vmem:[%s793 + $0x10] sm:$0xf]
        %v1293 = vld [vmem:[%s793 + $0x14] sm:$0xf]
        %v1294 = vld [vmem:[%s793 + $0x18] sm:$0xf]
        %v1295 = vld [vmem:[%s793 + $0x1c] sm:$0xf]
        %v1296 = vld [vmem:[%s793 + $0x20] sm:$0xf]
        %v1297 = vld [vmem:[%s793 + $0x24] sm:$0xf]
        %v1298 = vld [vmem:[%s793 + $0x28] sm:$0xf]
        %v1299 = vld [vmem:[%s793 + $0x2c] sm:$0xf]
        %v1300 = vld [vmem:[%s793 + $0x30] sm:$0xf]
        %v1301 = vld [vmem:[%s793 + $0x34] sm:$0xf]
        %v1302 = vld [vmem:[%s793 + $0x38] sm:$0xf]
        %v1303 = vld [vmem:[%s793 + $0x3c] sm:$0xf]
        %v1304 = vld [vmem:[%s934] sm:$0x1]
        %v1306 = vlaneseq
        %v1307 = vshrl.u32 %v1306, 7
        %v1308 = vsub.s32 0, %v1307
        %v1309 = vrot.slane %v1304, %v1308
        %v1327 = vunpack.c.l.b16 %v1288
        %v1328 = vunpack.c.l.b16 %v1289
        %v1329 = vunpack.c.l.b16 %v1290
        %v1330 = vunpack.c.l.b16 %v1291
        %v1331 = vunpack.c.l.b16 %v1292
        %v1332 = vunpack.c.l.b16 %v1293
        %v1333 = vunpack.c.l.b16 %v1294
        %v1334 = vunpack.c.l.b16 %v1295
        %v1335 = vunpack.c.l.b16 %v1296
        %v1336 = vunpack.c.l.b16 %v1297
        %v1337 = vunpack.c.l.b16 %v1298
        %v1338 = vunpack.c.l.b16 %v1299
        %v1339 = vunpack.c.l.b16 %v1300
        %v1340 = vunpack.c.l.b16 %v1301
        %v1341 = vunpack.c.l.b16 %v1302
        %v1342 = vunpack.c.l.b16 %v1303
        %v1343 = vpack.c.b16 %v1328, %v1327
        %v1344 = vpack.c.b16 %v1330, %v1329
        %v1345 = vpack.c.b16 %v1332, %v1331
        %v1346 = vpack.c.b16 %v1334, %v1333
        %v1347 = vpack.c.b16 %v1336, %v1335
        %v1348 = vpack.c.b16 %v1338, %v1337
        %v1349 = vpack.c.b16 %v1340, %v1339
        %v1350 = vpack.c.b16 %v1342, %v1341
        %1359 = vmatprep.subr.bf16.mxu0 0
        %1360 = vmatpush1.bf16.msra.mxu0 %v1343
        %1361 = vmatprep.subr.bf16.mxu0 0
        %1362 = vmatpush1.bf16.msra.mxu0 %v1344
        %1363 = vmatprep.subr.bf16.mxu0 0
        %1364 = vmatpush1.bf16.msra.mxu0 %v1345
        %1365 = vmatprep.subr.bf16.mxu0 0
        %1366 = vmatpush1.bf16.msra.mxu0 %v1346
        %1367 = vmatprep.subr.bf16.mxu0 0
        %1368 = vmatpush1.bf16.msra.mxu0 %v1347
        %1369 = vmatprep.subr.bf16.mxu0 0
        %1370 = vmatpush1.bf16.msra.mxu0 %v1348
        %1371 = vmatprep.subr.bf16.mxu0 0
        %1372 = vmatpush1.bf16.msra.mxu0 %v1349
        %1373 = vmatprep.subr.bf16.mxu0 0
        %1374 = vmatpush1.bf16.msra.mxu0 %v1350
        %1375 = vmatprep.subr.bf16.mxu0 0
        %1376 = vmatpush1.bf16.msra.mxu0 0
        %1377 = vmatprep.subr.bf16.mxu0 0
        %1378 = vmatpush1.bf16.msra.mxu0 0
        %1379 = vmatprep.subr.bf16.mxu0 0
        %1380 = vmatpush1.bf16.msra.mxu0 0
        %1381 = vmatprep.subr.bf16.mxu0 0
        %1382 = vmatpush1.bf16.msra.mxu0 0
        %1383 = vmatprep.subr.bf16.mxu0 0
        %1384 = vmatpush1.bf16.msra.mxu0 0
        %1385 = vmatprep.subr.bf16.mxu0 0
        %1386 = vmatpush1.bf16.msra.mxu0 0
        %1387 = vmatprep.subr.bf16.mxu0 0
        %1388 = vmatpush1.bf16.msra.mxu0 0
        %1389 = vmatprep.subr.bf16.mxu0 0
        %1390 = vmatpush1.bf16.msra.mxu0 0
        %1391 = vmatprep.mubr.bf16.mxu0 0
        %1392 = vmatmul.mubr.bf16.gmra.mrb[0].mxu0 %v1046
        %v1393 = vpop.f32.mrb[0].mxu0
        %v1394 = vadd.f32 %v1309, %v1393
        %v1395 = vpop.f32.mrb[0].mxu0
        %v1396 = vpop.f32.mrb[0].mxu0
        %v1397 = vadd.f32 %v1309, %v1396
        %v1398 = vpop.f32.mrb[0].mxu0
        %1399 = vmatprep.mubr.bf16.mxu0 0
        %1400 = vmatmul.mubr.bf16.gmra.mrb[0].mxu0 %v1047
        %v1401 = vpop.f32.mrb[0].mxu0
        %v1402 = vadd.f32 %v1309, %v1401
        %v1403 = vpop.f32.mrb[0].mxu0
        %v1404 = vpop.f32.mrb[0].mxu0
        %v1405 = vadd.f32 %v1309, %v1404
        %v1406 = vpop.f32.mrb[0].mxu0
        %1407 = vdwg.mxu0
        %1410 = vrot.lane.b32.xlu0 %v1154, 96
        %v1411 = vpop.permute.xlu0 %1410
        %1412 = vrot.lane.b32.xlu0 %v1157, 96
        %v1413 = vpop.permute.xlu0 %1412
        %1416 = vrot.lane.b32.xlu0 %v1154, 64
        %v1417 = vpop.permute.xlu0 %1416
        %1418 = vrot.lane.b32.xlu0 %v1157, 64
        %v1419 = vpop.permute.xlu0 %1418
        %1422 = vrot.lane.b32.xlu0 %v1154, 32
        %v1423 = vpop.permute.xlu0 %1422
        %1424 = vrot.lane.b32.xlu0 %v1157, 32
        %v1425 = vpop.permute.xlu0 %1424
        %v1428 = vpack.c.bf16 %v1157, %v1154
        %v1429 = vpack.c.bf16 %v1413, %v1411
        %v1430 = vpack.c.bf16 %v1419, %v1417
        %v1431 = vpack.c.bf16 %v1425, %v1423
        %1434 = vrot.lane.b32.xlu0 %v1274, 96
        %v1435 = vpop.permute.xlu0 %1434
        %1436 = vrot.lane.b32.xlu0 %v1277, 96
        %v1437 = vpop.permute.xlu0 %1436
        %1440 = vrot.lane.b32.xlu0 %v1274, 64
        %v1441 = vpop.permute.xlu0 %1440
        %1442 = vrot.lane.b32.xlu0 %v1277, 64
        %v1443 = vpop.permute.xlu0 %1442
        %1446 = vrot.lane.b32.xlu0 %v1274, 32
        %v1447 = vpop.permute.xlu0 %1446
        %1448 = vrot.lane.b32.xlu0 %v1277, 32
        %v1449 = vpop.permute.xlu0 %1448
        %v1452 = vpack.c.bf16 %v1277, %v1274
        %v1453 = vpack.c.bf16 %v1437, %v1435
        %v1454 = vpack.c.bf16 %v1443, %v1441
        %v1455 = vpack.c.bf16 %v1449, %v1447
        %1458 = vrot.lane.b32.xlu0 %v1394, 96
        %v1459 = vpop.permute.xlu0 %1458
        %1460 = vrot.lane.b32.xlu0 %v1397, 96
        %v1461 = vpop.permute.xlu0 %1460
        %1464 = vrot.lane.b32.xlu0 %v1394, 64
        %v1465 = vpop.permute.xlu0 %1464
        %1466 = vrot.lane.b32.xlu0 %v1397, 64
        %v1467 = vpop.permute.xlu0 %1466
        %1470 = vrot.lane.b32.xlu0 %v1394, 32
        %v1471 = vpop.permute.xlu0 %1470
        %1472 = vrot.lane.b32.xlu0 %v1397, 32
        %v1473 = vpop.permute.xlu0 %1472
        %v1476 = vpack.c.bf16 %v1397, %v1394
        %v1477 = vpack.c.bf16 %v1461, %v1459
        %v1478 = vpack.c.bf16 %v1467, %v1465
        %v1479 = vpack.c.bf16 %v1473, %v1471
        %vm1480 = vcmask 261120
        %v1482 = vsel %vm1480, %v1428, 0
        %v1485 = vsel %vm1480, %v1452, 0
        %1487 = vmatprep.subr.bf16.mxu0 0
        %1488 = vmatpush1.bf16.xpose.msra.mxu0 %v1485
        %1489 = vmatprep.subr.bf16.mxu0 0
        %1490 = vmatpush1.bf16.xpose.msra.mxu0 0
        %1491 = vmatprep.subr.bf16.mxu0 0
        %1492 = vmatpush1.bf16.xpose.msra.mxu0 0
        %1493 = vmatprep.subr.bf16.mxu0 0
        %1494 = vmatpush1.bf16.xpose.msra.mxu0 0
        %1495 = vmatprep.subr.bf16.mxu0 0
        %1496 = vmatpush1.bf16.xpose.msra.mxu0 0
        %1497 = vmatprep.subr.bf16.mxu0 0
        %1498 = vmatpush1.bf16.xpose.msra.mxu0 0
        %1499 = vmatprep.subr.bf16.mxu0 0
        %1500 = vmatpush1.bf16.xpose.msra.mxu0 0
        %1501 = vmatprep.subr.bf16.mxu0 0
        %1502 = vmatpush1.bf16.xpose.msra.mxu0 0
        %1503 = vmatprep.subr.bf16.mxu0 0
        %1504 = vmatpush1.bf16.xpose.msra.mxu0 0
        %1505 = vmatprep.subr.bf16.mxu0 0
        %1506 = vmatpush1.bf16.xpose.msra.mxu0 0
        %1507 = vmatprep.subr.bf16.mxu0 0
        %1508 = vmatpush1.bf16.xpose.msra.mxu0 0
        %1509 = vmatprep.subr.bf16.mxu0 0
        %1510 = vmatpush1.bf16.xpose.msra.mxu0 0
        %1511 = vmatprep.subr.bf16.mxu0 0
        %1512 = vmatpush1.bf16.xpose.msra.mxu0 0
        %1513 = vmatprep.subr.bf16.mxu0 0
        %1514 = vmatpush1.bf16.xpose.msra.mxu0 0
        %1515 = vmatprep.subr.bf16.mxu0 0
        %1516 = vmatpush1.bf16.xpose.msra.mxu0 0
        %1517 = vmatprep.subr.bf16.mxu0 0
        %1518 = vmatpush1.bf16.xpose.msra.mxu0 0
        %1519 = vmatprep.mubr.bf16.mxu0 0
        %1520 = vmatmul.mubr.bf16.gmra.mrb[0].mxu0 %v1482
        %v1521 = vpop.f32.mrb[0].mxu0
        %v1522 = vadd.f32 0.0, %v1521
        %v1523 = vpop.f32.mrb[0].mxu0
        %v1524 = vpop.f32.mrb[0].mxu0
        %v1525 = vadd.f32 0.0, %v1524
        %v1526 = vpop.f32.mrb[0].mxu0
        %1527 = vdwg.mxu0
        %v1529 = vsel %vm1480, %v1429, 0
        %v1532 = vsel %vm1480, %v1453, 0
        %1534 = vmatprep.subr.bf16.mxu0 0
        %1535 = vmatpush1.bf16.xpose.msra.mxu0 %v1532
        %1536 = vmatprep.subr.bf16.mxu0 0
        %1537 = vmatpush1.bf16.xpose.msra.mxu0 0
        %1538 = vmatprep.subr.bf16.mxu0 0
        %1539 = vmatpush1.bf16.xpose.msra.mxu0 0
        %1540 = vmatprep.subr.bf16.mxu0 0
        %1541 = vmatpush1.bf16.xpose.msra.mxu0 0
        %1542 = vmatprep.subr.bf16.mxu0 0
        %1543 = vmatpush1.bf16.xpose.msra.mxu0 0
        %1544 = vmatprep.subr.bf16.mxu0 0
        %1545 = vmatpush1.bf16.xpose.msra.mxu0 0
        %1546 = vmatprep.subr.bf16.mxu0 0
        %1547 = vmatpush1.bf16.xpose.msra.mxu0 0
        %1548 = vmatprep.subr.bf16.mxu0 0
        %1549 = vmatpush1.bf16.xpose.msra.mxu0 0
        %1550 = vmatprep.subr.bf16.mxu0 0
        %1551 = vmatpush1.bf16.xpose.msra.mxu0 0
        %1552 = vmatprep.subr.bf16.mxu0 0
        %1553 = vmatpush1.bf16.xpose.msra.mxu0 0
        %1554 = vmatprep.subr.bf16.mxu0 0
        %1555 = vmatpush1.bf16.xpose.msra.mxu0 0
        %1556 = vmatprep.subr.bf16.mxu0 0
        %1557 = vmatpush1.bf16.xpose.msra.mxu0 0
        %1558 = vmatprep.subr.bf16.mxu0 0
        %1559 = vmatpush1.bf16.xpose.msra.mxu0 0
        %1560 = vmatprep.subr.bf16.mxu0 0
        %1561 = vmatpush1.bf16.xpose.msra.mxu0 0
        %1562 = vmatprep.subr.bf16.mxu0 0
        %1563 = vmatpush1.bf16.xpose.msra.mxu0 0
        %1564 = vmatprep.subr.bf16.mxu0 0
        %1565 = vmatpush1.bf16.xpose.msra.mxu0 0
        %1566 = vmatprep.mubr.bf16.mxu0 0
        %1567 = vmatmul.mubr.bf16.gmra.mrb[0].mxu0 %v1529
        %v1568 = vpop.f32.mrb[0].mxu0
        %v1569 = vadd.f32 0.0, %v1568
        %v1570 = vpop.f32.mrb[0].mxu0
        %v1571 = vpop.f32.mrb[0].mxu0
        %v1572 = vadd.f32 0.0, %v1571
        %v1573 = vpop.f32.mrb[0].mxu0
        %1574 = vdwg.mxu0
        %v1576 = vsel %vm1480, %v1430, 0
        %v1579 = vsel %vm1480, %v1454, 0
        %1581 = vmatprep.subr.bf16.mxu0 0
        %1582 = vmatpush1.bf16.xpose.msra.mxu0 %v1579
        %1583 = vmatprep.subr.bf16.mxu0 0
        %1584 = vmatpush1.bf16.xpose.msra.mxu0 0
        %1585 = vmatprep.subr.bf16.mxu0 0
        %1586 = vmatpush1.bf16.xpose.msra.mxu0 0
        %1587 = vmatprep.subr.bf16.mxu0 0
        %1588 = vmatpush1.bf16.xpose.msra.mxu0 0
        %1589 = vmatprep.subr.bf16.mxu0 0
        %1590 = vmatpush1.bf16.xpose.msra.mxu0 0
        %1591 = vmatprep.subr.bf16.mxu0 0
        %1592 = vmatpush1.bf16.xpose.msra.mxu0 0
        %1593 = vmatprep.subr.bf16.mxu0 0
        %1594 = vmatpush1.bf16.xpose.msra.mxu0 0
        %1595 = vmatprep.subr.bf16.mxu0 0
        %1596 = vmatpush1.bf16.xpose.msra.mxu0 0
        %1597 = vmatprep.subr.bf16.mxu0 0
        %1598 = vmatpush1.bf16.xpose.msra.mxu0 0
        %1599 = vmatprep.subr.bf16.mxu0 0
        %1600 = vmatpush1.bf16.xpose.msra.mxu0 0
        %1601 = vmatprep.subr.bf16.mxu0 0
        %1602 = vmatpush1.bf16.xpose.msra.mxu0 0
        %1603 = vmatprep.subr.bf16.mxu0 0
        %1604 = vmatpush1.bf16.xpose.msra.mxu0 0
        %1605 = vmatprep.subr.bf16.mxu0 0
        %1606 = vmatpush1.bf16.xpose.msra.mxu0 0
        %1607 = vmatprep.subr.bf16.mxu0 0
        %1608 = vmatpush1.bf16.xpose.msra.mxu0 0
        %1609 = vmatprep.subr.bf16.mxu0 0
        %1610 = vmatpush1.bf16.xpose.msra.mxu0 0
        %1611 = vmatprep.subr.bf16.mxu0 0
        %1612 = vmatpush1.bf16.xpose.msra.mxu0 0
        %1613 = vmatprep.mubr.bf16.mxu0 0
        %1614 = vmatmul.mubr.bf16.gmra.mrb[0].mxu0 %v1576
        %v1615 = vpop.f32.mrb[0].mxu0
        %v1616 = vadd.f32 0.0, %v1615
        %v1617 = vpop.f32.mrb[0].mxu0
        %v1618 = vpop.f32.mrb[0].mxu0
        %v1619 = vadd.f32 0.0, %v1618
        %v1620 = vpop.f32.mrb[0].mxu0
        %1621 = vdwg.mxu0
        %v1623 = vsel %vm1480, %v1431, 0
        %v1626 = vsel %vm1480, %v1455, 0
        %1628 = vmatprep.subr.bf16.mxu0 0
        %1629 = vmatpush1.bf16.xpose.msra.mxu0 %v1626
        %1630 = vmatprep.subr.bf16.mxu0 0
        %1631 = vmatpush1.bf16.xpose.msra.mxu0 0
        %1632 = vmatprep.subr.bf16.mxu0 0
        %1633 = vmatpush1.bf16.xpose.msra.mxu0 0
        %1634 = vmatprep.subr.bf16.mxu0 0
        %1635 = vmatpush1.bf16.xpose.msra.mxu0 0
        %1636 = vmatprep.subr.bf16.mxu0 0
        %1637 = vmatpush1.bf16.xpose.msra.mxu0 0
        %1638 = vmatprep.subr.bf16.mxu0 0
        %1639 = vmatpush1.bf16.xpose.msra.mxu0 0
        %1640 = vmatprep.subr.bf16.mxu0 0
        %1641 = vmatpush1.bf16.xpose.msra.mxu0 0
        %1642 = vmatprep.subr.bf16.mxu0 0
        %1643 = vmatpush1.bf16.xpose.msra.mxu0 0
        %1644 = vmatprep.subr.bf16.mxu0 0
        %1645 = vmatpush1.bf16.xpose.msra.mxu0 0
        %1646 = vmatprep.subr.bf16.mxu0 0
        %1647 = vmatpush1.bf16.xpose.msra.mxu0 0
        %1648 = vmatprep.subr.bf16.mxu0 0
        %1649 = vmatpush1.bf16.xpose.msra.mxu0 0
        %1650 = vmatprep.subr.bf16.mxu0 0
        %1651 = vmatpush1.bf16.xpose.msra.mxu0 0
        %1652 = vmatprep.subr.bf16.mxu0 0
        %1653 = vmatpush1.bf16.xpose.msra.mxu0 0
        %1654 = vmatprep.subr.bf16.mxu0 0
        %1655 = vmatpush1.bf16.xpose.msra.mxu0 0
        %1656 = vmatprep.subr.bf16.mxu0 0
        %1657 = vmatpush1.bf16.xpose.msra.mxu0 0
        %1658 = vmatprep.subr.bf16.mxu0 0
        %1659 = vmatpush1.bf16.xpose.msra.mxu0 0
        %1660 = vmatprep.mubr.bf16.mxu0 0
        %1661 = vmatmul.mubr.bf16.gmra.mrb[0].mxu0 %v1623
        %v1662 = vpop.f32.mrb[0].mxu0
        %v1663 = vadd.f32 0.0, %v1662
        %v1664 = vpop.f32.mrb[0].mxu0
        %v1665 = vpop.f32.mrb[0].mxu0
        %v1666 = vadd.f32 0.0, %v1665
        %v1667 = vpop.f32.mrb[0].mxu0
        %1668 = vdwg.mxu0
        %v1669 = vmul.f32 %v1522, 0.17677669
        %v1670 = vmul.f32 %v1525, 0.17677669
        %v1671 = vmul.f32 %v1569, 0.17677669
        %v1672 = vmul.f32 %v1572, 0.17677669
        %v1673 = vmul.f32 %v1616, 0.17677669
        %v1674 = vmul.f32 %v1619, 0.17677669
        %v1675 = vmul.f32 %v1663, 0.17677669
        %v1676 = vmul.f32 %v1666, 0.17677669
        %vm1677 = vcmask 130048
        %v1678 = vsel %vm1677, %v1669, -inf
        %1679 = vmax.xlane.f32.xlu0 %v1678
        %v1680 = vpop.xlane.xlu0 %1679
        %v1681 = vsel %vm1677, %v1670, -inf
        %1682 = vmax.xlane.f32.xlu0 %v1681
        %v1683 = vpop.xlane.xlu0 %1682
        %v1684 = vsel %vm1677, %v1671, -inf
        %1685 = vmax.xlane.f32.xlu0 %v1684
        %v1686 = vpop.xlane.xlu0 %1685
        %v1687 = vsel %vm1677, %v1672, -inf
        %1688 = vmax.xlane.f32.xlu0 %v1687
        %v1689 = vpop.xlane.xlu0 %1688
        %v1690 = vsel %vm1677, %v1673, -inf
        %1691 = vmax.xlane.f32.xlu0 %v1690
        %v1692 = vpop.xlane.xlu0 %1691
        %v1693 = vsel %vm1677, %v1674, -inf
        %1694 = vmax.xlane.f32.xlu0 %v1693
        %v1695 = vpop.xlane.xlu0 %1694
        %v1696 = vsel %vm1677, %v1675, -inf
        %1697 = vmax.xlane.f32.xlu0 %v1696
        %v1698 = vpop.xlane.xlu0 %1697
        %v1699 = vsel %vm1677, %v1676, -inf
        %1700 = vmax.xlane.f32.xlu0 %v1699
        %v1701 = vpop.xlane.xlu0 %1700
        %v1702 = vsub.f32 %v1669, %v1680
        %v1703 = vsub.f32 %v1670, %v1683
        %v1704 = vsub.f32 %v1671, %v1686
        %v1705 = vsub.f32 %v1672, %v1689
        %v1706 = vsub.f32 %v1673, %v1692
        %v1707 = vsub.f32 %v1674, %v1695
        %v1708 = vsub.f32 %v1675, %v1698
        %v1709 = vsub.f32 %v1676, %v1701
        %v1710 = vmul.f32 %v1702, 1.442695
        %v1711 = vpow.pop %v1710
        %v1712 = vmul.f32 %v1703, 1.442695
        %v1713 = vpow.pop %v1712
        %v1714 = vmul.f32 %v1704, 1.442695
        %v1715 = vpow.pop %v1714
        %v1716 = vmul.f32 %v1705, 1.442695
        %v1717 = vpow.pop %v1716
        %v1718 = vmul.f32 %v1706, 1.442695
        %v1719 = vpow.pop %v1718
        %v1720 = vmul.f32 %v1707, 1.442695
        %v1721 = vpow.pop %v1720
        %v1722 = vmul.f32 %v1708, 1.442695
        %v1723 = vpow.pop %v1722
        %v1724 = vmul.f32 %v1709, 1.442695
        %v1725 = vpow.pop %v1724
        %v1726 = vsel %vm1677, %v1711, 0.0
        %1727 = vadd.xlane.f32.xlu0 %v1726
        %v1728 = vpop.xlane.xlu0 %1727
        %v1729 = vsel %vm1677, %v1713, 0.0
        %1730 = vadd.xlane.f32.xlu0 %v1729
        %v1731 = vpop.xlane.xlu0 %1730
        %v1732 = vsel %vm1677, %v1715, 0.0
        %1733 = vadd.xlane.f32.xlu0 %v1732
        %v1734 = vpop.xlane.xlu0 %1733
        %v1735 = vsel %vm1677, %v1717, 0.0
        %1736 = vadd.xlane.f32.xlu0 %v1735
        %v1737 = vpop.xlane.xlu0 %1736
        %v1738 = vsel %vm1677, %v1719, 0.0
        %1739 = vadd.xlane.f32.xlu0 %v1738
        %v1740 = vpop.xlane.xlu0 %1739
        %v1741 = vsel %vm1677, %v1721, 0.0
        %1742 = vadd.xlane.f32.xlu0 %v1741
        %v1743 = vpop.xlane.xlu0 %1742
        %v1744 = vsel %vm1677, %v1723, 0.0
        %1745 = vadd.xlane.f32.xlu0 %v1744
        %v1746 = vpop.xlane.xlu0 %1745
        %v1747 = vsel %vm1677, %v1725, 0.0
        %1748 = vadd.xlane.f32.xlu0 %v1747
        %v1749 = vpop.xlane.xlu0 %1748
        %v1750 = vrcp.pop %v1728
        %v1751 = vrcp.pop %v1731
        %v1752 = vrcp.pop %v1734
        %v1753 = vrcp.pop %v1737
        %v1754 = vrcp.pop %v1740
        %v1755 = vrcp.pop %v1743
        %v1756 = vrcp.pop %v1746
        %v1757 = vrcp.pop %v1749
        %v1758 = vmul.f32 %v1711, %v1750
        %v1759 = vmul.f32 %v1713, %v1751
        %v1760 = vmul.f32 %v1715, %v1752
        %v1761 = vmul.f32 %v1717, %v1753
        %v1762 = vmul.f32 %v1719, %v1754
        %v1763 = vmul.f32 %v1721, %v1755
        %v1764 = vmul.f32 %v1723, %v1756
        %v1765 = vmul.f32 %v1725, %v1757
        %v1766 = vpack.c.bf16 %v1759, %v1758
        %v1767 = vpack.c.bf16 %v1761, %v1760
        %v1768 = vpack.c.bf16 %v1763, %v1762
        %v1769 = vpack.c.bf16 %v1765, %v1764
        %v1771 = vsel %vm1677, %v1766, 0
        %1773 = vmatprep.subr.bf16.mxu0 0
        %1774 = vmatpush1.bf16.msra.mxu0 %v1476
        %1775 = vmatprep.subr.bf16.mxu0 0
        %1776 = vmatpush1.bf16.msra.mxu0 0
        %1777 = vmatprep.subr.bf16.mxu0 0
        %1778 = vmatpush1.bf16.msra.mxu0 0
        %1779 = vmatprep.subr.bf16.mxu0 0
        %1780 = vmatpush1.bf16.msra.mxu0 0
        %1781 = vmatprep.subr.bf16.mxu0 0
        %1782 = vmatpush1.bf16.msra.mxu0 0
        %1783 = vmatprep.subr.bf16.mxu0 0
        %1784 = vmatpush1.bf16.msra.mxu0 0
        %1785 = vmatprep.subr.bf16.mxu0 0
        %1786 = vmatpush1.bf16.msra.mxu0 0
        %1787 = vmatprep.subr.bf16.mxu0 0
        %1788 = vmatpush1.bf16.msra.mxu0 0
        %1789 = vmatprep.subr.bf16.mxu0 0
        %1790 = vmatpush1.bf16.msra.mxu0 0
        %1791 = vmatprep.subr.bf16.mxu0 0
        %1792 = vmatpush1.bf16.msra.mxu0 0
        %1793 = vmatprep.subr.bf16.mxu0 0
        %1794 = vmatpush1.bf16.msra.mxu0 0
        %1795 = vmatprep.subr.bf16.mxu0 0
        %1796 = vmatpush1.bf16.msra.mxu0 0
        %1797 = vmatprep.subr.bf16.mxu0 0
        %1798 = vmatpush1.bf16.msra.mxu0 0
        %1799 = vmatprep.subr.bf16.mxu0 0
        %1800 = vmatpush1.bf16.msra.mxu0 0
        %1801 = vmatprep.subr.bf16.mxu0 0
        %1802 = vmatpush1.bf16.msra.mxu0 0
        %1803 = vmatprep.subr.bf16.mxu0 0
        %1804 = vmatpush1.bf16.msra.mxu0 0
        %1805 = vmatprep.mubr.bf16.mxu0 0
        %1806 = vmatmul.mubr.bf16.gmra.mrb[0].mxu0 %v1771
        %v1807 = vpop.f32.mrb[0].mxu0
        %v1808 = vadd.f32 0.0, %v1807
        %v1809 = vpop.f32.mrb[0].mxu0
        %v1810 = vpop.f32.mrb[0].mxu0
        %v1811 = vadd.f32 0.0, %v1810
        %v1812 = vpop.f32.mrb[0].mxu0
        %1813 = vdwg.mxu0
        %v1815 = vsel %vm1677, %v1767, 0
        %1817 = vmatprep.subr.bf16.mxu0 0
        %1818 = vmatpush1.bf16.msra.mxu0 %v1477
        %1819 = vmatprep.subr.bf16.mxu0 0
        %1820 = vmatpush1.bf16.msra.mxu0 0
        %1821 = vmatprep.subr.bf16.mxu0 0
        %1822 = vmatpush1.bf16.msra.mxu0 0
        %1823 = vmatprep.subr.bf16.mxu0 0
        %1824 = vmatpush1.bf16.msra.mxu0 0
        %1825 = vmatprep.subr.bf16.mxu0 0
        %1826 = vmatpush1.bf16.msra.mxu0 0
        %1827 = vmatprep.subr.bf16.mxu0 0
        %1828 = vmatpush1.bf16.msra.mxu0 0
        %1829 = vmatprep.subr.bf16.mxu0 0
        %1830 = vmatpush1.bf16.msra.mxu0 0
        %1831 = vmatprep.subr.bf16.mxu0 0
        %1832 = vmatpush1.bf16.msra.mxu0 0
        %1833 = vmatprep.subr.bf16.mxu0 0
        %1834 = vmatpush1.bf16.msra.mxu0 0
        %1835 = vmatprep.subr.bf16.mxu0 0
        %1836 = vmatpush1.bf16.msra.mxu0 0
        %1837 = vmatprep.subr.bf16.mxu0 0
        %1838 = vmatpush1.bf16.msra.mxu0 0
        %1839 = vmatprep.subr.bf16.mxu0 0
        %1840 = vmatpush1.bf16.msra.mxu0 0
        %1841 = vmatprep.subr.bf16.mxu0 0
        %1842 = vmatpush1.bf16.msra.mxu0 0
        %1843 = vmatprep.subr.bf16.mxu0 0
        %1844 = vmatpush1.bf16.msra.mxu0 0
        %1845 = vmatprep.subr.bf16.mxu0 0
        %1846 = vmatpush1.bf16.msra.mxu0 0
        %1847 = vmatprep.subr.bf16.mxu0 0
        %1848 = vmatpush1.bf16.msra.mxu0 0
        %1849 = vmatprep.mubr.bf16.mxu0 0
        %1850 = vmatmul.mubr.bf16.gmra.mrb[0].mxu0 %v1815
        %v1851 = vpop.f32.mrb[0].mxu0
        %v1852 = vadd.f32 0.0, %v1851
        %v1853 = vpop.f32.mrb[0].mxu0
        %v1854 = vpop.f32.mrb[0].mxu0
        %v1855 = vadd.f32 0.0, %v1854
        %v1856 = vpop.f32.mrb[0].mxu0
        %1857 = vdwg.mxu0
        %v1859 = vsel %vm1677, %v1768, 0
        %1861 = vmatprep.subr.bf16.mxu0 0
        %1862 = vmatpush1.bf16.msra.mxu0 %v1478
        %1863 = vmatprep.subr.bf16.mxu0 0
        %1864 = vmatpush1.bf16.msra.mxu0 0
        %1865 = vmatprep.subr.bf16.mxu0 0
        %1866 = vmatpush1.bf16.msra.mxu0 0
        %1867 = vmatprep.subr.bf16.mxu0 0
        %1868 = vmatpush1.bf16.msra.mxu0 0
        %1869 = vmatprep.subr.bf16.mxu0 0
        %1870 = vmatpush1.bf16.msra.mxu0 0
        %1871 = vmatprep.subr.bf16.mxu0 0
        %1872 = vmatpush1.bf16.msra.mxu0 0
        %1873 = vmatprep.subr.bf16.mxu0 0
        %1874 = vmatpush1.bf16.msra.mxu0 0
        %1875 = vmatprep.subr.bf16.mxu0 0
        %1876 = vmatpush1.bf16.msra.mxu0 0
        %1877 = vmatprep.subr.bf16.mxu0 0
        %1878 = vmatpush1.bf16.msra.mxu0 0
        %1879 = vmatprep.subr.bf16.mxu0 0
        %1880 = vmatpush1.bf16.msra.mxu0 0
        %1881 = vmatprep.subr.bf16.mxu0 0
        %1882 = vmatpush1.bf16.msra.mxu0 0
        %1883 = vmatprep.subr.bf16.mxu0 0
        %1884 = vmatpush1.bf16.msra.mxu0 0
        %1885 = vmatprep.subr.bf16.mxu0 0
        %1886 = vmatpush1.bf16.msra.mxu0 0
        %1887 = vmatprep.subr.bf16.mxu0 0
        %1888 = vmatpush1.bf16.msra.mxu0 0
        %1889 = vmatprep.subr.bf16.mxu0 0
        %1890 = vmatpush1.bf16.msra.mxu0 0
        %1891 = vmatprep.subr.bf16.mxu0 0
        %1892 = vmatpush1.bf16.msra.mxu0 0
        %1893 = vmatprep.mubr.bf16.mxu0 0
        %1894 = vmatmul.mubr.bf16.gmra.mrb[0].mxu0 %v1859
        %v1895 = vpop.f32.mrb[0].mxu0
        %v1896 = vadd.f32 0.0, %v1895
        %v1897 = vpop.f32.mrb[0].mxu0
        %v1898 = vpop.f32.mrb[0].mxu0
        %v1899 = vadd.f32 0.0, %v1898
        %v1900 = vpop.f32.mrb[0].mxu0
        %1901 = vdwg.mxu0
        %v1903 = vsel %vm1677, %v1769, 0
        %1905 = vmatprep.subr.bf16.mxu0 0
        %1906 = vmatpush1.bf16.msra.mxu0 %v1479
        %1907 = vmatprep.subr.bf16.mxu0 0
        %1908 = vmatpush1.bf16.msra.mxu0 0
        %1909 = vmatprep.subr.bf16.mxu0 0
        %1910 = vmatpush1.bf16.msra.mxu0 0
        %1911 = vmatprep.subr.bf16.mxu0 0
        %1912 = vmatpush1.bf16.msra.mxu0 0
        %1913 = vmatprep.subr.bf16.mxu0 0
        %1914 = vmatpush1.bf16.msra.mxu0 0
        %1915 = vmatprep.subr.bf16.mxu0 0
        %1916 = vmatpush1.bf16.msra.mxu0 0
        %1917 = vmatprep.subr.bf16.mxu0 0
        %1918 = vmatpush1.bf16.msra.mxu0 0
        %1919 = vmatprep.subr.bf16.mxu0 0
        %1920 = vmatpush1.bf16.msra.mxu0 0
        %1921 = vmatprep.subr.bf16.mxu0 0
        %1922 = vmatpush1.bf16.msra.mxu0 0
        %1923 = vmatprep.subr.bf16.mxu0 0
        %1924 = vmatpush1.bf16.msra.mxu0 0
        %1925 = vmatprep.subr.bf16.mxu0 0
        %1926 = vmatpush1.bf16.msra.mxu0 0
        %1927 = vmatprep.subr.bf16.mxu0 0
        %1928 = vmatpush1.bf16.msra.mxu0 0
        %1929 = vmatprep.subr.bf16.mxu0 0
        %1930 = vmatpush1.bf16.msra.mxu0 0
        %1931 = vmatprep.subr.bf16.mxu0 0
        %1932 = vmatpush1.bf16.msra.mxu0 0
        %1933 = vmatprep.subr.bf16.mxu0 0
        %1934 = vmatpush1.bf16.msra.mxu0 0
        %1935 = vmatprep.subr.bf16.mxu0 0
        %1936 = vmatpush1.bf16.msra.mxu0 0
        %1937 = vmatprep.mubr.bf16.mxu0 0
        %1938 = vmatmul.mubr.bf16.gmra.mrb[0].mxu0 %v1903
        %v1939 = vpop.f32.mrb[0].mxu0
        %v1940 = vadd.f32 0.0, %v1939
        %v1941 = vpop.f32.mrb[0].mxu0
        %v1942 = vpop.f32.mrb[0].mxu0
        %v1943 = vadd.f32 0.0, %v1942
        %v1944 = vpop.f32.mrb[0].mxu0
        %1945 = vdwg.mxu0
        %1948 = vrot.lane.b32.xlu0 %v1852, 32
        %v1949 = vpop.permute.xlu0 %1948
        %1950 = vrot.lane.b32.xlu0 %v1855, 32
        %v1951 = vpop.permute.xlu0 %1950
        %1956 = vrot.lane.b32.xlu0 %v1896, 64
        %v1957 = vpop.permute.xlu0 %1956
        %1958 = vrot.lane.b32.xlu0 %v1899, 64
        %v1959 = vpop.permute.xlu0 %1958
        %1964 = vrot.lane.b32.xlu0 %v1940, 96
        %v1965 = vpop.permute.xlu0 %1964
        %1966 = vrot.lane.b32.xlu0 %v1943, 96
        %v1967 = vpop.permute.xlu0 %1966
        %v1970 = vsel %vm1480, %v1808, %v1949
        %v1971 = vsel %vm1480, %v1811, %v1951
        %vm1972 = vcmask 523264
        %v1973 = vsel %vm1972, %v1970, %v1957
        %v1974 = vsel %vm1972, %v1971, %v1959
        %vm1975 = vcmask 785408
        %v1976 = vsel %vm1975, %v1973, %v1965
        %v1977 = vsel %vm1975, %v1974, %v1967
        %1980 = vrot.lane.b32.xlu0 %v1162, 96
        %v1981 = vpop.permute.xlu0 %1980
        %1982 = vrot.lane.b32.xlu0 %v1165, 96
        %v1983 = vpop.permute.xlu0 %1982
        %1986 = vrot.lane.b32.xlu0 %v1162, 64
        %v1987 = vpop.permute.xlu0 %1986
        %1988 = vrot.lane.b32.xlu0 %v1165, 64
        %v1989 = vpop.permute.xlu0 %1988
        %1992 = vrot.lane.b32.xlu0 %v1162, 32
        %v1993 = vpop.permute.xlu0 %1992
        %1994 = vrot.lane.b32.xlu0 %v1165, 32
        %v1995 = vpop.permute.xlu0 %1994
        %v1998 = vpack.c.bf16 %v1165, %v1162
        %v1999 = vpack.c.bf16 %v1983, %v1981
        %v2000 = vpack.c.bf16 %v1989, %v1987
        %v2001 = vpack.c.bf16 %v1995, %v1993
        %2004 = vrot.lane.b32.xlu0 %v1282, 96
        %v2005 = vpop.permute.xlu0 %2004
        %2006 = vrot.lane.b32.xlu0 %v1285, 96
        %v2007 = vpop.permute.xlu0 %2006
        %2010 = vrot.lane.b32.xlu0 %v1282, 64
        %v2011 = vpop.permute.xlu0 %2010
        %2012 = vrot.lane.b32.xlu0 %v1285, 64
        %v2013 = vpop.permute.xlu0 %2012
        %2016 = vrot.lane.b32.xlu0 %v1282, 32
        %v2017 = vpop.permute.xlu0 %2016
        %2018 = vrot.lane.b32.xlu0 %v1285, 32
        %v2019 = vpop.permute.xlu0 %2018
        %v2022 = vpack.c.bf16 %v1285, %v1282
        %v2023 = vpack.c.bf16 %v2007, %v2005
        %v2024 = vpack.c.bf16 %v2013, %v2011
        %v2025 = vpack.c.bf16 %v2019, %v2017
        %2028 = vrot.lane.b32.xlu0 %v1402, 96
        %v2029 = vpop.permute.xlu0 %2028
        %2030 = vrot.lane.b32.xlu0 %v1405, 96
        %v2031 = vpop.permute.xlu0 %2030
        %2034 = vrot.lane.b32.xlu0 %v1402, 64
        %v2035 = vpop.permute.xlu0 %2034
        %2036 = vrot.lane.b32.xlu0 %v1405, 64
        %v2037 = vpop.permute.xlu0 %2036
        %2040 = vrot.lane.b32.xlu0 %v1402, 32
        %v2041 = vpop.permute.xlu0 %2040
        %2042 = vrot.lane.b32.xlu0 %v1405, 32
        %v2043 = vpop.permute.xlu0 %2042
        %v2046 = vpack.c.bf16 %v1405, %v1402
        %v2047 = vpack.c.bf16 %v2031, %v2029
        %v2048 = vpack.c.bf16 %v2037, %v2035
        %v2049 = vpack.c.bf16 %v2043, %v2041
        %v2051 = vsel %vm1480, %v1998, 0
        %v2054 = vsel %vm1480, %v2022, 0
        %2056 = vmatprep.subr.bf16.mxu0 0
        %2057 = vmatpush1.bf16.xpose.msra.mxu0 %v2054
        %2058 = vmatprep.subr.bf16.mxu0 0
        %2059 = vmatpush1.bf16.xpose.msra.mxu0 0
        %2060 = vmatprep.subr.bf16.mxu0 0
        %2061 = vmatpush1.bf16.xpose.msra.mxu0 0
        %2062 = vmatprep.subr.bf16.mxu0 0
        %2063 = vmatpush1.bf16.xpose.msra.mxu0 0
        %2064 = vmatprep.subr.bf16.mxu0 0
        %2065 = vmatpush1.bf16.xpose.msra.mxu0 0
        %2066 = vmatprep.subr.bf16.mxu0 0
        %2067 = vmatpush1.bf16.xpose.msra.mxu0 0
        %2068 = vmatprep.subr.bf16.mxu0 0
        %2069 = vmatpush1.bf16.xpose.msra.mxu0 0
        %2070 = vmatprep.subr.bf16.mxu0 0
        %2071 = vmatpush1.bf16.xpose.msra.mxu0 0
        %2072 = vmatprep.subr.bf16.mxu0 0
        %2073 = vmatpush1.bf16.xpose.msra.mxu0 0
        %2074 = vmatprep.subr.bf16.mxu0 0
        %2075 = vmatpush1.bf16.xpose.msra.mxu0 0
        %2076 = vmatprep.subr.bf16.mxu0 0
        %2077 = vmatpush1.bf16.xpose.msra.mxu0 0
        %2078 = vmatprep.subr.bf16.mxu0 0
        %2079 = vmatpush1.bf16.xpose.msra.mxu0 0
        %2080 = vmatprep.subr.bf16.mxu0 0
        %2081 = vmatpush1.bf16.xpose.msra.mxu0 0
        %2082 = vmatprep.subr.bf16.mxu0 0
        %2083 = vmatpush1.bf16.xpose.msra.mxu0 0
        %2084 = vmatprep.subr.bf16.mxu0 0
        %2085 = vmatpush1.bf16.xpose.msra.mxu0 0
        %2086 = vmatprep.subr.bf16.mxu0 0
        %2087 = vmatpush1.bf16.xpose.msra.mxu0 0
        %2088 = vmatprep.mubr.bf16.mxu0 0
        %2089 = vmatmul.mubr.bf16.gmra.mrb[0].mxu0 %v2051
        %v2090 = vpop.f32.mrb[0].mxu0
        %v2091 = vadd.f32 0.0, %v2090
        %v2092 = vpop.f32.mrb[0].mxu0
        %v2093 = vpop.f32.mrb[0].mxu0
        %v2094 = vadd.f32 0.0, %v2093
        %v2095 = vpop.f32.mrb[0].mxu0
        %2096 = vdwg.mxu0
        %v2098 = vsel %vm1480, %v1999, 0
        %v2101 = vsel %vm1480, %v2023, 0
        %2103 = vmatprep.subr.bf16.mxu0 0
        %2104 = vmatpush1.bf16.xpose.msra.mxu0 %v2101
        %2105 = vmatprep.subr.bf16.mxu0 0
        %2106 = vmatpush1.bf16.xpose.msra.mxu0 0
        %2107 = vmatprep.subr.bf16.mxu0 0
        %2108 = vmatpush1.bf16.xpose.msra.mxu0 0
        %2109 = vmatprep.subr.bf16.mxu0 0
        %2110 = vmatpush1.bf16.xpose.msra.mxu0 0
        %2111 = vmatprep.subr.bf16.mxu0 0
        %2112 = vmatpush1.bf16.xpose.msra.mxu0 0
        %2113 = vmatprep.subr.bf16.mxu0 0
        %2114 = vmatpush1.bf16.xpose.msra.mxu0 0
        %2115 = vmatprep.subr.bf16.mxu0 0
        %2116 = vmatpush1.bf16.xpose.msra.mxu0 0
        %2117 = vmatprep.subr.bf16.mxu0 0
        %2118 = vmatpush1.bf16.xpose.msra.mxu0 0
        %2119 = vmatprep.subr.bf16.mxu0 0
        %2120 = vmatpush1.bf16.xpose.msra.mxu0 0
        %2121 = vmatprep.subr.bf16.mxu0 0
        %2122 = vmatpush1.bf16.xpose.msra.mxu0 0
        %2123 = vmatprep.subr.bf16.mxu0 0
        %2124 = vmatpush1.bf16.xpose.msra.mxu0 0
        %2125 = vmatprep.subr.bf16.mxu0 0
        %2126 = vmatpush1.bf16.xpose.msra.mxu0 0
        %2127 = vmatprep.subr.bf16.mxu0 0
        %2128 = vmatpush1.bf16.xpose.msra.mxu0 0
        %2129 = vmatprep.subr.bf16.mxu0 0
        %2130 = vmatpush1.bf16.xpose.msra.mxu0 0
        %2131 = vmatprep.subr.bf16.mxu0 0
        %2132 = vmatpush1.bf16.xpose.msra.mxu0 0
        %2133 = vmatprep.subr.bf16.mxu0 0
        %2134 = vmatpush1.bf16.xpose.msra.mxu0 0
        %2135 = vmatprep.mubr.bf16.mxu0 0
        %2136 = vmatmul.mubr.bf16.gmra.mrb[0].mxu0 %v2098
        %v2137 = vpop.f32.mrb[0].mxu0
        %v2138 = vadd.f32 0.0, %v2137
        %v2139 = vpop.f32.mrb[0].mxu0
        %v2140 = vpop.f32.mrb[0].mxu0
        %v2141 = vadd.f32 0.0, %v2140
        %v2142 = vpop.f32.mrb[0].mxu0
        %2143 = vdwg.mxu0
        %v2145 = vsel %vm1480, %v2000, 0
        %v2148 = vsel %vm1480, %v2024, 0
        %2150 = vmatprep.subr.bf16.mxu0 0
        %2151 = vmatpush1.bf16.xpose.msra.mxu0 %v2148
        %2152 = vmatprep.subr.bf16.mxu0 0
        %2153 = vmatpush1.bf16.xpose.msra.mxu0 0
        %2154 = vmatprep.subr.bf16.mxu0 0
        %2155 = vmatpush1.bf16.xpose.msra.mxu0 0
        %2156 = vmatprep.subr.bf16.mxu0 0
        %2157 = vmatpush1.bf16.xpose.msra.mxu0 0
        %2158 = vmatprep.subr.bf16.mxu0 0
        %2159 = vmatpush1.bf16.xpose.msra.mxu0 0
        %2160 = vmatprep.subr.bf16.mxu0 0
        %2161 = vmatpush1.bf16.xpose.msra.mxu0 0
        %2162 = vmatprep.subr.bf16.mxu0 0
        %2163 = vmatpush1.bf16.xpose.msra.mxu0 0
        %2164 = vmatprep.subr.bf16.mxu0 0
        %2165 = vmatpush1.bf16.xpose.msra.mxu0 0
        %2166 = vmatprep.subr.bf16.mxu0 0
        %2167 = vmatpush1.bf16.xpose.msra.mxu0 0
        %2168 = vmatprep.subr.bf16.mxu0 0
        %2169 = vmatpush1.bf16.xpose.msra.mxu0 0
        %2170 = vmatprep.subr.bf16.mxu0 0
        %2171 = vmatpush1.bf16.xpose.msra.mxu0 0
        %2172 = vmatprep.subr.bf16.mxu0 0
        %2173 = vmatpush1.bf16.xpose.msra.mxu0 0
        %2174 = vmatprep.subr.bf16.mxu0 0
        %2175 = vmatpush1.bf16.xpose.msra.mxu0 0
        %2176 = vmatprep.subr.bf16.mxu0 0
        %2177 = vmatpush1.bf16.xpose.msra.mxu0 0
        %2178 = vmatprep.subr.bf16.mxu0 0
        %2179 = vmatpush1.bf16.xpose.msra.mxu0 0
        %2180 = vmatprep.subr.bf16.mxu0 0
        %2181 = vmatpush1.bf16.xpose.msra.mxu0 0
        %2182 = vmatprep.mubr.bf16.mxu0 0
        %2183 = vmatmul.mubr.bf16.gmra.mrb[0].mxu0 %v2145
        %v2184 = vpop.f32.mrb[0].mxu0
        %v2185 = vadd.f32 0.0, %v2184
        %v2186 = vpop.f32.mrb[0].mxu0
        %v2187 = vpop.f32.mrb[0].mxu0
        %v2188 = vadd.f32 0.0, %v2187
        %v2189 = vpop.f32.mrb[0].mxu0
        %2190 = vdwg.mxu0
        %v2192 = vsel %vm1480, %v2001, 0
        %v2195 = vsel %vm1480, %v2025, 0
        %2197 = vmatprep.subr.bf16.mxu0 0
        %2198 = vmatpush1.bf16.xpose.msra.mxu0 %v2195
        %2199 = vmatprep.subr.bf16.mxu0 0
        %2200 = vmatpush1.bf16.xpose.msra.mxu0 0
        %2201 = vmatprep.subr.bf16.mxu0 0
        %2202 = vmatpush1.bf16.xpose.msra.mxu0 0
        %2203 = vmatprep.subr.bf16.mxu0 0
        %2204 = vmatpush1.bf16.xpose.msra.mxu0 0
        %2205 = vmatprep.subr.bf16.mxu0 0
        %2206 = vmatpush1.bf16.xpose.msra.mxu0 0
        %2207 = vmatprep.subr.bf16.mxu0 0
        %2208 = vmatpush1.bf16.xpose.msra.mxu0 0
        %2209 = vmatprep.subr.bf16.mxu0 0
        %2210 = vmatpush1.bf16.xpose.msra.mxu0 0
        %2211 = vmatprep.subr.bf16.mxu0 0
        %2212 = vmatpush1.bf16.xpose.msra.mxu0 0
        %2213 = vmatprep.subr.bf16.mxu0 0
        %2214 = vmatpush1.bf16.xpose.msra.mxu0 0
        %2215 = vmatprep.subr.bf16.mxu0 0
        %2216 = vmatpush1.bf16.xpose.msra.mxu0 0
        %2217 = vmatprep.subr.bf16.mxu0 0
        %2218 = vmatpush1.bf16.xpose.msra.mxu0 0
        %2219 = vmatprep.subr.bf16.mxu0 0
        %2220 = vmatpush1.bf16.xpose.msra.mxu0 0
        %2221 = vmatprep.subr.bf16.mxu0 0
        %2222 = vmatpush1.bf16.xpose.msra.mxu0 0
        %2223 = vmatprep.subr.bf16.mxu0 0
        %2224 = vmatpush1.bf16.xpose.msra.mxu0 0
        %2225 = vmatprep.subr.bf16.mxu0 0
        %2226 = vmatpush1.bf16.xpose.msra.mxu0 0
        %2227 = vmatprep.subr.bf16.mxu0 0
        %2228 = vmatpush1.bf16.xpose.msra.mxu0 0
        %2229 = vmatprep.mubr.bf16.mxu0 0
        %2230 = vmatmul.mubr.bf16.gmra.mrb[0].mxu0 %v2192
        %v2231 = vpop.f32.mrb[0].mxu0
        %v2232 = vadd.f32 0.0, %v2231
        %v2233 = vpop.f32.mrb[0].mxu0
        %v2234 = vpop.f32.mrb[0].mxu0
        %v2235 = vadd.f32 0.0, %v2234
        %v2236 = vpop.f32.mrb[0].mxu0
        %2237 = vdwg.mxu0
        %v2238 = vmul.f32 %v2091, 0.17677669
        %v2239 = vmul.f32 %v2094, 0.17677669
        %v2240 = vmul.f32 %v2138, 0.17677669
        %v2241 = vmul.f32 %v2141, 0.17677669
        %v2242 = vmul.f32 %v2185, 0.17677669
        %v2243 = vmul.f32 %v2188, 0.17677669
        %v2244 = vmul.f32 %v2232, 0.17677669
        %v2245 = vmul.f32 %v2235, 0.17677669
        %v2246 = vsel %vm1677, %v2238, -inf
        %2247 = vmax.xlane.f32.xlu0 %v2246
        %v2248 = vpop.xlane.xlu0 %2247
        %v2249 = vsel %vm1677, %v2239, -inf
        %2250 = vmax.xlane.f32.xlu0 %v2249
        %v2251 = vpop.xlane.xlu0 %2250
        %v2252 = vsel %vm1677, %v2240, -inf
        %2253 = vmax.xlane.f32.xlu0 %v2252
        %v2254 = vpop.xlane.xlu0 %2253
        %v2255 = vsel %vm1677, %v2241, -inf
        %2256 = vmax.xlane.f32.xlu0 %v2255
        %v2257 = vpop.xlane.xlu0 %2256
        %v2258 = vsel %vm1677, %v2242, -inf
        %2259 = vmax.xlane.f32.xlu0 %v2258
        %v2260 = vpop.xlane.xlu0 %2259
        %v2261 = vsel %vm1677, %v2243, -inf
        %2262 = vmax.xlane.f32.xlu0 %v2261
        %v2263 = vpop.xlane.xlu0 %2262
        %v2264 = vsel %vm1677, %v2244, -inf
        %2265 = vmax.xlane.f32.xlu0 %v2264
        %v2266 = vpop.xlane.xlu0 %2265
        %v2267 = vsel %vm1677, %v2245, -inf
        %2268 = vmax.xlane.f32.xlu0 %v2267
        %v2269 = vpop.xlane.xlu0 %2268
        %v2270 = vsub.f32 %v2238, %v2248
        %v2271 = vsub.f32 %v2239, %v2251
        %v2272 = vsub.f32 %v2240, %v2254
        %v2273 = vsub.f32 %v2241, %v2257
        %v2274 = vsub.f32 %v2242, %v2260
        %v2275 = vsub.f32 %v2243, %v2263
        %v2276 = vsub.f32 %v2244, %v2266
        %v2277 = vsub.f32 %v2245, %v2269
        %v2278 = vmul.f32 %v2270, 1.442695
        %v2279 = vpow.pop %v2278
        %v2280 = vmul.f32 %v2271, 1.442695
        %v2281 = vpow.pop %v2280
        %v2282 = vmul.f32 %v2272, 1.442695
        %v2283 = vpow.pop %v2282
        %v2284 = vmul.f32 %v2273, 1.442695
        %v2285 = vpow.pop %v2284
        %v2286 = vmul.f32 %v2274, 1.442695
        %v2287 = vpow.pop %v2286
        %v2288 = vmul.f32 %v2275, 1.442695
        %v2289 = vpow.pop %v2288
        %v2290 = vmul.f32 %v2276, 1.442695
        %v2291 = vpow.pop %v2290
        %v2292 = vmul.f32 %v2277, 1.442695
        %v2293 = vpow.pop %v2292
        %v2294 = vsel %vm1677, %v2279, 0.0
        %2295 = vadd.xlane.f32.xlu0 %v2294
        %v2296 = vpop.xlane.xlu0 %2295
        %v2297 = vsel %vm1677, %v2281, 0.0
        %2298 = vadd.xlane.f32.xlu0 %v2297
        %v2299 = vpop.xlane.xlu0 %2298
        %v2300 = vsel %vm1677, %v2283, 0.0
        %2301 = vadd.xlane.f32.xlu0 %v2300
        %v2302 = vpop.xlane.xlu0 %2301
        %v2303 = vsel %vm1677, %v2285, 0.0
        %2304 = vadd.xlane.f32.xlu0 %v2303
        %v2305 = vpop.xlane.xlu0 %2304
        %v2306 = vsel %vm1677, %v2287, 0.0
        %2307 = vadd.xlane.f32.xlu0 %v2306
        %v2308 = vpop.xlane.xlu0 %2307
        %v2309 = vsel %vm1677, %v2289, 0.0
        %2310 = vadd.xlane.f32.xlu0 %v2309
        %v2311 = vpop.xlane.xlu0 %2310
        %v2312 = vsel %vm1677, %v2291, 0.0
        %2313 = vadd.xlane.f32.xlu0 %v2312
        %v2314 = vpop.xlane.xlu0 %2313
        %v2315 = vsel %vm1677, %v2293, 0.0
        %2316 = vadd.xlane.f32.xlu0 %v2315
        %v2317 = vpop.xlane.xlu0 %2316
        %v2318 = vrcp.pop %v2296
        %v2319 = vrcp.pop %v2299
        %v2320 = vrcp.pop %v2302
        %v2321 = vrcp.pop %v2305
        %v2322 = vrcp.pop %v2308
        %v2323 = vrcp.pop %v2311
        %v2324 = vrcp.pop %v2314
        %v2325 = vrcp.pop %v2317
        %v2326 = vmul.f32 %v2279, %v2318
        %v2327 = vmul.f32 %v2281, %v2319
        %v2328 = vmul.f32 %v2283, %v2320
        %v2329 = vmul.f32 %v2285, %v2321
        %v2330 = vmul.f32 %v2287, %v2322
        %v2331 = vmul.f32 %v2289, %v2323
        %v2332 = vmul.f32 %v2291, %v2324
        %v2333 = vmul.f32 %v2293, %v2325
        %v2334 = vpack.c.bf16 %v2327, %v2326
        %v2335 = vpack.c.bf16 %v2329, %v2328
        %v2336 = vpack.c.bf16 %v2331, %v2330
        %v2337 = vpack.c.bf16 %v2333, %v2332
        %v2339 = vsel %vm1677, %v2334, 0
        %2341 = vmatprep.subr.bf16.mxu0 0
        %2342 = vmatpush1.bf16.msra.mxu0 %v2046
        %2343 = vmatprep.subr.bf16.mxu0 0
        %2344 = vmatpush1.bf16.msra.mxu0 0
        %2345 = vmatprep.subr.bf16.mxu0 0
        %2346 = vmatpush1.bf16.msra.mxu0 0
        %2347 = vmatprep.subr.bf16.mxu0 0
        %2348 = vmatpush1.bf16.msra.mxu0 0
        %2349 = vmatprep.subr.bf16.mxu0 0
        %2350 = vmatpush1.bf16.msra.mxu0 0
        %2351 = vmatprep.subr.bf16.mxu0 0
        %2352 = vmatpush1.bf16.msra.mxu0 0
        %2353 = vmatprep.subr.bf16.mxu0 0
        %2354 = vmatpush1.bf16.msra.mxu0 0
        %2355 = vmatprep.subr.bf16.mxu0 0
        %2356 = vmatpush1.bf16.msra.mxu0 0
        %2357 = vmatprep.subr.bf16.mxu0 0
        %2358 = vmatpush1.bf16.msra.mxu0 0
        %2359 = vmatprep.subr.bf16.mxu0 0
        %2360 = vmatpush1.bf16.msra.mxu0 0
        %2361 = vmatprep.subr.bf16.mxu0 0
        %2362 = vmatpush1.bf16.msra.mxu0 0
        %2363 = vmatprep.subr.bf16.mxu0 0
        %2364 = vmatpush1.bf16.msra.mxu0 0
        %2365 = vmatprep.subr.bf16.mxu0 0
        %2366 = vmatpush1.bf16.msra.mxu0 0
        %2367 = vmatprep.subr.bf16.mxu0 0
        %2368 = vmatpush1.bf16.msra.mxu0 0
        %2369 = vmatprep.subr.bf16.mxu0 0
        %2370 = vmatpush1.bf16.msra.mxu0 0
        %2371 = vmatprep.subr.bf16.mxu0 0
        %2372 = vmatpush1.bf16.msra.mxu0 0
        %2373 = vmatprep.mubr.bf16.mxu0 0
        %2374 = vmatmul.mubr.bf16.gmra.mrb[0].mxu0 %v2339
        %v2375 = vpop.f32.mrb[0].mxu0
        %v2376 = vadd.f32 0.0, %v2375
        %v2377 = vpop.f32.mrb[0].mxu0
        %v2378 = vpop.f32.mrb[0].mxu0
        %v2379 = vadd.f32 0.0, %v2378
        %v2380 = vpop.f32.mrb[0].mxu0
        %2381 = vdwg.mxu0
        %v2383 = vsel %vm1677, %v2335, 0
        %2385 = vmatprep.subr.bf16.mxu0 0
        %2386 = vmatpush1.bf16.msra.mxu0 %v2047
        %2387 = vmatprep.subr.bf16.mxu0 0
        %2388 = vmatpush1.bf16.msra.mxu0 0
        %2389 = vmatprep.subr.bf16.mxu0 0
        %2390 = vmatpush1.bf16.msra.mxu0 0
        %2391 = vmatprep.subr.bf16.mxu0 0
        %2392 = vmatpush1.bf16.msra.mxu0 0
        %2393 = vmatprep.subr.bf16.mxu0 0
        %2394 = vmatpush1.bf16.msra.mxu0 0
        %2395 = vmatprep.subr.bf16.mxu0 0
        %2396 = vmatpush1.bf16.msra.mxu0 0
        %2397 = vmatprep.subr.bf16.mxu0 0
        %2398 = vmatpush1.bf16.msra.mxu0 0
        %2399 = vmatprep.subr.bf16.mxu0 0
        %2400 = vmatpush1.bf16.msra.mxu0 0
        %2401 = vmatprep.subr.bf16.mxu0 0
        %2402 = vmatpush1.bf16.msra.mxu0 0
        %2403 = vmatprep.subr.bf16.mxu0 0
        %2404 = vmatpush1.bf16.msra.mxu0 0
        %2405 = vmatprep.subr.bf16.mxu0 0
        %2406 = vmatpush1.bf16.msra.mxu0 0
        %2407 = vmatprep.subr.bf16.mxu0 0
        %2408 = vmatpush1.bf16.msra.mxu0 0
        %2409 = vmatprep.subr.bf16.mxu0 0
        %2410 = vmatpush1.bf16.msra.mxu0 0
        %2411 = vmatprep.subr.bf16.mxu0 0
        %2412 = vmatpush1.bf16.msra.mxu0 0
        %2413 = vmatprep.subr.bf16.mxu0 0
        %2414 = vmatpush1.bf16.msra.mxu0 0
        %2415 = vmatprep.subr.bf16.mxu0 0
        %2416 = vmatpush1.bf16.msra.mxu0 0
        %2417 = vmatprep.mubr.bf16.mxu0 0
        %2418 = vmatmul.mubr.bf16.gmra.mrb[0].mxu0 %v2383
        %v2419 = vpop.f32.mrb[0].mxu0
        %v2420 = vadd.f32 0.0, %v2419
        %v2421 = vpop.f32.mrb[0].mxu0
        %v2422 = vpop.f32.mrb[0].mxu0
        %v2423 = vadd.f32 0.0, %v2422
        %v2424 = vpop.f32.mrb[0].mxu0
        %2425 = vdwg.mxu0
        %v2427 = vsel %vm1677, %v2336, 0
        %2429 = vmatprep.subr.bf16.mxu0 0
        %2430 = vmatpush1.bf16.msra.mxu0 %v2048
        %2431 = vmatprep.subr.bf16.mxu0 0
        %2432 = vmatpush1.bf16.msra.mxu0 0
        %2433 = vmatprep.subr.bf16.mxu0 0
        %2434 = vmatpush1.bf16.msra.mxu0 0
        %2435 = vmatprep.subr.bf16.mxu0 0
        %2436 = vmatpush1.bf16.msra.mxu0 0
        %2437 = vmatprep.subr.bf16.mxu0 0
        %2438 = vmatpush1.bf16.msra.mxu0 0
        %2439 = vmatprep.subr.bf16.mxu0 0
        %2440 = vmatpush1.bf16.msra.mxu0 0
        %2441 = vmatprep.subr.bf16.mxu0 0
        %2442 = vmatpush1.bf16.msra.mxu0 0
        %2443 = vmatprep.subr.bf16.mxu0 0
        %2444 = vmatpush1.bf16.msra.mxu0 0
        %2445 = vmatprep.subr.bf16.mxu0 0
        %2446 = vmatpush1.bf16.msra.mxu0 0
        %2447 = vmatprep.subr.bf16.mxu0 0
        %2448 = vmatpush1.bf16.msra.mxu0 0
        %2449 = vmatprep.subr.bf16.mxu0 0
        %2450 = vmatpush1.bf16.msra.mxu0 0
        %2451 = vmatprep.subr.bf16.mxu0 0
        %2452 = vmatpush1.bf16.msra.mxu0 0
        %2453 = vmatprep.subr.bf16.mxu0 0
        %2454 = vmatpush1.bf16.msra.mxu0 0
        %2455 = vmatprep.subr.bf16.mxu0 0
        %2456 = vmatpush1.bf16.msra.mxu0 0
        %2457 = vmatprep.subr.bf16.mxu0 0
        %2458 = vmatpush1.bf16.msra.mxu0 0
        %2459 = vmatprep.subr.bf16.mxu0 0
        %2460 = vmatpush1.bf16.msra.mxu0 0
        %2461 = vmatprep.mubr.bf16.mxu0 0
        %2462 = vmatmul.mubr.bf16.gmra.mrb[0].mxu0 %v2427
        %v2463 = vpop.f32.mrb[0].mxu0
        %v2464 = vadd.f32 0.0, %v2463
        %v2465 = vpop.f32.mrb[0].mxu0
        %v2466 = vpop.f32.mrb[0].mxu0
        %v2467 = vadd.f32 0.0, %v2466
        %v2468 = vpop.f32.mrb[0].mxu0
        %2469 = vdwg.mxu0
        %v2471 = vsel %vm1677, %v2337, 0
        %2473 = vmatprep.subr.bf16.mxu0 0
        %2474 = vmatpush1.bf16.msra.mxu0 %v2049
        %2475 = vmatprep.subr.bf16.mxu0 0
        %2476 = vmatpush1.bf16.msra.mxu0 0
        %2477 = vmatprep.subr.bf16.mxu0 0
        %2478 = vmatpush1.bf16.msra.mxu0 0
        %2479 = vmatprep.subr.bf16.mxu0 0
        %2480 = vmatpush1.bf16.msra.mxu0 0
        %2481 = vmatprep.subr.bf16.mxu0 0
        %2482 = vmatpush1.bf16.msra.mxu0 0
        %2483 = vmatprep.subr.bf16.mxu0 0
        %2484 = vmatpush1.bf16.msra.mxu0 0
        %2485 = vmatprep.subr.bf16.mxu0 0
        %2486 = vmatpush1.bf16.msra.mxu0 0
        %2487 = vmatprep.subr.bf16.mxu0 0
        %2488 = vmatpush1.bf16.msra.mxu0 0
        %2489 = vmatprep.subr.bf16.mxu0 0
        %2490 = vmatpush1.bf16.msra.mxu0 0
        %2491 = vmatprep.subr.bf16.mxu0 0
        %2492 = vmatpush1.bf16.msra.mxu0 0
        %2493 = vmatprep.subr.bf16.mxu0 0
        %2494 = vmatpush1.bf16.msra.mxu0 0
        %2495 = vmatprep.subr.bf16.mxu0 0
        %2496 = vmatpush1.bf16.msra.mxu0 0
        %2497 = vmatprep.subr.bf16.mxu0 0
        %2498 = vmatpush1.bf16.msra.mxu0 0
        %2499 = vmatprep.subr.bf16.mxu0 0
        %2500 = vmatpush1.bf16.msra.mxu0 0
        %2501 = vmatprep.subr.bf16.mxu0 0
        %2502 = vmatpush1.bf16.msra.mxu0 0
        %2503 = vmatprep.subr.bf16.mxu0 0
        %2504 = vmatpush1.bf16.msra.mxu0 0
        %2505 = vmatprep.mubr.bf16.mxu0 0
        %2506 = vmatmul.mubr.bf16.gmra.mrb[0].mxu0 %v2471
        %v2507 = vpop.f32.mrb[0].mxu0
        %v2508 = vadd.f32 0.0, %v2507
        %v2509 = vpop.f32.mrb[0].mxu0
        %v2510 = vpop.f32.mrb[0].mxu0
        %v2511 = vadd.f32 0.0, %v2510
        %v2512 = vpop.f32.mrb[0].mxu0
        %2513 = vdwg.mxu0
        %2516 = vrot.lane.b32.xlu0 %v2420, 32
        %v2517 = vpop.permute.xlu0 %2516
        %2518 = vrot.lane.b32.xlu0 %v2423, 32
        %v2519 = vpop.permute.xlu0 %2518
        %2524 = vrot.lane.b32.xlu0 %v2464, 64
        %v2525 = vpop.permute.xlu0 %2524
        %2526 = vrot.lane.b32.xlu0 %v2467, 64
        %v2527 = vpop.permute.xlu0 %2526
        %2532 = vrot.lane.b32.xlu0 %v2508, 96
        %v2533 = vpop.permute.xlu0 %2532
        %2534 = vrot.lane.b32.xlu0 %v2511, 96
        %v2535 = vpop.permute.xlu0 %2534
        %v2538 = vsel %vm1480, %v2376, %v2517
        %v2539 = vsel %vm1480, %v2379, %v2519
        %v2540 = vsel %vm1972, %v2538, %v2525
        %v2541 = vsel %vm1972, %v2539, %v2527
        %v2542 = vsel %vm1975, %v2540, %v2533
        %v2543 = vsel %vm1975, %v2541, %v2535
        %v2544 = vpack.c.bf16 %v1977, %v1976
        %v2545 = vpack.c.bf16 %v2543, %v2542
        %v2546 = vld [vmem:[%s802] sm:$0xf]
        %v2547 = vld [vmem:[%s802 + $0x4] sm:$0xf]
        %v2548 = vld [vmem:[%s802 + $0x8] sm:$0xf]
        %v2549 = vld [vmem:[%s802 + $0xc] sm:$0xf]
        %v2550 = vld [vmem:[%s802 + $0x10] sm:$0xf]
        %v2551 = vld [vmem:[%s802 + $0x14] sm:$0xf]
        %v2552 = vld [vmem:[%s802 + $0x18] sm:$0xf]
        %v2553 = vld [vmem:[%s802 + $0x1c] sm:$0xf]
        %v2554 = vld [vmem:[%s802 + $0x20] sm:$0xf]
        %v2555 = vld [vmem:[%s802 + $0x24] sm:$0xf]
        %v2556 = vld [vmem:[%s802 + $0x28] sm:$0xf]
        %v2557 = vld [vmem:[%s802 + $0x2c] sm:$0xf]
        %v2558 = vld [vmem:[%s802 + $0x30] sm:$0xf]
        %v2559 = vld [vmem:[%s802 + $0x34] sm:$0xf]
        %v2560 = vld [vmem:[%s802 + $0x38] sm:$0xf]
        %v2561 = vld [vmem:[%s802 + $0x3c] sm:$0xf]
        %v2562 = vld [vmem:[%s937] sm:$0x1]
        %v2564 = vlaneseq
        %v2565 = vshrl.u32 %v2564, 7
        %v2566 = vsub.s32 0, %v2565
        %v2567 = vrot.slane %v2562, %v2566
        %v2585 = vunpack.c.l.b16 %v2546
        %v2586 = vunpack.c.l.b16 %v2547
        %v2587 = vunpack.c.l.b16 %v2548
        %v2588 = vunpack.c.l.b16 %v2549
        %v2589 = vunpack.c.l.b16 %v2550
        %v2590 = vunpack.c.l.b16 %v2551
        %v2591 = vunpack.c.l.b16 %v2552
        %v2592 = vunpack.c.l.b16 %v2553
        %v2593 = vunpack.c.l.b16 %v2554
        %v2594 = vunpack.c.l.b16 %v2555
        %v2595 = vunpack.c.l.b16 %v2556
        %v2596 = vunpack.c.l.b16 %v2557
        %v2597 = vunpack.c.l.b16 %v2558
        %v2598 = vunpack.c.l.b16 %v2559
        %v2599 = vunpack.c.l.b16 %v2560
        %v2600 = vunpack.c.l.b16 %v2561
        %v2601 = vpack.c.b16 %v2586, %v2585
        %v2602 = vpack.c.b16 %v2588, %v2587
        %v2603 = vpack.c.b16 %v2590, %v2589
        %v2604 = vpack.c.b16 %v2592, %v2591
        %v2605 = vpack.c.b16 %v2594, %v2593
        %v2606 = vpack.c.b16 %v2596, %v2595
        %v2607 = vpack.c.b16 %v2598, %v2597
        %v2608 = vpack.c.b16 %v2600, %v2599
        %2617 = vmatprep.subr.bf16.mxu0 0
        %2618 = vmatpush1.bf16.msra.mxu0 %v2601
        %2619 = vmatprep.subr.bf16.mxu0 0
        %2620 = vmatpush1.bf16.msra.mxu0 %v2602
        %2621 = vmatprep.subr.bf16.mxu0 0
        %2622 = vmatpush1.bf16.msra.mxu0 %v2603
        %2623 = vmatprep.subr.bf16.mxu0 0
        %2624 = vmatpush1.bf16.msra.mxu0 %v2604
        %2625 = vmatprep.subr.bf16.mxu0 0
        %2626 = vmatpush1.bf16.msra.mxu0 %v2605
        %2627 = vmatprep.subr.bf16.mxu0 0
        %2628 = vmatpush1.bf16.msra.mxu0 %v2606
        %2629 = vmatprep.subr.bf16.mxu0 0
        %2630 = vmatpush1.bf16.msra.mxu0 %v2607
        %2631 = vmatprep.subr.bf16.mxu0 0
        %2632 = vmatpush1.bf16.msra.mxu0 %v2608
        %2633 = vmatprep.subr.bf16.mxu0 0
        %2634 = vmatpush1.bf16.msra.mxu0 0
        %2635 = vmatprep.subr.bf16.mxu0 0
        %2636 = vmatpush1.bf16.msra.mxu0 0
        %2637 = vmatprep.subr.bf16.mxu0 0
        %2638 = vmatpush1.bf16.msra.mxu0 0
        %2639 = vmatprep.subr.bf16.mxu0 0
        %2640 = vmatpush1.bf16.msra.mxu0 0
        %2641 = vmatprep.subr.bf16.mxu0 0
        %2642 = vmatpush1.bf16.msra.mxu0 0
        %2643 = vmatprep.subr.bf16.mxu0 0
        %2644 = vmatpush1.bf16.msra.mxu0 0
        %2645 = vmatprep.subr.bf16.mxu0 0
        %2646 = vmatpush1.bf16.msra.mxu0 0
        %2647 = vmatprep.subr.bf16.mxu0 0
        %2648 = vmatpush1.bf16.msra.mxu0 0
        %2649 = vmatprep.mubr.bf16.mxu0 0
        %2650 = vmatmul.mubr.bf16.gmra.mrb[0].mxu0 %v2544
        %v2651 = vpop.f32.mrb[0].mxu0
        %v2652 = vadd.f32 %v2567, %v2651
        %v2653 = vpop.f32.mrb[0].mxu0
        %v2654 = vpop.f32.mrb[0].mxu0
        %v2655 = vadd.f32 %v2567, %v2654
        %v2656 = vpop.f32.mrb[0].mxu0
        %2657 = vmatprep.mubr.bf16.mxu0 0
        %2658 = vmatmul.mubr.bf16.gmra.mrb[0].mxu0 %v2545
        %v2659 = vpop.f32.mrb[0].mxu0
        %v2660 = vadd.f32 %v2567, %v2659
        %v2661 = vpop.f32.mrb[0].mxu0
        %v2662 = vpop.f32.mrb[0].mxu0
        %v2663 = vadd.f32 %v2567, %v2662
        %v2664 = vpop.f32.mrb[0].mxu0
        %2665 = vdwg.mxu0
        %v2666 = vadd.f32 %v1042, %v2652
        %v2667 = vadd.f32 %v1043, %v2655
        %v2668 = vadd.f32 %v1044, %v2660
        %v2669 = vadd.f32 %v1045, %v2663
        %v2670 = vld [vmem:[%s940] sm:$0x1]
        %v2671 = vld [vmem:[%s943] sm:$0x1]
        %2672 = vadd.xlane.f32.xlu0 %v2666
        %v2673 = vpop.xlane.xlu0 %2672
        %2674 = vadd.xlane.f32.xlu0 %v2667
        %v2675 = vpop.xlane.xlu0 %2674
        %2676 = vadd.xlane.f32.xlu0 %v2668
        %v2677 = vpop.xlane.xlu0 %2676
        %2678 = vadd.xlane.f32.xlu0 %v2669
        %v2679 = vpop.xlane.xlu0 %2678
        %v2680 = vrcp.pop 128.0
        %v2681 = vmul.f32 %v2673, %v2680
        %v2682 = vmul.f32 %v2675, %v2680
        %v2683 = vmul.f32 %v2677, %v2680
        %v2684 = vmul.f32 %v2679, %v2680
        %v2685 = vsub.f32 %v2666, %v2681
        %v2686 = vsub.f32 %v2667, %v2682
        %v2687 = vsub.f32 %v2668, %v2683
        %v2688 = vsub.f32 %v2669, %v2684
        %v2689 = vmul.f32 %v2685, %v2685
        %v2690 = vmul.f32 %v2686, %v2686
        %v2691 = vmul.f32 %v2687, %v2687
        %v2692 = vmul.f32 %v2688, %v2688
        %2693 = vadd.xlane.f32.xlu0 %v2689
        %v2694 = vpop.xlane.xlu0 %2693
        %2695 = vadd.xlane.f32.xlu0 %v2690
        %v2696 = vpop.xlane.xlu0 %2695
        %2697 = vadd.xlane.f32.xlu0 %v2691
        %v2698 = vpop.xlane.xlu0 %2697
        %2699 = vadd.xlane.f32.xlu0 %v2692
        %v2700 = vpop.xlane.xlu0 %2699
        %v2701 = vmul.f32 %v2694, %v2680
        %v2702 = vmul.f32 %v2696, %v2680
        %v2703 = vmul.f32 %v2698, %v2680
        %v2704 = vmul.f32 %v2700, %v2680
        %v2705 = vadd.f32 %v2701, 1e-12
        %v2706 = vadd.f32 %v2702, 1e-12
        %v2707 = vadd.f32 %v2703, 1e-12
        %v2708 = vadd.f32 %v2704, 1e-12
        %v2709 = vrsqrt.pop %v2705
        %v2710 = vrsqrt.pop %v2706
        %v2711 = vrsqrt.pop %v2707
        %v2712 = vrsqrt.pop %v2708
        %v2713 = vmul.f32 %v2685, %v2709
        %v2714 = vmul.f32 %v2686, %v2710
        %v2715 = vmul.f32 %v2687, %v2711
        %v2716 = vmul.f32 %v2688, %v2712
        %v2718 = vlaneseq
        %v2719 = vshrl.u32 %v2718, 7
        %v2720 = vsub.s32 0, %v2719
        %v2721 = vrot.slane %v2670, %v2720
        %v2723 = vmul.f32 %v2713, %v2721
        %v2724 = vmul.f32 %v2714, %v2721
        %v2725 = vmul.f32 %v2715, %v2721
        %v2726 = vmul.f32 %v2716, %v2721
        %v2728 = vlaneseq
        %v2729 = vshrl.u32 %v2728, 7
        %v2730 = vsub.s32 0, %v2729
        %v2731 = vrot.slane %v2671, %v2730
        %v2733 = vadd.f32 %v2723, %v2731
        %v2734 = vadd.f32 %v2724, %v2731
        %v2735 = vadd.f32 %v2725, %v2731
        %v2736 = vadd.f32 %v2726, %v2731
        %v2737 = vpack.c.bf16 %v2734, %v2733
        %v2738 = vpack.c.bf16 %v2736, %v2735
        %v2739 = vld [vmem:[%s948] sm:$0xff]
        %v2740 = vld [vmem:[%s948 + $0x8] sm:$0xff]
        %v2741 = vld [vmem:[%s948 + $0x10] sm:$0xff]
        %v2742 = vld [vmem:[%s948 + $0x18] sm:$0xff]
        %v2743 = vld [vmem:[%s948 + $0x20] sm:$0xff]
        %v2744 = vld [vmem:[%s948 + $0x28] sm:$0xff]
        %v2745 = vld [vmem:[%s948 + $0x30] sm:$0xff]
        %v2746 = vld [vmem:[%s948 + $0x38] sm:$0xff]
        %v2747 = vld [vmem:[%s948 + $0x40] sm:$0xff]
        %v2748 = vld [vmem:[%s948 + $0x48] sm:$0xff]
        %v2749 = vld [vmem:[%s948 + $0x50] sm:$0xff]
        %v2750 = vld [vmem:[%s948 + $0x58] sm:$0xff]
        %v2751 = vld [vmem:[%s948 + $0x60] sm:$0xff]
        %v2752 = vld [vmem:[%s948 + $0x68] sm:$0xff]
        %v2753 = vld [vmem:[%s948 + $0x70] sm:$0xff]
        %v2754 = vld [vmem:[%s948 + $0x78] sm:$0xff]
        %v2755 = vld [vmem:[%s948 + $0x80] sm:$0xff]
        %v2756 = vld [vmem:[%s948 + $0x88] sm:$0xff]
        %v2757 = vld [vmem:[%s948 + $0x90] sm:$0xff]
        %v2758 = vld [vmem:[%s948 + $0x98] sm:$0xff]
        %v2759 = vld [vmem:[%s948 + $0xa0] sm:$0xff]
        %v2760 = vld [vmem:[%s948 + $0xa8] sm:$0xff]
        %v2761 = vld [vmem:[%s948 + $0xb0] sm:$0xff]
        %v2762 = vld [vmem:[%s948 + $0xb8] sm:$0xff]
        %v2763 = vld [vmem:[%s948 + $0xc0] sm:$0xff]
        %v2764 = vld [vmem:[%s948 + $0xc8] sm:$0xff]
        %v2765 = vld [vmem:[%s948 + $0xd0] sm:$0xff]
        %v2766 = vld [vmem:[%s948 + $0xd8] sm:$0xff]
        %v2767 = vld [vmem:[%s948 + $0xe0] sm:$0xff]
        %v2768 = vld [vmem:[%s948 + $0xe8] sm:$0xff]
        %v2769 = vld [vmem:[%s948 + $0xf0] sm:$0xff]
        %v2770 = vld [vmem:[%s948 + $0xf8] sm:$0xff]
        %v2771 = vld [vmem:[%s952] sm:$0xf]
        %v2773 = vlaneseq
        %v2774 = vshrl.u32 %v2773, 7
        %v2775 = vsub.s32 0, %v2774
        %v2776 = vrot.slane %v2771, %v2775
        %v2777 = vlaneseq
        %v2778 = vshrl.u32 %v2777, 7
        %v2779 = vsub.s32 1, %v2778
        %v2780 = vrot.slane %v2771, %v2779
        %v2781 = vlaneseq
        %v2782 = vshrl.u32 %v2781, 7
        %v2783 = vsub.s32 2, %v2782
        %v2784 = vrot.slane %v2771, %v2783
        %v2785 = vlaneseq
        %v2786 = vshrl.u32 %v2785, 7
        %v2787 = vsub.s32 3, %v2786
        %v2788 = vrot.slane %v2771, %v2787
        %v2825 = vunpack.c.l.b16 %v2739
        %v2826 = vunpack.c.h.b16 %v2739
        %v2827 = vunpack.c.l.b16 %v2740
        %v2828 = vunpack.c.h.b16 %v2740
        %v2829 = vunpack.c.l.b16 %v2741
        %v2830 = vunpack.c.h.b16 %v2741
        %v2831 = vunpack.c.l.b16 %v2742
        %v2832 = vunpack.c.h.b16 %v2742
        %v2833 = vunpack.c.l.b16 %v2743
        %v2834 = vunpack.c.h.b16 %v2743
        %v2835 = vunpack.c.l.b16 %v2744
        %v2836 = vunpack.c.h.b16 %v2744
        %v2837 = vunpack.c.l.b16 %v2745
        %v2838 = vunpack.c.h.b16 %v2745
        %v2839 = vunpack.c.l.b16 %v2746
        %v2840 = vunpack.c.h.b16 %v2746
        %v2841 = vunpack.c.l.b16 %v2747
        %v2842 = vunpack.c.h.b16 %v2747
        %v2843 = vunpack.c.l.b16 %v2748
        %v2844 = vunpack.c.h.b16 %v2748
        %v2845 = vunpack.c.l.b16 %v2749
        %v2846 = vunpack.c.h.b16 %v2749
        %v2847 = vunpack.c.l.b16 %v2750
        %v2848 = vunpack.c.h.b16 %v2750
        %v2849 = vunpack.c.l.b16 %v2751
        %v2850 = vunpack.c.h.b16 %v2751
        %v2851 = vunpack.c.l.b16 %v2752
        %v2852 = vunpack.c.h.b16 %v2752
        %v2853 = vunpack.c.l.b16 %v2753
        %v2854 = vunpack.c.h.b16 %v2753
        %v2855 = vunpack.c.l.b16 %v2754
        %v2856 = vunpack.c.h.b16 %v2754
        %v2857 = vunpack.c.l.b16 %v2755
        %v2858 = vunpack.c.h.b16 %v2755
        %v2859 = vunpack.c.l.b16 %v2756
        %v2860 = vunpack.c.h.b16 %v2756
        %v2861 = vunpack.c.l.b16 %v2757
        %v2862 = vunpack.c.h.b16 %v2757
        %v2863 = vunpack.c.l.b16 %v2758
        %v2864 = vunpack.c.h.b16 %v2758
        %v2865 = vunpack.c.l.b16 %v2759
        %v2866 = vunpack.c.h.b16 %v2759
        %v2867 = vunpack.c.l.b16 %v2760
        %v2868 = vunpack.c.h.b16 %v2760
        %v2869 = vunpack.c.l.b16 %v2761
        %v2870 = vunpack.c.h.b16 %v2761
        %v2871 = vunpack.c.l.b16 %v2762
        %v2872 = vunpack.c.h.b16 %v2762
        %v2873 = vunpack.c.l.b16 %v2763
        %v2874 = vunpack.c.h.b16 %v2763
        %v2875 = vunpack.c.l.b16 %v2764
        %v2876 = vunpack.c.h.b16 %v2764
        %v2877 = vunpack.c.l.b16 %v2765
        %v2878 = vunpack.c.h.b16 %v2765
        %v2879 = vunpack.c.l.b16 %v2766
        %v2880 = vunpack.c.h.b16 %v2766
        %v2881 = vunpack.c.l.b16 %v2767
        %v2882 = vunpack.c.h.b16 %v2767
        %v2883 = vunpack.c.l.b16 %v2768
        %v2884 = vunpack.c.h.b16 %v2768
        %v2885 = vunpack.c.l.b16 %v2769
        %v2886 = vunpack.c.h.b16 %v2769
        %v2887 = vunpack.c.l.b16 %v2770
        %v2888 = vunpack.c.h.b16 %v2770
        %v2889 = vpack.c.b16 %v2829, %v2825
        %v2890 = vpack.c.b16 %v2830, %v2826
        %v2891 = vpack.c.b16 %v2831, %v2827
        %v2892 = vpack.c.b16 %v2832, %v2828
        %v2893 = vpack.c.b16 %v2837, %v2833
        %v2894 = vpack.c.b16 %v2838, %v2834
        %v2895 = vpack.c.b16 %v2839, %v2835
        %v2896 = vpack.c.b16 %v2840, %v2836
        %v2897 = vpack.c.b16 %v2845, %v2841
        %v2898 = vpack.c.b16 %v2846, %v2842
        %v2899 = vpack.c.b16 %v2847, %v2843
        %v2900 = vpack.c.b16 %v2848, %v2844
        %v2901 = vpack.c.b16 %v2853, %v2849
        %v2902 = vpack.c.b16 %v2854, %v2850
        %v2903 = vpack.c.b16 %v2855, %v2851
        %v2904 = vpack.c.b16 %v2856, %v2852
        %v2905 = vpack.c.b16 %v2861, %v2857
        %v2906 = vpack.c.b16 %v2862, %v2858
        %v2907 = vpack.c.b16 %v2863, %v2859
        %v2908 = vpack.c.b16 %v2864, %v2860
        %v2909 = vpack.c.b16 %v2869, %v2865
        %v2910 = vpack.c.b16 %v2870, %v2866
        %v2911 = vpack.c.b16 %v2871, %v2867
        %v2912 = vpack.c.b16 %v2872, %v2868
        %v2913 = vpack.c.b16 %v2877, %v2873
        %v2914 = vpack.c.b16 %v2878, %v2874
        %v2915 = vpack.c.b16 %v2879, %v2875
        %v2916 = vpack.c.b16 %v2880, %v2876
        %v2917 = vpack.c.b16 %v2885, %v2881
        %v2918 = vpack.c.b16 %v2886, %v2882
        %v2919 = vpack.c.b16 %v2887, %v2883
        %v2920 = vpack.c.b16 %v2888, %v2884
        %2953 = vmatprep.subr.bf16.mxu0 %v2890
        %2954 = vmatpush1.bf16.msra.mxu0 %v2889
        %2955 = vmatprep.subr.bf16.mxu0 %v2894
        %2956 = vmatpush1.bf16.msra.mxu0 %v2893
        %2957 = vmatprep.subr.bf16.mxu0 %v2898
        %2958 = vmatpush1.bf16.msra.mxu0 %v2897
        %2959 = vmatprep.subr.bf16.mxu0 %v2902
        %2960 = vmatpush1.bf16.msra.mxu0 %v2901
        %2961 = vmatprep.subr.bf16.mxu0 %v2906
        %2962 = vmatpush1.bf16.msra.mxu0 %v2905
        %2963 = vmatprep.subr.bf16.mxu0 %v2910
        %2964 = vmatpush1.bf16.msra.mxu0 %v2909
        %2965 = vmatprep.subr.bf16.mxu0 %v2914
        %2966 = vmatpush1.bf16.msra.mxu0 %v2913
        %2967 = vmatprep.subr.bf16.mxu0 %v2918
        %2968 = vmatpush1.bf16.msra.mxu0 %v2917
        %2969 = vmatprep.subr.bf16.mxu0 0
        %2970 = vmatpush1.bf16.msra.mxu0 0
        %2971 = vmatprep.subr.bf16.mxu0 0
        %2972 = vmatpush1.bf16.msra.mxu0 0
        %2973 = vmatprep.subr.bf16.mxu0 0
        %2974 = vmatpush1.bf16.msra.mxu0 0
        %2975 = vmatprep.subr.bf16.mxu0 0
        %2976 = vmatpush1.bf16.msra.mxu0 0
        %2977 = vmatprep.subr.bf16.mxu0 0
        %2978 = vmatpush1.bf16.msra.mxu0 0
        %2979 = vmatprep.subr.bf16.mxu0 0
        %2980 = vmatpush1.bf16.msra.mxu0 0
        %2981 = vmatprep.subr.bf16.mxu0 0
        %2982 = vmatpush1.bf16.msra.mxu0 0
        %2983 = vmatprep.subr.bf16.mxu0 0
        %2984 = vmatpush1.bf16.msra.mxu0 0
        %2985 = vmatprep.mubr.bf16.mxu0 0
        %2986 = vmatmul.mubr.bf16.gmra.mrb[0].mxu0 %v2737
        %v2987 = vpop.f32.mrb[0].mxu0
        %v2988 = vadd.f32 %v2776, %v2987
        %v2989 = vpop.f32.mrb[0].mxu0
        %v2990 = vadd.f32 %v2780, %v2989
        %v2991 = vpop.f32.mrb[0].mxu0
        %v2992 = vadd.f32 %v2776, %v2991
        %v2993 = vpop.f32.mrb[0].mxu0
        %v2994 = vadd.f32 %v2780, %v2993
        %2995 = vmatprep.mubr.bf16.mxu0 0
        %2996 = vmatmul.mubr.bf16.gmra.mrb[0].mxu0 %v2738
        %v2997 = vpop.f32.mrb[0].mxu0
        %v2998 = vadd.f32 %v2776, %v2997
        %v2999 = vpop.f32.mrb[0].mxu0
        %v3000 = vadd.f32 %v2780, %v2999
        %v3001 = vpop.f32.mrb[0].mxu0
        %v3002 = vadd.f32 %v2776, %v3001
        %v3003 = vpop.f32.mrb[0].mxu0
        %v3004 = vadd.f32 %v2780, %v3003
        %3005 = vdwg.mxu0
        %3006 = vmatprep.subr.bf16.mxu0 %v2892
        %3007 = vmatpush1.bf16.msra.mxu0 %v2891
        %3008 = vmatprep.subr.bf16.mxu0 %v2896
        %3009 = vmatpush1.bf16.msra.mxu0 %v2895
        %3010 = vmatprep.subr.bf16.mxu0 %v2900
        %3011 = vmatpush1.bf16.msra.mxu0 %v2899
        %3012 = vmatprep.subr.bf16.mxu0 %v2904
        %3013 = vmatpush1.bf16.msra.mxu0 %v2903
        %3014 = vmatprep.subr.bf16.mxu0 %v2908
        %3015 = vmatpush1.bf16.msra.mxu0 %v2907
        %3016 = vmatprep.subr.bf16.mxu0 %v2912
        %3017 = vmatpush1.bf16.msra.mxu0 %v2911
        %3018 = vmatprep.subr.bf16.mxu0 %v2916
        %3019 = vmatpush1.bf16.msra.mxu0 %v2915
        %3020 = vmatprep.subr.bf16.mxu0 %v2920
        %3021 = vmatpush1.bf16.msra.mxu0 %v2919
        %3022 = vmatprep.subr.bf16.mxu0 0
        %3023 = vmatpush1.bf16.msra.mxu0 0
        %3024 = vmatprep.subr.bf16.mxu0 0
        %3025 = vmatpush1.bf16.msra.mxu0 0
        %3026 = vmatprep.subr.bf16.mxu0 0
        %3027 = vmatpush1.bf16.msra.mxu0 0
        %3028 = vmatprep.subr.bf16.mxu0 0
        %3029 = vmatpush1.bf16.msra.mxu0 0
        %3030 = vmatprep.subr.bf16.mxu0 0
        %3031 = vmatpush1.bf16.msra.mxu0 0
        %3032 = vmatprep.subr.bf16.mxu0 0
        %3033 = vmatpush1.bf16.msra.mxu0 0
        %3034 = vmatprep.subr.bf16.mxu0 0
        %3035 = vmatpush1.bf16.msra.mxu0 0
        %3036 = vmatprep.subr.bf16.mxu0 0
        %3037 = vmatpush1.bf16.msra.mxu0 0
        %3038 = vmatprep.mubr.bf16.mxu0 0
        %3039 = vmatmul.mubr.bf16.gmra.mrb[0].mxu0 %v2737
        %v3040 = vpop.f32.mrb[0].mxu0
        %v3041 = vadd.f32 %v2784, %v3040
        %v3042 = vpop.f32.mrb[0].mxu0
        %v3043 = vadd.f32 %v2788, %v3042
        %v3044 = vpop.f32.mrb[0].mxu0
        %v3045 = vadd.f32 %v2784, %v3044
        %v3046 = vpop.f32.mrb[0].mxu0
        %v3047 = vadd.f32 %v2788, %v3046
        %3048 = vmatprep.mubr.bf16.mxu0 0
        %3049 = vmatmul.mubr.bf16.gmra.mrb[0].mxu0 %v2738
        %v3050 = vpop.f32.mrb[0].mxu0
        %v3051 = vadd.f32 %v2784, %v3050
        %v3052 = vpop.f32.mrb[0].mxu0
        %v3053 = vadd.f32 %v2788, %v3052
        %v3054 = vpop.f32.mrb[0].mxu0
        %v3055 = vadd.f32 %v2784, %v3054
        %v3056 = vpop.f32.mrb[0].mxu0
        %v3057 = vadd.f32 %v2788, %v3056
        %3058 = vdwg.mxu0
        %v3059 = vmul.f32 %v2988, 0.5
        %v3060 = vmul.f32 %v2990, 0.5
        %v3061 = vmul.f32 %v3041, 0.5
        %v3062 = vmul.f32 %v3043, 0.5
        %v3063 = vmul.f32 %v2992, 0.5
        %v3064 = vmul.f32 %v2994, 0.5
        %v3065 = vmul.f32 %v3045, 0.5
        %v3066 = vmul.f32 %v3047, 0.5
        %v3067 = vmul.f32 %v2998, 0.5
        %v3068 = vmul.f32 %v3000, 0.5
        %v3069 = vmul.f32 %v3051, 0.5
        %v3070 = vmul.f32 %v3053, 0.5
        %v3071 = vmul.f32 %v3002, 0.5
        %v3072 = vmul.f32 %v3004, 0.5
        %v3073 = vmul.f32 %v3055, 0.5
        %v3074 = vmul.f32 %v3057, 0.5
        %v3075 = vmul.f32 %v2988, 0.044715
        %v3076 = vmul.f32 %v2990, 0.044715
        %v3077 = vmul.f32 %v3041, 0.044715
        %v3078 = vmul.f32 %v3043, 0.044715
        %v3079 = vmul.f32 %v2992, 0.044715
        %v3080 = vmul.f32 %v2994, 0.044715
        %v3081 = vmul.f32 %v3045, 0.044715
        %v3082 = vmul.f32 %v3047, 0.044715
        %v3083 = vmul.f32 %v2998, 0.044715
        %v3084 = vmul.f32 %v3000, 0.044715
        %v3085 = vmul.f32 %v3051, 0.044715
        %v3086 = vmul.f32 %v3053, 0.044715
        %v3087 = vmul.f32 %v3002, 0.044715
        %v3088 = vmul.f32 %v3004, 0.044715
        %v3089 = vmul.f32 %v3055, 0.044715
        %v3090 = vmul.f32 %v3057, 0.044715
        %v3091 = vmul.f32 %v3075, %v2988
        %v3092 = vmul.f32 %v3076, %v2990
        %v3093 = vmul.f32 %v3077, %v3041
        %v3094 = vmul.f32 %v3078, %v3043
        %v3095 = vmul.f32 %v3079, %v2992
        %v3096 = vmul.f32 %v3080, %v2994
        %v3097 = vmul.f32 %v3081, %v3045
        %v3098 = vmul.f32 %v3082, %v3047
        %v3099 = vmul.f32 %v3083, %v2998
        %v3100 = vmul.f32 %v3084, %v3000
        %v3101 = vmul.f32 %v3085, %v3051
        %v3102 = vmul.f32 %v3086, %v3053
        %v3103 = vmul.f32 %v3087, %v3002
        %v3104 = vmul.f32 %v3088, %v3004
        %v3105 = vmul.f32 %v3089, %v3055
        %v3106 = vmul.f32 %v3090, %v3057
        %v3107 = vmul.f32 %v3091, %v2988
        %v3108 = vmul.f32 %v3092, %v2990
        %v3109 = vmul.f32 %v3093, %v3041
        %v3110 = vmul.f32 %v3094, %v3043
        %v3111 = vmul.f32 %v3095, %v2992
        %v3112 = vmul.f32 %v3096, %v2994
        %v3113 = vmul.f32 %v3097, %v3045
        %v3114 = vmul.f32 %v3098, %v3047
        %v3115 = vmul.f32 %v3099, %v2998
        %v3116 = vmul.f32 %v3100, %v3000
        %v3117 = vmul.f32 %v3101, %v3051
        %v3118 = vmul.f32 %v3102, %v3053
        %v3119 = vmul.f32 %v3103, %v3002
        %v3120 = vmul.f32 %v3104, %v3004
        %v3121 = vmul.f32 %v3105, %v3055
        %v3122 = vmul.f32 %v3106, %v3057
        %v3123 = vadd.f32 %v2988, %v3107
        %v3124 = vadd.f32 %v2990, %v3108
        %v3125 = vadd.f32 %v3041, %v3109
        %v3126 = vadd.f32 %v3043, %v3110
        %v3127 = vadd.f32 %v2992, %v3111
        %v3128 = vadd.f32 %v2994, %v3112
        %v3129 = vadd.f32 %v3045, %v3113
        %v3130 = vadd.f32 %v3047, %v3114
        %v3131 = vadd.f32 %v2998, %v3115
        %v3132 = vadd.f32 %v3000, %v3116
        %v3133 = vadd.f32 %v3051, %v3117
        %v3134 = vadd.f32 %v3053, %v3118
        %v3135 = vadd.f32 %v3002, %v3119
        %v3136 = vadd.f32 %v3004, %v3120
        %v3137 = vadd.f32 %v3055, %v3121
        %v3138 = vadd.f32 %v3057, %v3122
        %v3139 = vmul.f32 %v3123, 0.7978846
        %v3140 = vmul.f32 %v3124, 0.7978846
        %v3141 = vmul.f32 %v3125, 0.7978846
        %v3142 = vmul.f32 %v3126, 0.7978846
        %v3143 = vmul.f32 %v3127, 0.7978846
        %v3144 = vmul.f32 %v3128, 0.7978846
        %v3145 = vmul.f32 %v3129, 0.7978846
        %v3146 = vmul.f32 %v3130, 0.7978846
        %v3147 = vmul.f32 %v3131, 0.7978846
        %v3148 = vmul.f32 %v3132, 0.7978846
        %v3149 = vmul.f32 %v3133, 0.7978846
        %v3150 = vmul.f32 %v3134, 0.7978846
        %v3151 = vmul.f32 %v3135, 0.7978846
        %v3152 = vmul.f32 %v3136, 0.7978846
        %v3153 = vmul.f32 %v3137, 0.7978846
        %v3154 = vmul.f32 %v3138, 0.7978846
        %v3155 = vtanh.pop %v3139
        %v3156 = vtanh.pop %v3140
        %v3157 = vtanh.pop %v3141
        %v3158 = vtanh.pop %v3142
        %v3159 = vtanh.pop %v3143
        %v3160 = vtanh.pop %v3144
        %v3161 = vtanh.pop %v3145
        %v3162 = vtanh.pop %v3146
        %v3163 = vtanh.pop %v3147
        %v3164 = vtanh.pop %v3148
        %v3165 = vtanh.pop %v3149
        %v3166 = vtanh.pop %v3150
        %v3167 = vtanh.pop %v3151
        %v3168 = vtanh.pop %v3152
        %v3169 = vtanh.pop %v3153
        %v3170 = vtanh.pop %v3154
        %v3171 = vadd.f32 %v3155, 1.0
        %v3172 = vadd.f32 %v3156, 1.0
        %v3173 = vadd.f32 %v3157, 1.0
        %v3174 = vadd.f32 %v3158, 1.0
        %v3175 = vadd.f32 %v3159, 1.0
        %v3176 = vadd.f32 %v3160, 1.0
        %v3177 = vadd.f32 %v3161, 1.0
        %v3178 = vadd.f32 %v3162, 1.0
        %v3179 = vadd.f32 %v3163, 1.0
        %v3180 = vadd.f32 %v3164, 1.0
        %v3181 = vadd.f32 %v3165, 1.0
        %v3182 = vadd.f32 %v3166, 1.0
        %v3183 = vadd.f32 %v3167, 1.0
        %v3184 = vadd.f32 %v3168, 1.0
        %v3185 = vadd.f32 %v3169, 1.0
        %v3186 = vadd.f32 %v3170, 1.0
        %v3187 = vmul.f32 %v3059, %v3171
        %v3188 = vmul.f32 %v3060, %v3172
        %v3189 = vmul.f32 %v3061, %v3173
        %v3190 = vmul.f32 %v3062, %v3174
        %v3191 = vmul.f32 %v3063, %v3175
        %v3192 = vmul.f32 %v3064, %v3176
        %v3193 = vmul.f32 %v3065, %v3177
        %v3194 = vmul.f32 %v3066, %v3178
        %v3195 = vmul.f32 %v3067, %v3179
        %v3196 = vmul.f32 %v3068, %v3180
        %v3197 = vmul.f32 %v3069, %v3181
        %v3198 = vmul.f32 %v3070, %v3182
        %v3199 = vmul.f32 %v3071, %v3183
        %v3200 = vmul.f32 %v3072, %v3184
        %v3201 = vmul.f32 %v3073, %v3185
        %v3202 = vmul.f32 %v3074, %v3186
        %v3203 = vpack.c.bf16 %v3191, %v3187
        %v3204 = vpack.c.bf16 %v3192, %v3188
        %v3205 = vpack.c.bf16 %v3193, %v3189
        %v3206 = vpack.c.bf16 %v3194, %v3190
        %v3207 = vpack.c.bf16 %v3199, %v3195
        %v3208 = vpack.c.bf16 %v3200, %v3196
        %v3209 = vpack.c.bf16 %v3201, %v3197
        %v3210 = vpack.c.bf16 %v3202, %v3198
        %v3211 = vld [vmem:[%s811] sm:$0xf]
        %v3212 = vld [vmem:[%s811 + $0x4] sm:$0xf]
        %v3213 = vld [vmem:[%s811 + $0x8] sm:$0xf]
        %v3214 = vld [vmem:[%s811 + $0xc] sm:$0xf]
        %v3215 = vld [vmem:[%s811 + $0x10] sm:$0xf]
        %v3216 = vld [vmem:[%s811 + $0x14] sm:$0xf]
        %v3217 = vld [vmem:[%s811 + $0x18] sm:$0xf]
        %v3218 = vld [vmem:[%s811 + $0x1c] sm:$0xf]
        %v3219 = vld [vmem:[%s811 + $0x20] sm:$0xf]
        %v3220 = vld [vmem:[%s811 + $0x24] sm:$0xf]
        %v3221 = vld [vmem:[%s811 + $0x28] sm:$0xf]
        %v3222 = vld [vmem:[%s811 + $0x2c] sm:$0xf]
        %v3223 = vld [vmem:[%s811 + $0x30] sm:$0xf]
        %v3224 = vld [vmem:[%s811 + $0x34] sm:$0xf]
        %v3225 = vld [vmem:[%s811 + $0x38] sm:$0xf]
        %v3226 = vld [vmem:[%s811 + $0x3c] sm:$0xf]
        %v3227 = vld [vmem:[%s811 + $0x40] sm:$0xf]
        %v3228 = vld [vmem:[%s811 + $0x44] sm:$0xf]
        %v3229 = vld [vmem:[%s811 + $0x48] sm:$0xf]
        %v3230 = vld [vmem:[%s811 + $0x4c] sm:$0xf]
        %v3231 = vld [vmem:[%s811 + $0x50] sm:$0xf]
        %v3232 = vld [vmem:[%s811 + $0x54] sm:$0xf]
        %v3233 = vld [vmem:[%s811 + $0x58] sm:$0xf]
        %v3234 = vld [vmem:[%s811 + $0x5c] sm:$0xf]
        %v3235 = vld [vmem:[%s811 + $0x60] sm:$0xf]
        %v3236 = vld [vmem:[%s811 + $0x64] sm:$0xf]
        %v3237 = vld [vmem:[%s811 + $0x68] sm:$0xf]
        %v3238 = vld [vmem:[%s811 + $0x6c] sm:$0xf]
        %v3239 = vld [vmem:[%s811 + $0x70] sm:$0xf]
        %v3240 = vld [vmem:[%s811 + $0x74] sm:$0xf]
        %v3241 = vld [vmem:[%s811 + $0x78] sm:$0xf]
        %v3242 = vld [vmem:[%s811 + $0x7c] sm:$0xf]
        %v3243 = vld [vmem:[%s811 + $0x80] sm:$0xf]
        %v3244 = vld [vmem:[%s811 + $0x84] sm:$0xf]
        %v3245 = vld [vmem:[%s811 + $0x88] sm:$0xf]
        %v3246 = vld [vmem:[%s811 + $0x8c] sm:$0xf]
        %v3247 = vld [vmem:[%s811 + $0x90] sm:$0xf]
        %v3248 = vld [vmem:[%s811 + $0x94] sm:$0xf]
        %v3249 = vld [vmem:[%s811 + $0x98] sm:$0xf]
        %v3250 = vld [vmem:[%s811 + $0x9c] sm:$0xf]
        %v3251 = vld [vmem:[%s811 + $0xa0] sm:$0xf]
        %v3252 = vld [vmem:[%s811 + $0xa4] sm:$0xf]
        %v3253 = vld [vmem:[%s811 + $0xa8] sm:$0xf]
        %v3254 = vld [vmem:[%s811 + $0xac] sm:$0xf]
        %v3255 = vld [vmem:[%s811 + $0xb0] sm:$0xf]
        %v3256 = vld [vmem:[%s811 + $0xb4] sm:$0xf]
        %v3257 = vld [vmem:[%s811 + $0xb8] sm:$0xf]
        %v3258 = vld [vmem:[%s811 + $0xbc] sm:$0xf]
        %v3259 = vld [vmem:[%s811 + $0xc0] sm:$0xf]
        %v3260 = vld [vmem:[%s811 + $0xc4] sm:$0xf]
        %v3261 = vld [vmem:[%s811 + $0xc8] sm:$0xf]
        %v3262 = vld [vmem:[%s811 + $0xcc] sm:$0xf]
        %v3263 = vld [vmem:[%s811 + $0xd0] sm:$0xf]
        %v3264 = vld [vmem:[%s811 + $0xd4] sm:$0xf]
        %v3265 = vld [vmem:[%s811 + $0xd8] sm:$0xf]
        %v3266 = vld [vmem:[%s811 + $0xdc] sm:$0xf]
        %v3267 = vld [vmem:[%s811 + $0xe0] sm:$0xf]
        %v3268 = vld [vmem:[%s811 + $0xe4] sm:$0xf]
        %v3269 = vld [vmem:[%s811 + $0xe8] sm:$0xf]
        %v3270 = vld [vmem:[%s811 + $0xec] sm:$0xf]
        %v3271 = vld [vmem:[%s811 + $0xf0] sm:$0xf]
        %v3272 = vld [vmem:[%s811 + $0xf4] sm:$0xf]
        %v3273 = vld [vmem:[%s811 + $0xf8] sm:$0xf]
        %v3274 = vld [vmem:[%s811 + $0xfc] sm:$0xf]
        %v3275 = vld [vmem:[%s955] sm:$0x1]
        %v3277 = vlaneseq
        %v3278 = vshrl.u32 %v3277, 7
        %v3279 = vsub.s32 0, %v3278
        %v3280 = vrot.slane %v3275, %v3279
        %v3346 = vunpack.c.l.b16 %v3211
        %v3347 = vunpack.c.l.b16 %v3212
        %v3348 = vunpack.c.l.b16 %v3213
        %v3349 = vunpack.c.l.b16 %v3214
        %v3350 = vunpack.c.l.b16 %v3215
        %v3351 = vunpack.c.l.b16 %v3216
        %v3352 = vunpack.c.l.b16 %v3217
        %v3353 = vunpack.c.l.b16 %v3218
        %v3354 = vunpack.c.l.b16 %v3219
        %v3355 = vunpack.c.l.b16 %v3220
        %v3356 = vunpack.c.l.b16 %v3221
        %v3357 = vunpack.c.l.b16 %v3222
        %v3358 = vunpack.c.l.b16 %v3223
        %v3359 = vunpack.c.l.b16 %v3224
        %v3360 = vunpack.c.l.b16 %v3225
        %v3361 = vunpack.c.l.b16 %v3226
        %v3362 = vunpack.c.l.b16 %v3227
        %v3363 = vunpack.c.l.b16 %v3228
        %v3364 = vunpack.c.l.b16 %v3229
        %v3365 = vunpack.c.l.b16 %v3230
        %v3366 = vunpack.c.l.b16 %v3231
        %v3367 = vunpack.c.l.b16 %v3232
        %v3368 = vunpack.c.l.b16 %v3233
        %v3369 = vunpack.c.l.b16 %v3234
        %v3370 = vunpack.c.l.b16 %v3235
        %v3371 = vunpack.c.l.b16 %v3236
        %v3372 = vunpack.c.l.b16 %v3237
        %v3373 = vunpack.c.l.b16 %v3238
        %v3374 = vunpack.c.l.b16 %v3239
        %v3375 = vunpack.c.l.b16 %v3240
        %v3376 = vunpack.c.l.b16 %v3241
        %v3377 = vunpack.c.l.b16 %v3242
        %v3378 = vunpack.c.l.b16 %v3243
        %v3379 = vunpack.c.l.b16 %v3244
        %v3380 = vunpack.c.l.b16 %v3245
        %v3381 = vunpack.c.l.b16 %v3246
        %v3382 = vunpack.c.l.b16 %v3247
        %v3383 = vunpack.c.l.b16 %v3248
        %v3384 = vunpack.c.l.b16 %v3249
        %v3385 = vunpack.c.l.b16 %v3250
        %v3386 = vunpack.c.l.b16 %v3251
        %v3387 = vunpack.c.l.b16 %v3252
        %v3388 = vunpack.c.l.b16 %v3253
        %v3389 = vunpack.c.l.b16 %v3254
        %v3390 = vunpack.c.l.b16 %v3255
        %v3391 = vunpack.c.l.b16 %v3256
        %v3392 = vunpack.c.l.b16 %v3257
        %v3393 = vunpack.c.l.b16 %v3258
        %v3394 = vunpack.c.l.b16 %v3259
        %v3395 = vunpack.c.l.b16 %v3260
        %v3396 = vunpack.c.l.b16 %v3261
        %v3397 = vunpack.c.l.b16 %v3262
        %v3398 = vunpack.c.l.b16 %v3263
        %v3399 = vunpack.c.l.b16 %v3264
        %v3400 = vunpack.c.l.b16 %v3265
        %v3401 = vunpack.c.l.b16 %v3266
        %v3402 = vunpack.c.l.b16 %v3267
        %v3403 = vunpack.c.l.b16 %v3268
        %v3404 = vunpack.c.l.b16 %v3269
        %v3405 = vunpack.c.l.b16 %v3270
        %v3406 = vunpack.c.l.b16 %v3271
        %v3407 = vunpack.c.l.b16 %v3272
        %v3408 = vunpack.c.l.b16 %v3273
        %v3409 = vunpack.c.l.b16 %v3274
        %v3410 = vpack.c.b16 %v3347, %v3346
        %v3411 = vpack.c.b16 %v3349, %v3348
        %v3412 = vpack.c.b16 %v3351, %v3350
        %v3413 = vpack.c.b16 %v3353, %v3352
        %v3414 = vpack.c.b16 %v3355, %v3354
        %v3415 = vpack.c.b16 %v3357, %v3356
        %v3416 = vpack.c.b16 %v3359, %v3358
        %v3417 = vpack.c.b16 %v3361, %v3360
        %v3418 = vpack.c.b16 %v3363, %v3362
        %v3419 = vpack.c.b16 %v3365, %v3364
        %v3420 = vpack.c.b16 %v3367, %v3366
        %v3421 = vpack.c.b16 %v3369, %v3368
        %v3422 = vpack.c.b16 %v3371, %v3370
        %v3423 = vpack.c.b16 %v3373, %v3372
        %v3424 = vpack.c.b16 %v3375, %v3374
        %v3425 = vpack.c.b16 %v3377, %v3376
        %v3426 = vpack.c.b16 %v3379, %v3378
        %v3427 = vpack.c.b16 %v3381, %v3380
        %v3428 = vpack.c.b16 %v3383, %v3382
        %v3429 = vpack.c.b16 %v3385, %v3384
        %v3430 = vpack.c.b16 %v3387, %v3386
        %v3431 = vpack.c.b16 %v3389, %v3388
        %v3432 = vpack.c.b16 %v3391, %v3390
        %v3433 = vpack.c.b16 %v3393, %v3392
        %v3434 = vpack.c.b16 %v3395, %v3394
        %v3435 = vpack.c.b16 %v3397, %v3396
        %v3436 = vpack.c.b16 %v3399, %v3398
        %v3437 = vpack.c.b16 %v3401, %v3400
        %v3438 = vpack.c.b16 %v3403, %v3402
        %v3439 = vpack.c.b16 %v3405, %v3404
        %v3440 = vpack.c.b16 %v3407, %v3406
        %v3441 = vpack.c.b16 %v3409, %v3408
        %3474 = vmatprep.subr.bf16.mxu0 0
        %3475 = vmatpush1.bf16.msra.mxu0 %v3410
        %3476 = vmatprep.subr.bf16.mxu0 0
        %3477 = vmatpush1.bf16.msra.mxu0 %v3411
        %3478 = vmatprep.subr.bf16.mxu0 0
        %3479 = vmatpush1.bf16.msra.mxu0 %v3412
        %3480 = vmatprep.subr.bf16.mxu0 0
        %3481 = vmatpush1.bf16.msra.mxu0 %v3413
        %3482 = vmatprep.subr.bf16.mxu0 0
        %3483 = vmatpush1.bf16.msra.mxu0 %v3414
        %3484 = vmatprep.subr.bf16.mxu0 0
        %3485 = vmatpush1.bf16.msra.mxu0 %v3415
        %3486 = vmatprep.subr.bf16.mxu0 0
        %3487 = vmatpush1.bf16.msra.mxu0 %v3416
        %3488 = vmatprep.subr.bf16.mxu0 0
        %3489 = vmatpush1.bf16.msra.mxu0 %v3417
        %3490 = vmatprep.subr.bf16.mxu0 0
        %3491 = vmatpush1.bf16.msra.mxu0 %v3418
        %3492 = vmatprep.subr.bf16.mxu0 0
        %3493 = vmatpush1.bf16.msra.mxu0 %v3419
        %3494 = vmatprep.subr.bf16.mxu0 0
        %3495 = vmatpush1.bf16.msra.mxu0 %v3420
        %3496 = vmatprep.subr.bf16.mxu0 0
        %3497 = vmatpush1.bf16.msra.mxu0 %v3421
        %3498 = vmatprep.subr.bf16.mxu0 0
        %3499 = vmatpush1.bf16.msra.mxu0 %v3422
        %3500 = vmatprep.subr.bf16.mxu0 0
        %3501 = vmatpush1.bf16.msra.mxu0 %v3423
        %3502 = vmatprep.subr.bf16.mxu0 0
        %3503 = vmatpush1.bf16.msra.mxu0 %v3424
        %3504 = vmatprep.subr.bf16.mxu0 0
        %3505 = vmatpush1.bf16.msra.mxu0 %v3425
        %3506 = vmatprep.mubr.bf16.mxu0 %v3204
        %3507 = vmatmul.mubr.bf16.gmra.mrb[0].mxu0 %v3203
        %v3508 = vpop.f32.mrb[0].mxu0
        %v3509 = vadd.f32 %v3280, %v3508
        %v3510 = vpop.f32.mrb[0].mxu0
        %v3511 = vpop.f32.mrb[0].mxu0
        %v3512 = vadd.f32 %v3280, %v3511
        %v3513 = vpop.f32.mrb[0].mxu0
        %3514 = vmatprep.mubr.bf16.mxu0 %v3208
        %3515 = vmatmul.mubr.bf16.gmra.mrb[0].mxu0 %v3207
        %v3516 = vpop.f32.mrb[0].mxu0
        %v3517 = vadd.f32 %v3280, %v3516
        %v3518 = vpop.f32.mrb[0].mxu0
        %v3519 = vpop.f32.mrb[0].mxu0
        %v3520 = vadd.f32 %v3280, %v3519
        %v3521 = vpop.f32.mrb[0].mxu0
        %3522 = vdwg.mxu0
        %3523 = vmatprep.subr.bf16.mxu0 0
        %3524 = vmatpush1.bf16.msra.mxu0 %v3426
        %3525 = vmatprep.subr.bf16.mxu0 0
        %3526 = vmatpush1.bf16.msra.mxu0 %v3427
        %3527 = vmatprep.subr.bf16.mxu0 0
        %3528 = vmatpush1.bf16.msra.mxu0 %v3428
        %3529 = vmatprep.subr.bf16.mxu0 0
        %3530 = vmatpush1.bf16.msra.mxu0 %v3429
        %3531 = vmatprep.subr.bf16.mxu0 0
        %3532 = vmatpush1.bf16.msra.mxu0 %v3430
        %3533 = vmatprep.subr.bf16.mxu0 0
        %3534 = vmatpush1.bf16.msra.mxu0 %v3431
        %3535 = vmatprep.subr.bf16.mxu0 0
        %3536 = vmatpush1.bf16.msra.mxu0 %v3432
        %3537 = vmatprep.subr.bf16.mxu0 0
        %3538 = vmatpush1.bf16.msra.mxu0 %v3433
        %3539 = vmatprep.subr.bf16.mxu0 0
        %3540 = vmatpush1.bf16.msra.mxu0 %v3434
        %3541 = vmatprep.subr.bf16.mxu0 0
        %3542 = vmatpush1.bf16.msra.mxu0 %v3435
        %3543 = vmatprep.subr.bf16.mxu0 0
        %3544 = vmatpush1.bf16.msra.mxu0 %v3436
        %3545 = vmatprep.subr.bf16.mxu0 0
        %3546 = vmatpush1.bf16.msra.mxu0 %v3437
        %3547 = vmatprep.subr.bf16.mxu0 0
        %3548 = vmatpush1.bf16.msra.mxu0 %v3438
        %3549 = vmatprep.subr.bf16.mxu0 0
        %3550 = vmatpush1.bf16.msra.mxu0 %v3439
        %3551 = vmatprep.subr.bf16.mxu0 0
        %3552 = vmatpush1.bf16.msra.mxu0 %v3440
        %3553 = vmatprep.subr.bf16.mxu0 0
        %3554 = vmatpush1.bf16.msra.mxu0 %v3441
        %3555 = vmatprep.mubr.bf16.mxu0 %v3206
        %3556 = vmatmul.mubr.bf16.gmra.mrb[0].mxu0 %v3205
        %v3557 = vpop.f32.mrb[0].mxu0
        %v3558 = vadd.f32 %v3509, %v3557
        %v3559 = vpop.f32.mrb[0].mxu0
        %v3560 = vpop.f32.mrb[0].mxu0
        %v3561 = vadd.f32 %v3512, %v3560
        %v3562 = vpop.f32.mrb[0].mxu0
        %3563 = vmatprep.mubr.bf16.mxu0 %v3210
        %3564 = vmatmul.mubr.bf16.gmra.mrb[0].mxu0 %v3209
        %v3565 = vpop.f32.mrb[0].mxu0
        %v3566 = vadd.f32 %v3517, %v3565
        %v3567 = vpop.f32.mrb[0].mxu0
        %v3568 = vpop.f32.mrb[0].mxu0
        %v3569 = vadd.f32 %v3520, %v3568
        %v3570 = vpop.f32.mrb[0].mxu0
        %3571 = vdwg.mxu0
        %v3572 = vadd.f32 %v2733, %v3558
        %v3573 = vadd.f32 %v2734, %v3561
        %v3574 = vadd.f32 %v2735, %v3566
        %v3575 = vadd.f32 %v2736, %v3569
        %v3576 = vld [vmem:[%s958] sm:$0x1]
        %v3577 = vld [vmem:[%s961] sm:$0x1]
        %3578 = vadd.xlane.f32.xlu0 %v3572
        %v3579 = vpop.xlane.xlu0 %3578
        %3580 = vadd.xlane.f32.xlu0 %v3573
        %v3581 = vpop.xlane.xlu0 %3580
        %3582 = vadd.xlane.f32.xlu0 %v3574
        %v3583 = vpop.xlane.xlu0 %3582
        %3584 = vadd.xlane.f32.xlu0 %v3575
        %v3585 = vpop.xlane.xlu0 %3584
        %v3586 = vmul.f32 %v3579, %v2680
        %v3587 = vmul.f32 %v3581, %v2680
        %v3588 = vmul.f32 %v3583, %v2680
        %v3589 = vmul.f32 %v3585, %v2680
        %v3590 = vsub.f32 %v3572, %v3586
        %v3591 = vsub.f32 %v3573, %v3587
        %v3592 = vsub.f32 %v3574, %v3588
        %v3593 = vsub.f32 %v3575, %v3589
        %v3594 = vmul.f32 %v3590, %v3590
        %v3595 = vmul.f32 %v3591, %v3591
        %v3596 = vmul.f32 %v3592, %v3592
        %v3597 = vmul.f32 %v3593, %v3593
        %3598 = vadd.xlane.f32.xlu0 %v3594
        %v3599 = vpop.xlane.xlu0 %3598
        %3600 = vadd.xlane.f32.xlu0 %v3595
        %v3601 = vpop.xlane.xlu0 %3600
        %3602 = vadd.xlane.f32.xlu0 %v3596
        %v3603 = vpop.xlane.xlu0 %3602
        %3604 = vadd.xlane.f32.xlu0 %v3597
        %v3605 = vpop.xlane.xlu0 %3604
        %v3606 = vmul.f32 %v3599, %v2680
        %v3607 = vmul.f32 %v3601, %v2680
        %v3608 = vmul.f32 %v3603, %v2680
        %v3609 = vmul.f32 %v3605, %v2680
        %v3610 = vadd.f32 %v3606, 1e-12
        %v3611 = vadd.f32 %v3607, 1e-12
        %v3612 = vadd.f32 %v3608, 1e-12
        %v3613 = vadd.f32 %v3609, 1e-12
        %v3614 = vrsqrt.pop %v3610
        %v3615 = vrsqrt.pop %v3611
        %v3616 = vrsqrt.pop %v3612
        %v3617 = vrsqrt.pop %v3613
        %v3618 = vmul.f32 %v3590, %v3614
        %v3619 = vmul.f32 %v3591, %v3615
        %v3620 = vmul.f32 %v3592, %v3616
        %v3621 = vmul.f32 %v3593, %v3617
        %v3623 = vlaneseq
        %v3624 = vshrl.u32 %v3623, 7
        %v3625 = vsub.s32 0, %v3624
        %v3626 = vrot.slane %v3576, %v3625
        %v3628 = vmul.f32 %v3618, %v3626
        %v3629 = vmul.f32 %v3619, %v3626
        %v3630 = vmul.f32 %v3620, %v3626
        %v3631 = vmul.f32 %v3621, %v3626
        %v3633 = vlaneseq
        %v3634 = vshrl.u32 %v3633, 7
        %v3635 = vsub.s32 0, %v3634
        %v3636 = vrot.slane %v3577, %v3635
        %v3638 = vadd.f32 %v3628, %v3636
        %v3639 = vadd.f32 %v3629, %v3636
        %v3640 = vadd.f32 %v3630, %v3636
        %v3641 = vadd.f32 %v3631, %v3636
        %3642 = vst [vmem:[#allocation2] sm:$0xff] %v3638
        %3643 = vst [vmem:[#allocation2 + $0x8] sm:$0xff] %v3639
        %3644 = vst [vmem:[#allocation2 + $0x10] sm:$0xff] %v3640
        %3645 = vst [vmem:[#allocation2 + $0x18] sm:$0xff] %v3641
        %p3646 = scmp.eq.s32.totalorder %s41, 1
        // Predicated region
        $region125: #{_bert_crf_apply.2} parent=103 // pred_check
          %p3647 = pneg %p3646
        $region126: #{_bert_crf_apply.2} parent=103 // pred_check_branch
          %3649 = sbr.rel (%p3647) target = $region128
        $region127: #{_bert_crf_apply.2} parent=103 // pred_region
          %v3650 = vpack.c.bf16 %v3639, %v3638
          %v3651 = vpack.c.bf16 %v3641, %v3640
          %v3652 = vld [vmem:[%s19] sm:$0xf]
          %v3653 = vld [vmem:[%s19 + $0x4] sm:$0xf]
          %v3654 = vld [vmem:[%s19 + $0x8] sm:$0xf]
          %v3655 = vld [vmem:[%s19 + $0xc] sm:$0xf]
          %v3656 = vld [vmem:[%s19 + $0x10] sm:$0xf]
          %v3657 = vld [vmem:[%s19 + $0x14] sm:$0xf]
          %v3658 = vld [vmem:[%s19 + $0x18] sm:$0xf]
          %v3659 = vld [vmem:[%s19 + $0x1c] sm:$0xf]
          %v3660 = vld [vmem:[%s19 + $0x20] sm:$0xf]
          %v3661 = vld [vmem:[%s19 + $0x24] sm:$0xf]
          %v3662 = vld [vmem:[%s19 + $0x28] sm:$0xf]
          %v3663 = vld [vmem:[%s19 + $0x2c] sm:$0xf]
          %v3664 = vld [vmem:[%s19 + $0x30] sm:$0xf]
          %v3665 = vld [vmem:[%s19 + $0x34] sm:$0xf]
          %v3666 = vld [vmem:[%s19 + $0x38] sm:$0xf]
          %v3667 = vld [vmem:[%s19 + $0x3c] sm:$0xf]
          %v3668 = vld [vmem:[%s20] sm:$0x1]
          %v3670 = vlaneseq
          %v3671 = vshrl.u32 %v3670, 7
          %v3672 = vsub.s32 0, %v3671
          %v3673 = vrot.slane %v3668, %v3672
          %v3691 = vunpack.c.l.b16 %v3652
          %v3692 = vunpack.c.l.b16 %v3653
          %v3693 = vunpack.c.l.b16 %v3654
          %v3694 = vunpack.c.l.b16 %v3655
          %v3695 = vunpack.c.l.b16 %v3656
          %v3696 = vunpack.c.l.b16 %v3657
          %v3697 = vunpack.c.l.b16 %v3658
          %v3698 = vunpack.c.l.b16 %v3659
          %v3699 = vunpack.c.l.b16 %v3660
          %v3700 = vunpack.c.l.b16 %v3661
          %v3701 = vunpack.c.l.b16 %v3662
          %v3702 = vunpack.c.l.b16 %v3663
          %v3703 = vunpack.c.l.b16 %v3664
          %v3704 = vunpack.c.l.b16 %v3665
          %v3705 = vunpack.c.l.b16 %v3666
          %v3706 = vunpack.c.l.b16 %v3667
          %v3707 = vpack.c.b16 %v3692, %v3691
          %v3708 = vpack.c.b16 %v3694, %v3693
          %v3709 = vpack.c.b16 %v3696, %v3695
          %v3710 = vpack.c.b16 %v3698, %v3697
          %v3711 = vpack.c.b16 %v3700, %v3699
          %v3712 = vpack.c.b16 %v3702, %v3701
          %v3713 = vpack.c.b16 %v3704, %v3703
          %v3714 = vpack.c.b16 %v3706, %v3705
          %3723 = vmatprep.subr.bf16.mxu0 0
          %3724 = vmatpush1.bf16.msra.mxu0 %v3707
          %3725 = vmatprep.subr.bf16.mxu0 0
          %3726 = vmatpush1.bf16.msra.mxu0 %v3708
          %3727 = vmatprep.subr.bf16.mxu0 0
          %3728 = vmatpush1.bf16.msra.mxu0 %v3709
          %3729 = vmatprep.subr.bf16.mxu0 0
          %3730 = vmatpush1.bf16.msra.mxu0 %v3710
          %3731 = vmatprep.subr.bf16.mxu0 0
          %3732 = vmatpush1.bf16.msra.mxu0 %v3711
          %3733 = vmatprep.subr.bf16.mxu0 0
          %3734 = vmatpush1.bf16.msra.mxu0 %v3712
          %3735 = vmatprep.subr.bf16.mxu0 0
          %3736 = vmatpush1.bf16.msra.mxu0 %v3713
          %3737 = vmatprep.subr.bf16.mxu0 0
          %3738 = vmatpush1.bf16.msra.mxu0 %v3714
          %3739 = vmatprep.subr.bf16.mxu0 0
          %3740 = vmatpush1.bf16.msra.mxu0 0
          %3741 = vmatprep.subr.bf16.mxu0 0
          %3742 = vmatpush1.bf16.msra.mxu0 0
          %3743 = vmatprep.subr.bf16.mxu0 0
          %3744 = vmatpush1.bf16.msra.mxu0 0
          %3745 = vmatprep.subr.bf16.mxu0 0
          %3746 = vmatpush1.bf16.msra.mxu0 0
          %3747 = vmatprep.subr.bf16.mxu0 0
          %3748 = vmatpush1.bf16.msra.mxu0 0
          %3749 = vmatprep.subr.bf16.mxu0 0
          %3750 = vmatpush1.bf16.msra.mxu0 0
          %3751 = vmatprep.subr.bf16.mxu0 0
          %3752 = vmatpush1.bf16.msra.mxu0 0
          %3753 = vmatprep.subr.bf16.mxu0 0
          %3754 = vmatpush1.bf16.msra.mxu0 0
          %3755 = vmatprep.mubr.bf16.mxu0 0
          %3756 = vmatmul.mubr.bf16.gmra.mrb[0].mxu0 %v3650
          %v3757 = vpop.f32.mrb[0].mxu0
          %v3758 = vadd.f32 %v3673, %v3757
          %v3759 = vpop.f32.mrb[0].mxu0
          %v3760 = vpop.f32.mrb[0].mxu0
          %v3761 = vadd.f32 %v3673, %v3760
          %v3762 = vpop.f32.mrb[0].mxu0
          %3763 = vmatprep.mubr.bf16.mxu0 0
          %3764 = vmatmul.mubr.bf16.gmra.mrb[0].mxu0 %v3651
          %v3765 = vpop.f32.mrb[0].mxu0
          %v3766 = vadd.f32 %v3673, %v3765
          %v3767 = vpop.f32.mrb[0].mxu0
          %v3768 = vpop.f32.mrb[0].mxu0
          %v3769 = vadd.f32 %v3673, %v3768
          %v3770 = vpop.f32.mrb[0].mxu0
          %3771 = vdwg.mxu0
          %3772 = vst [vmem:[%s21] sm:$0xff] %v3758
          %3773 = vst [vmem:[%s21 + $0x8] sm:$0xff] %v3761
          %3774 = vst [vmem:[%s21 + $0x10] sm:$0xff] %v3766
          %3775 = vst [vmem:[%s21 + $0x18] sm:$0xff] %v3769
        $region128: #{_bert_crf_apply.2} parent=103 // pred_fallthru
          _
        // Predicated region
        $region129: #{_bert_crf_apply.2} parent=103 // pred_check
          %p3776 = pneg %p575
        $region130: #{_bert_crf_apply.2} parent=103 // pred_check_branch
          %3778 = sbr.rel (%p3776) target = $region132
        $region131: #{_bert_crf_apply.2} parent=103 // pred_region
          _
        $region132: #{_bert_crf_apply.2} parent=103 // pred_fallthru
          _
        // Predicated region
        $region133: #{_bert_crf_apply.2} parent=103 // pred_check
          %p3779 = pneg %p575
        $region134: #{_bert_crf_apply.2} parent=103 // pred_check_branch
          %3781 = sbr.rel (%p3779) target = $region136
        $region135: #{_bert_crf_apply.2} parent=103 // pred_region
          _
        $region136: #{_bert_crf_apply.2} parent=103 // pred_fallthru
          _
      $region104: #{_bert_crf_apply.2} parent=5 // pred_fallthru
        _
      %p3782 = scmp.le.s32.totalorder 2, %s36
      // Predicated region
      $region137: #{_bert_crf_apply.2} parent=5 // pred_check
        %p3783 = pneg %p3782
      $region138: #{_bert_crf_apply.2} parent=5 // pred_check_branch
        %3785 = sbr.rel (%p3783) target = $region140
      $region139: #{_bert_crf_apply.2} parent=5 // pred_region
        %s3786 = ssub.s32 %s36, 2
      $region140: #{_bert_crf_apply.2} parent=5 // pred_fallthru
        _
    $region6: #{_bert_crf_apply.2} parent=1 // loop_footer
      %s40 = sadd.s32 1, %s36
    $region7: #{_bert_crf_apply.2} parent=1 // loop_footer_branch
      %35 = sbr.rel target = $region3
    $region8: #{_bert_crf_apply.2} parent=1 // loop_exit
      _
    %3787 = vsyncpa [#allocation4], 1
    %s3788 = scalar_lea.sflag [#allocation4], 1
    %3789 = vsyncpa %s3788, 1
    %3790 = vsyncpa [#allocation6], 1
    %s3791 = scalar_lea.sflag [#allocation6], 1
    %3792 = vsyncpa %s3791, 1
    %3793 = vsyncpa [#allocation9], 1
    %s3794 = scalar_lea.sflag [#allocation9], 1
    %3795 = vsyncpa %s3794, 1

</llo_original>
